<compile_context>
chip_gen: v6e
topology: v6e:2x2x1
jax: 0.10.0
libtpu: 0.0.40
codegen_flags: <defaults>
</compile_context>

<pallas_src>
import jax
import jax.numpy as jnp
from jax import lax
from jax.experimental import pallas as pl
from jax.experimental.pallas import tpu as pltpu


# ----------------------------- LSTM cell math -------------------------------

def _lstm_gates(g, c, H):
    """g: (B, 4H) pre-activation gates (PyTorch order i,f,g,o); c: (B, H)."""
    i = jax.nn.sigmoid(g[:, 0:H])
    f = jax.nn.sigmoid(g[:, H:2 * H])
    gg = jnp.tanh(g[:, 2 * H:3 * H])
    o = jax.nn.sigmoid(g[:, 3 * H:4 * H])
    c_new = f * c + i * gg
    h_new = o * jnp.tanh(c_new)
    return h_new, c_new


# ----------------------------- Pallas kernels -------------------------------

def enc_bilstm_kernel(x_ref, wih_ref, b_ref, whhf_ref, whhb_ref, y_ref, gx_scr):
    """One bidirectional LSTM layer, both directions fused per time step.

    x_ref  : (S*B, E)   flattened (time-major) layer input
    wih_ref: (E, 8H)    [W_ih_fwd | W_ih_bwd], fused-gate layout
    b_ref  : (1, 8H)    folded biases for both directions
    whh*   : (H, 4H)    recurrent weights per direction
    y_ref  : (S, B, 2H) output [h_fwd ; h_bwd]
    gx_scr : (S*B, 8H)  VMEM scratch for the hoisted input projection
    """
    S, B, H2 = y_ref.shape
    H = H2 // 2
    G = 4 * H

    # Prologue: one MXU matmul covering every step of both directions.
    gx_scr[...] = (jnp.dot(x_ref[...], wih_ref[...],
                           preferred_element_type=jnp.float32) + b_ref[...])

    whh_f = whhf_ref[...]
    whh_b = whhb_ref[...]

    def step(t, carry):
        h_f, c_f, h_b, c_b = carry
        tb = S - 1 - t
        row_f = gx_scr[pl.ds(t * B, B), :]        # (B, 8H)
        row_b = gx_scr[pl.ds(tb * B, B), :]       # (B, 8H)
        g_f = row_f[:, 0:G] + jnp.dot(h_f, whh_f,
                                      preferred_element_type=jnp.float32)
        g_b = row_b[:, G:2 * G] + jnp.dot(h_b, whh_b,
                                          preferred_element_type=jnp.float32)
        h_f, c_f = _lstm_gates(g_f, c_f, H)
        h_b, c_b = _lstm_gates(g_b, c_b, H)
        y_ref[t, :, 0:H] = h_f
        y_ref[tb, :, H:2 * H] = h_b
        return h_f, c_f, h_b, c_b

    z = jnp.zeros((B, H), jnp.float32)
    lax.fori_loop(0, S, step, (z, z, z, z), unroll=True)


def run_enc_bilstm(x, wih_cat, b_cat, whh_f, whh_b):
    """x: (S, B, E) -> y: (S, B, 2H).  Single pallas_call, in-kernel recurrence."""
    S, B, E = x.shape
    H = whh_f.shape[0]
    x2 = x.reshape(S * B, E)          # free row-major reshape outside the kernel
    return pl.pallas_call(
        enc_bilstm_kernel,
        out_shape=jax.ShapeDtypeStruct((S, B, 2 * H), jnp.float32),
        grid=(1,),
        in_specs=[pl.BlockSpec((S * B, E), lambda i: (0, 0)),
                  pl.BlockSpec((E, 8 * H), lambda i: (0, 0)),
                  pl.BlockSpec((1, 8 * H), lambda i: (0, 0)),
                  pl.BlockSpec((H, 4 * H), lambda i: (0, 0)),
                  pl.BlockSpec((H, 4 * H), lambda i: (0, 0))],
        out_specs=pl.BlockSpec((S, B, 2 * H), lambda i: (0, 0, 0)),
        scratch_shapes=[pltpu.VMEM((S * B, 8 * H), jnp.float32)],
    )(x2, wih_cat, b_cat, whh_f, whh_b)


def dec_lstm_kernel(x_ref, wih_ref, b_ref, whh_ref, y_ref, hN_ref, cN_ref,
                    gx_scr):
    """One unidirectional LSTM layer with fused input projection.

    x_ref : (T*B, E); wih_ref: (E, 4H); b_ref: (1, 4H); whh_ref: (H, 4H)
    y_ref : (T, B, H); hN/cN: (B, H); gx_scr: (T*B, 4H)
    """
    T, B, H = y_ref.shape

    gx_scr[...] = (jnp.dot(x_ref[...], wih_ref[...],
                           preferred_element_type=jnp.float32) + b_ref[...])
    whh = whh_ref[...]

    def step(t, carry):
        h, c = carry
        g = gx_scr[pl.ds(t * B, B), :] + jnp.dot(
            h, whh, preferred_element_type=jnp.float32)
        h, c = _lstm_gates(g, c, H)
        y_ref[t] = h
        return h, c

    z = jnp.zeros((B, H), jnp.float32)
    h, c = lax.fori_loop(0, T, step, (z, z), unroll=True)
    hN_ref[...] = h
    cN_ref[...] = c


def run_dec_lstm(x, wih, b, whh):
    """x: (T, B, E) -> (y (T,B,H), h_N (B,H), c_N (B,H))."""
    T, B, E = x.shape
    H = whh.shape[0]
    x2 = x.reshape(T * B, E)
    return pl.pallas_call(
        dec_lstm_kernel,
        out_shape=(jax.ShapeDtypeStruct((T, B, H), jnp.float32),
                   jax.ShapeDtypeStruct((B, H), jnp.float32),
                   jax.ShapeDtypeStruct((B, H), jnp.float32)),
        grid=(1,),
        in_specs=[pl.BlockSpec((T * B, E), lambda i: (0, 0)),
                  pl.BlockSpec((E, 4 * H), lambda i: (0, 0)),
                  pl.BlockSpec((1, 4 * H), lambda i: (0, 0)),
                  pl.BlockSpec((H, 4 * H), lambda i: (0, 0))],
        out_specs=(pl.BlockSpec((T, B, H), lambda i: (0, 0, 0)),
                   pl.BlockSpec((B, H), lambda i: (0, 0)),
                   pl.BlockSpec((B, H), lambda i: (0, 0))),
        scratch_shapes=[pltpu.VMEM((T * B, 4 * H), jnp.float32)],
    )(x2, wih, b, whh)


def attn_proj_kernel(hd_ref, he_ref, w1_ref, b1_ref, w2_ref, b2_ref, out_ref):
    """Fused: bmm attention -> softmax -> context -> [concat] -> linear1 ->
    tanh -> linear2 (tied) -> log_softmax.  Whole batch in one invocation."""
    hd = hd_ref[...]                                   # (B, T, Hd)
    he = he_ref[...]                                   # (B, S, Hd)
    B, T, Hd = hd.shape

    # attention scores + exact softmax (dim=2)
    s = jnp.einsum('btd,bsd->bts', hd, he, preferred_element_type=jnp.float32)
    s = s - jnp.max(s, axis=-1, keepdims=True)
    p = jnp.exp(s)
    p = p / jnp.sum(p, axis=-1, keepdims=True)
    ctx = jnp.einsum('bts,bsd->btd', p, he,
                     preferred_element_type=jnp.float32)   # (B, T, Hd)

    # concat([context, output]) @ W1^T == ctx @ W1[:, :Hd]^T + out @ W1[:, Hd:]^T
    ctx2 = ctx.reshape(B * T, Hd)
    hd2 = hd.reshape(B * T, Hd)
    h1 = jnp.tanh(
        jnp.dot(ctx2, w1_ref[0:Hd, :], preferred_element_type=jnp.float32)
        + jnp.dot(hd2, w1_ref[Hd:2 * Hd, :], preferred_element_type=jnp.float32)
        + b1_ref[...])                                  # (B*T, E)

    logits = jnp.dot(h1, w2_ref[...],
                     preferred_element_type=jnp.float32) + b2_ref[...]
    z = logits - jnp.max(logits, axis=-1, keepdims=True)
    logp = z - jnp.log(jnp.sum(jnp.exp(z), axis=-1, keepdims=True))
    out_ref[...] = logp.reshape(B, T, -1)


def run_attn_proj(h_d, h_e, w1t, b1, w2t, b2):
    B, T, Hd = h_d.shape
    _, S, _ = h_e.shape
    F, E = w1t.shape
    V = w2t.shape[1]
    return pl.pallas_call(
        attn_proj_kernel,
        out_shape=jax.ShapeDtypeStruct((B, T, V), jnp.float32),
        grid=(1,),
        in_specs=[pl.BlockSpec((B, T, Hd), lambda i: (0, 0, 0)),
                  pl.BlockSpec((B, S, Hd), lambda i: (0, 0, 0)),
                  pl.BlockSpec((F, E), lambda i: (0, 0)),
                  pl.BlockSpec((1, E), lambda i: (0, 0)),
                  pl.BlockSpec((E, V), lambda i: (0, 0)),
                  pl.BlockSpec((1, V), lambda i: (0, 0))],
        out_specs=pl.BlockSpec((B, T, V), lambda i: (0, 0, 0)),
    )(h_d, h_e, w1t, b1, w2t, b2)


# ----------------------------- parameters -----------------------------------

def init_params(key, src_vocab, trg_vocab, embed, hidden, num_layers):
    H_enc = hidden
    H_dec = 2 * hidden
    keys = iter(jax.random.split(key, 256))
    params = {}

    def uni(shape, scale):
        return jax.random.uniform(next(keys), shape, jnp.float32, -scale, scale)

    # encoder embedding (PyTorch default N(0,1))
    params["emb_src"] = jax.random.normal(next(keys), (src_vocab, embed),
                                          jnp.float32)
    # decoder embedding: (rand - 0.5) * 2 -> U(-1, 1); tied with linear2.weight
    params["emb_trg"] = jax.random.uniform(next(keys), (trg_vocab, embed),
                                           jnp.float32, -1.0, 1.0)

    def lstm_dir(in_dim, H):
        s = H ** -0.5
        w_ih = uni((in_dim, 4 * H), s)                 # fused-gate layout
        w_hh = uni((H, 4 * H), s)
        b = uni((1, 4 * H), s) + uni((1, 4 * H), s)    # b_ih + b_hh folded
        return w_ih, w_hh, b

    # encoder: bidirectional LSTM stack (inferred: Encoder body not given)
    params["enc_lstm"] = []
    for layer in range(num_layers):
        in_dim = embed if layer == 0 else 2 * H_enc
        wif, whf, bf = lstm_dir(in_dim, H_enc)
        wib, whb, bb = lstm_dir(in_dim, H_enc)
        wih_cat = jnp.concatenate([wif, wib], axis=-1)   # (in, 8H)
        b_cat = jnp.concatenate([bf, bb], axis=-1)       # (1, 8H)
        params["enc_lstm"].append((wih_cat, b_cat, whf, whb))

    # decoder LSTM stack, hidden = 2 * hidden
    params["dec_lstm"] = []
    for layer in range(num_layers):
        in_dim = embed if layer == 0 else H_dec
        wih, whh, b = lstm_dir(in_dim, H_dec)
        params["dec_lstm"].append((wih, b, whh))

    s1 = (2 * H_dec) ** -0.5
    params["w1t"] = uni((2 * H_dec, embed), s1)          # linear1 weight^T
    params["b1"] = uni((1, embed), s1)
    s2 = embed ** -0.5
    params["b2"] = uni((1, trg_vocab), s2)               # linear2 bias (tied W)
    return params


# ----------------------------- forward pass ---------------------------------

def seq2seq_forward(params, src, trg, num_layers):
    # ---- Encoder: embedding + bidirectional LSTM -> (S, B, 2*hidden) ----
    x = jnp.take(params["emb_src"], src, axis=0)             # (S, B, E)
    for layer in range(num_layers):
        x = run_enc_bilstm(x, *params["enc_lstm"][layer])
    enc_output = x                                           # (S, B, H_dec)

    # ---- Decoder LSTM (hidden=None -> zero init, as in the reference) ----
    d = jnp.take(params["emb_trg"], trg, axis=0)             # (T, B, E)
    h_fin, c_fin = [], []
    for layer in range(num_layers):
        d, hN, cN = run_dec_lstm(d, *params["dec_lstm"][layer])
        h_fin.append(hN)
        c_fin.append(cN)
    dec_output = d                                           # (T, B, H_dec)
    hidden = (jnp.stack(h_fin, axis=0), jnp.stack(c_fin, axis=0))

    # ---- fused attention + projection + log_softmax ----
    h_e = jnp.transpose(enc_output, (1, 0, 2))               # (B, S, H_dec)
    h_d = jnp.transpose(dec_output, (1, 0, 2))               # (B, T, H_dec)
    w2t = params["emb_trg"].T                                # (E, V), tied
    logp = run_attn_proj(h_d, h_e, params["w1t"], params["b1"],
                         w2t, params["b2"])                  # (B, T, V)
    return jnp.transpose(logp, (1, 0, 2)), hidden


# ----------------------------- main ------------------------------------------

if __name__ == "__main__":
    SRC_VOCAB, TRG_VOCAB = 50, 40
    EMBED, HIDDEN, NUM_LAYERS = 32, 32, 1
    S_LEN, T_LEN, BATCH = 10, 8, 2

    key = jax.random.PRNGKey(0)
    pkey, skey, tkey = jax.random.split(key, 3)
    params = init_params(pkey, SRC_VOCAB, TRG_VOCAB, EMBED, HIDDEN, NUM_LAYERS)
    src = jax.random.randint(skey, (S_LEN, BATCH), 0, SRC_VOCAB, dtype=jnp.int32)
    trg = jax.random.randint(tkey, (T_LEN, BATCH), 0, TRG_VOCAB, dtype=jnp.int32)

    fwd = jax.jit(seq2seq_forward, static_argnums=(3,))
    logp, (h_n, c_n) = fwd(params, src, trg, NUM_LAYERS)
    jax.block_until_ready((logp, h_n, c_n))

    assert logp.shape == (T_LEN, BATCH, TRG_VOCAB)
    assert h_n.shape == (NUM_LAYERS, BATCH, 2 * HIDDEN)
    assert c_n.shape == (NUM_LAYERS, BATCH, 2 * HIDDEN)
    print("KERNEL_OK")
</pallas_src>

<mosaic_0001>
module attributes {stable_mosaic.version = 11 : i64} {
  func.func @dec_lstm_kernel(%arg0: i32, %arg1: memref<16x32xf32, #tpu.memory_space<vmem>>, %arg2: memref<32x256xf32, #tpu.memory_space<vmem>>, %arg3: memref<1x256xf32, #tpu.memory_space<vmem>>, %arg4: memref<64x256xf32, #tpu.memory_space<vmem>>, %arg5: memref<8x2x64xf32, #tpu.memory_space<vmem>>, %arg6: memref<2x64xf32, #tpu.memory_space<vmem>>, %arg7: memref<2x64xf32, #tpu.memory_space<vmem>>, %arg8: memref<16x256xf32, #tpu.memory_space<vmem>>) attributes {dimension_semantics = [#tpu.dimension_semantics<arbitrary>], iteration_bounds = array<i64: 1>, scalar_prefetch = 0 : i64, scratch_operands = 1 : i64, tpu.core_type = #tpu.core_type<tc>, window_params = [{pipeline_mode = #tpu.pipeline_mode<synchronous>, transform_indices = @transform_0, window_bounds = array<i64: 16, 32>}, {pipeline_mode = #tpu.pipeline_mode<synchronous>, transform_indices = @transform_1, window_bounds = array<i64: 32, 256>}, {pipeline_mode = #tpu.pipeline_mode<synchronous>, transform_indices = @transform_2, window_bounds = array<i64: 1, 256>}, {pipeline_mode = #tpu.pipeline_mode<synchronous>, transform_indices = @transform_3, window_bounds = array<i64: 64, 256>}, {pipeline_mode = #tpu.pipeline_mode<synchronous>, transform_indices = @transform_4, window_bounds = array<i64: 8, 2, 64>}, {pipeline_mode = #tpu.pipeline_mode<synchronous>, transform_indices = @transform_5, window_bounds = array<i64: 2, 64>}, {pipeline_mode = #tpu.pipeline_mode<synchronous>, transform_indices = @transform_6, window_bounds = array<i64: 2, 64>}]} {
    %c0 = arith.constant 0 : index
    %c0_0 = arith.constant 0 : index
    %0 = vector.load %arg1[%c0, %c0_0] : memref<16x32xf32, #tpu.memory_space<vmem>>, vector<16x32xf32>
    %c0_1 = arith.constant 0 : index
    %c0_2 = arith.constant 0 : index
    %1 = vector.load %arg2[%c0_1, %c0_2] : memref<32x256xf32, #tpu.memory_space<vmem>>, vector<32x256xf32>
    %cst = arith.constant dense<0.000000e+00> : vector<16x256xf32>
    %2 = tpu.matmul %0, %1, %cst {dimension_numbers = #tpu.dot_dimension_numbers<[1], [0], [0], [1], [0, 0, 1, 1], [], []>} : vector<16x32xf32>, vector<32x256xf32>, vector<16x256xf32> -> vector<16x256xf32>
    %c0_3 = arith.constant 0 : index
    %c0_4 = arith.constant 0 : index
    %3 = vector.load %arg3[%c0_3, %c0_4] : memref<1x256xf32, #tpu.memory_space<vmem>>, vector<1x256xf32>
    %4 = vector.broadcast %3 : vector<1x256xf32> to vector<16x256xf32>
    %5 = arith.addf %2, %4 : vector<16x256xf32>
    %c0_5 = arith.constant 0 : index
    %c0_6 = arith.constant 0 : index
    %6 = vector.load %arg8[%c0_5, %c0_6] : memref<16x256xf32, #tpu.memory_space<vmem>>, vector<16x256xf32>
    tpu.vector_store %arg8[%c0_5, %c0_6], %5 {strides = array<i32>} : memref<16x256xf32, #tpu.memory_space<vmem>>, vector<16x256xf32>,
    %c0_7 = arith.constant 0 : index
    %c0_8 = arith.constant 0 : index
    %7 = vector.load %arg4[%c0_7, %c0_8] : memref<64x256xf32, #tpu.memory_space<vmem>>, vector<64x256xf32>
    %cst_9 = arith.constant 0.000000e+00 : f32
    %8 = vector.broadcast %cst_9 : f32 to vector<2x64xf32>
    %c0_i32 = arith.constant 0 : i32
    %c2_i32 = arith.constant 2 : i32
    %9 = arith.muli %c0_i32, %c2_i32 : i32
    %10 = arith.index_cast %9 : i32 to index
    %c0_10 = arith.constant 0 : index
    %11 = vector.load %arg8[%10, %c0_10] : memref<16x256xf32, #tpu.memory_space<vmem>>, vector<2x256xf32>
    %cst_11 = arith.constant dense<0.000000e+00> : vector<2x256xf32>
    %12 = tpu.matmul %8, %7, %cst_11 {dimension_numbers = #tpu.dot_dimension_numbers<[1], [0], [0], [1], [0, 0, 1, 1], [], []>} : vector<2x64xf32>, vector<64x256xf32>, vector<2x256xf32> -> vector<2x256xf32>
    %13 = arith.addf %11, %12 : vector<2x256xf32>
    %14 = vector.extract_strided_slice %13 {offsets = [0, 0], sizes = [2, 64], strides = [1, 1]} : vector<2x256xf32> to vector<2x64xf32>
    %15 = arith.negf %14 : vector<2x64xf32>
    %16 = math.exp %15 : vector<2x64xf32>
    %cst_12 = arith.constant 1.000000e+00 : f32
    %17 = vector.broadcast %cst_12 : f32 to vector<2x64xf32>
    %18 = arith.addf %17, %16 : vector<2x64xf32>
    %19 = arith.divf %17, %18 : vector<2x64xf32>
    %20 = vector.extract_strided_slice %13 {offsets = [0, 64], sizes = [2, 64], strides = [1, 1]} : vector<2x256xf32> to vector<2x64xf32>
    %21 = arith.negf %20 : vector<2x64xf32>
    %22 = math.exp %21 : vector<2x64xf32>
    %cst_13 = arith.constant 1.000000e+00 : f32
    %23 = vector.broadcast %cst_13 : f32 to vector<2x64xf32>
    %24 = arith.addf %23, %22 : vector<2x64xf32>
    %25 = arith.divf %23, %24 : vector<2x64xf32>
    %26 = vector.extract_strided_slice %13 {offsets = [0, 128], sizes = [2, 64], strides = [1, 1]} : vector<2x256xf32> to vector<2x64xf32>
    %27 = math.tanh %26 : vector<2x64xf32>
    %28 = vector.extract_strided_slice %13 {offsets = [0, 192], sizes = [2, 64], strides = [1, 1]} : vector<2x256xf32> to vector<2x64xf32>
    %29 = arith.negf %28 : vector<2x64xf32>
    %30 = math.exp %29 : vector<2x64xf32>
    %cst_14 = arith.constant 1.000000e+00 : f32
    %31 = vector.broadcast %cst_14 : f32 to vector<2x64xf32>
    %32 = arith.addf %31, %30 : vector<2x64xf32>
    %33 = arith.divf %31, %32 : vector<2x64xf32>
    %34 = arith.mulf %25, %8 : vector<2x64xf32>
    %35 = arith.mulf %19, %27 : vector<2x64xf32>
    %36 = arith.addf %34, %35 : vector<2x64xf32>
    %37 = math.tanh %36 : vector<2x64xf32>
    %38 = arith.mulf %33, %37 : vector<2x64xf32>
    %39 = arith.index_cast %c0_i32 : i32 to index
    %c0_15 = arith.constant 0 : index
    %c0_16 = arith.constant 0 : index
    %40 = vector.load %arg5[%39, %c0_15, %c0_16] : memref<8x2x64xf32, #tpu.memory_space<vmem>>, vector<1x2x64xf32>
    %41 = vector.shape_cast %40 : vector<1x2x64xf32> to vector<2x64xf32>
    %42 = vector.shape_cast %38 : vector<2x64xf32> to vector<1x2x64xf32>
    tpu.vector_store %arg5[%39, %c0_15, %c0_16], %42 {strides = array<i32>} : memref<8x2x64xf32, #tpu.memory_space<vmem>>, vector<1x2x64xf32>,
    %c1_i32 = arith.constant 1 : i32
    %c2_i32_17 = arith.constant 2 : i32
    %43 = arith.muli %c1_i32, %c2_i32_17 : i32
    %44 = arith.index_cast %43 : i32 to index
    %c0_18 = arith.constant 0 : index
    %45 = vector.load %arg8[%44, %c0_18] : memref<16x256xf32, #tpu.memory_space<vmem>>, vector<2x256xf32>
    %cst_19 = arith.constant dense<0.000000e+00> : vector<2x256xf32>
    %46 = tpu.matmul %38, %7, %cst_19 {dimension_numbers = #tpu.dot_dimension_numbers<[1], [0], [0], [1], [0, 0, 1, 1], [], []>} : vector<2x64xf32>, vector<64x256xf32>, vector<2x256xf32> -> vector<2x256xf32>
    %47 = arith.addf %45, %46 : vector<2x256xf32>
    %48 = vector.extract_strided_slice %47 {offsets = [0, 0], sizes = [2, 64], strides = [1, 1]} : vector<2x256xf32> to vector<2x64xf32>
    %49 = arith.negf %48 : vector<2x64xf32>
    %50 = math.exp %49 : vector<2x64xf32>
    %cst_20 = arith.constant 1.000000e+00 : f32
    %51 = vector.broadcast %cst_20 : f32 to vector<2x64xf32>
    %52 = arith.addf %51, %50 : vector<2x64xf32>
    %53 = arith.divf %51, %52 : vector<2x64xf32>
    %54 = vector.extract_strided_slice %47 {offsets = [0, 64], sizes = [2, 64], strides = [1, 1]} : vector<2x256xf32> to vector<2x64xf32>
    %55 = arith.negf %54 : vector<2x64xf32>
    %56 = math.exp %55 : vector<2x64xf32>
    %cst_21 = arith.constant 1.000000e+00 : f32
    %57 = vector.broadcast %cst_21 : f32 to vector<2x64xf32>
    %58 = arith.addf %57, %56 : vector<2x64xf32>
    %59 = arith.divf %57, %58 : vector<2x64xf32>
    %60 = vector.extract_strided_slice %47 {offsets = [0, 128], sizes = [2, 64], strides = [1, 1]} : vector<2x256xf32> to vector<2x64xf32>
    %61 = math.tanh %60 : vector<2x64xf32>
    %62 = vector.extract_strided_slice %47 {offsets = [0, 192], sizes = [2, 64], strides = [1, 1]} : vector<2x256xf32> to vector<2x64xf32>
    %63 = arith.negf %62 : vector<2x64xf32>
    %64 = math.exp %63 : vector<2x64xf32>
    %cst_22 = arith.constant 1.000000e+00 : f32
    %65 = vector.broadcast %cst_22 : f32 to vector<2x64xf32>
    %66 = arith.addf %65, %64 : vector<2x64xf32>
    %67 = arith.divf %65, %66 : vector<2x64xf32>
    %68 = arith.mulf %59, %36 : vector<2x64xf32>
    %69 = arith.mulf %53, %61 : vector<2x64xf32>
    %70 = arith.addf %68, %69 : vector<2x64xf32>
    %71 = math.tanh %70 : vector<2x64xf32>
    %72 = arith.mulf %67, %71 : vector<2x64xf32>
    %73 = arith.index_cast %c1_i32 : i32 to index
    %c0_23 = arith.constant 0 : index
    %c0_24 = arith.constant 0 : index
    %74 = vector.load %arg5[%73, %c0_23, %c0_24] : memref<8x2x64xf32, #tpu.memory_space<vmem>>, vector<1x2x64xf32>
    %75 = vector.shape_cast %74 : vector<1x2x64xf32> to vector<2x64xf32>
    %76 = vector.shape_cast %72 : vector<2x64xf32> to vector<1x2x64xf32>
    tpu.vector_store %arg5[%73, %c0_23, %c0_24], %76 {strides = array<i32>} : memref<8x2x64xf32, #tpu.memory_space<vmem>>, vector<1x2x64xf32>,
    %c2_i32_25 = arith.constant 2 : i32
    %c2_i32_26 = arith.constant 2 : i32
    %77 = arith.muli %c2_i32_25, %c2_i32_26 : i32
    %78 = arith.index_cast %77 : i32 to index
    %c0_27 = arith.constant 0 : index
    %79 = vector.load %arg8[%78, %c0_27] : memref<16x256xf32, #tpu.memory_space<vmem>>, vector<2x256xf32>
    %cst_28 = arith.constant dense<0.000000e+00> : vector<2x256xf32>
    %80 = tpu.matmul %72, %7, %cst_28 {dimension_numbers = #tpu.dot_dimension_numbers<[1], [0], [0], [1], [0, 0, 1, 1], [], []>} : vector<2x64xf32>, vector<64x256xf32>, vector<2x256xf32> -> vector<2x256xf32>
    %81 = arith.addf %79, %80 : vector<2x256xf32>
    %82 = vector.extract_strided_slice %81 {offsets = [0, 0], sizes = [2, 64], strides = [1, 1]} : vector<2x256xf32> to vector<2x64xf32>
    %83 = arith.negf %82 : vector<2x64xf32>
    %84 = math.exp %83 : vector<2x64xf32>
    %cst_29 = arith.constant 1.000000e+00 : f32
    %85 = vector.broadcast %cst_29 : f32 to vector<2x64xf32>
    %86 = arith.addf %85, %84 : vector<2x64xf32>
    %87 = arith.divf %85, %86 : vector<2x64xf32>
    %88 = vector.extract_strided_slice %81 {offsets = [0, 64], sizes = [2, 64], strides = [1, 1]} : vector<2x256xf32> to vector<2x64xf32>
    %89 = arith.negf %88 : vector<2x64xf32>
    %90 = math.exp %89 : vector<2x64xf32>
    %cst_30 = arith.constant 1.000000e+00 : f32
    %91 = vector.broadcast %cst_30 : f32 to vector<2x64xf32>
    %92 = arith.addf %91, %90 : vector<2x64xf32>
    %93 = arith.divf %91, %92 : vector<2x64xf32>
    %94 = vector.extract_strided_slice %81 {offsets = [0, 128], sizes = [2, 64], strides = [1, 1]} : vector<2x256xf32> to vector<2x64xf32>
    %95 = math.tanh %94 : vector<2x64xf32>
    %96 = vector.extract_strided_slice %81 {offsets = [0, 192], sizes = [2, 64], strides = [1, 1]} : vector<2x256xf32> to vector<2x64xf32>
    %97 = arith.negf %96 : vector<2x64xf32>
    %98 = math.exp %97 : vector<2x64xf32>
    %cst_31 = arith.constant 1.000000e+00 : f32
    %99 = vector.broadcast %cst_31 : f32 to vector<2x64xf32>
    %100 = arith.addf %99, %98 : vector<2x64xf32>
    %101 = arith.divf %99, %100 : vector<2x64xf32>
    %102 = arith.mulf %93, %70 : vector<2x64xf32>
    %103 = arith.mulf %87, %95 : vector<2x64xf32>
    %104 = arith.addf %102, %103 : vector<2x64xf32>
    %105 = math.tanh %104 : vector<2x64xf32>
    %106 = arith.mulf %101, %105 : vector<2x64xf32>
    %107 = arith.index_cast %c2_i32_25 : i32 to index
    %c0_32 = arith.constant 0 : index
    %c0_33 = arith.constant 0 : index
    %108 = vector.load %arg5[%107, %c0_32, %c0_33] : memref<8x2x64xf32, #tpu.memory_space<vmem>>, vector<1x2x64xf32>
    %109 = vector.shape_cast %108 : vector<1x2x64xf32> to vector<2x64xf32>
    %110 = vector.shape_cast %106 : vector<2x64xf32> to vector<1x2x64xf32>
    tpu.vector_store %arg5[%107, %c0_32, %c0_33], %110 {strides = array<i32>} : memref<8x2x64xf32, #tpu.memory_space<vmem>>, vector<1x2x64xf32>,
    %c3_i32 = arith.constant 3 : i32
    %c2_i32_34 = arith.constant 2 : i32
    %111 = arith.muli %c3_i32, %c2_i32_34 : i32
    %112 = arith.index_cast %111 : i32 to index
    %c0_35 = arith.constant 0 : index
    %113 = vector.load %arg8[%112, %c0_35] : memref<16x256xf32, #tpu.memory_space<vmem>>, vector<2x256xf32>
    %cst_36 = arith.constant dense<0.000000e+00> : vector<2x256xf32>
    %114 = tpu.matmul %106, %7, %cst_36 {dimension_numbers = #tpu.dot_dimension_numbers<[1], [0], [0], [1], [0, 0, 1, 1], [], []>} : vector<2x64xf32>, vector<64x256xf32>, vector<2x256xf32> -> vector<2x256xf32>
    %115 = arith.addf %113, %114 : vector<2x256xf32>
    %116 = vector.extract_strided_slice %115 {offsets = [0, 0], sizes = [2, 64], strides = [1, 1]} : vector<2x256xf32> to vector<2x64xf32>
    %117 = arith.negf %116 : vector<2x64xf32>
    %118 = math.exp %117 : vector<2x64xf32>
    %cst_37 = arith.constant 1.000000e+00 : f32
    %119 = vector.broadcast %cst_37 : f32 to vector<2x64xf32>
    %120 = arith.addf %119, %118 : vector<2x64xf32>
    %121 = arith.divf %119, %120 : vector<2x64xf32>
    %122 = vector.extract_strided_slice %115 {offsets = [0, 64], sizes = [2, 64], strides = [1, 1]} : vector<2x256xf32> to vector<2x64xf32>
    %123 = arith.negf %122 : vector<2x64xf32>
    %124 = math.exp %123 : vector<2x64xf32>
    %cst_38 = arith.constant 1.000000e+00 : f32
    %125 = vector.broadcast %cst_38 : f32 to vector<2x64xf32>
    %126 = arith.addf %125, %124 : vector<2x64xf32>
    %127 = arith.divf %125, %126 : vector<2x64xf32>
    %128 = vector.extract_strided_slice %115 {offsets = [0, 128], sizes = [2, 64], strides = [1, 1]} : vector<2x256xf32> to vector<2x64xf32>
    %129 = math.tanh %128 : vector<2x64xf32>
    %130 = vector.extract_strided_slice %115 {offsets = [0, 192], sizes = [2, 64], strides = [1, 1]} : vector<2x256xf32> to vector<2x64xf32>
    %131 = arith.negf %130 : vector<2x64xf32>
    %132 = math.exp %131 : vector<2x64xf32>
    %cst_39 = arith.constant 1.000000e+00 : f32
    %133 = vector.broadcast %cst_39 : f32 to vector<2x64xf32>
    %134 = arith.addf %133, %132 : vector<2x64xf32>
    %135 = arith.divf %133, %134 : vector<2x64xf32>
    %136 = arith.mulf %127, %104 : vector<2x64xf32>
    %137 = arith.mulf %121, %129 : vector<2x64xf32>
    %138 = arith.addf %136, %137 : vector<2x64xf32>
    %139 = math.tanh %138 : vector<2x64xf32>
    %140 = arith.mulf %135, %139 : vector<2x64xf32>
    %141 = arith.index_cast %c3_i32 : i32 to index
    %c0_40 = arith.constant 0 : index
    %c0_41 = arith.constant 0 : index
    %142 = vector.load %arg5[%141, %c0_40, %c0_41] : memref<8x2x64xf32, #tpu.memory_space<vmem>>, vector<1x2x64xf32>
    %143 = vector.shape_cast %142 : vector<1x2x64xf32> to vector<2x64xf32>
    %144 = vector.shape_cast %140 : vector<2x64xf32> to vector<1x2x64xf32>
    tpu.vector_store %arg5[%141, %c0_40, %c0_41], %144 {strides = array<i32>} : memref<8x2x64xf32, #tpu.memory_space<vmem>>, vector<1x2x64xf32>,
    %c4_i32 = arith.constant 4 : i32
    %c2_i32_42 = arith.constant 2 : i32
    %145 = arith.muli %c4_i32, %c2_i32_42 : i32
    %146 = arith.index_cast %145 : i32 to index
    %c0_43 = arith.constant 0 : index
    %147 = vector.load %arg8[%146, %c0_43] : memref<16x256xf32, #tpu.memory_space<vmem>>, vector<2x256xf32>
    %cst_44 = arith.constant dense<0.000000e+00> : vector<2x256xf32>
    %148 = tpu.matmul %140, %7, %cst_44 {dimension_numbers = #tpu.dot_dimension_numbers<[1], [0], [0], [1], [0, 0, 1, 1], [], []>} : vector<2x64xf32>, vector<64x256xf32>, vector<2x256xf32> -> vector<2x256xf32>
    %149 = arith.addf %147, %148 : vector<2x256xf32>
    %150 = vector.extract_strided_slice %149 {offsets = [0, 0], sizes = [2, 64], strides = [1, 1]} : vector<2x256xf32> to vector<2x64xf32>
    %151 = arith.negf %150 : vector<2x64xf32>
    %152 = math.exp %151 : vector<2x64xf32>
    %cst_45 = arith.constant 1.000000e+00 : f32
    %153 = vector.broadcast %cst_45 : f32 to vector<2x64xf32>
    %154 = arith.addf %153, %152 : vector<2x64xf32>
    %155 = arith.divf %153, %154 : vector<2x64xf32>
    %156 = vector.extract_strided_slice %149 {offsets = [0, 64], sizes = [2, 64], strides = [1, 1]} : vector<2x256xf32> to vector<2x64xf32>
    %157 = arith.negf %156 : vector<2x64xf32>
    %158 = math.exp %157 : vector<2x64xf32>
    %cst_46 = arith.constant 1.000000e+00 : f32
    %159 = vector.broadcast %cst_46 : f32 to vector<2x64xf32>
    %160 = arith.addf %159, %158 : vector<2x64xf32>
    %161 = arith.divf %159, %160 : vector<2x64xf32>
    %162 = vector.extract_strided_slice %149 {offsets = [0, 128], sizes = [2, 64], strides = [1, 1]} : vector<2x256xf32> to vector<2x64xf32>
    %163 = math.tanh %162 : vector<2x64xf32>
    %164 = vector.extract_strided_slice %149 {offsets = [0, 192], sizes = [2, 64], strides = [1, 1]} : vector<2x256xf32> to vector<2x64xf32>
    %165 = arith.negf %164 : vector<2x64xf32>
    %166 = math.exp %165 : vector<2x64xf32>
    %cst_47 = arith.constant 1.000000e+00 : f32
    %167 = vector.broadcast %cst_47 : f32 to vector<2x64xf32>
    %168 = arith.addf %167, %166 : vector<2x64xf32>
    %169 = arith.divf %167, %168 : vector<2x64xf32>
    %170 = arith.mulf %161, %138 : vector<2x64xf32>
    %171 = arith.mulf %155, %163 : vector<2x64xf32>
    %172 = arith.addf %170, %171 : vector<2x64xf32>
    %173 = math.tanh %172 : vector<2x64xf32>
    %174 = arith.mulf %169, %173 : vector<2x64xf32>
    %175 = arith.index_cast %c4_i32 : i32 to index
    %c0_48 = arith.constant 0 : index
    %c0_49 = arith.constant 0 : index
    %176 = vector.load %arg5[%175, %c0_48, %c0_49] : memref<8x2x64xf32, #tpu.memory_space<vmem>>, vector<1x2x64xf32>
    %177 = vector.shape_cast %176 : vector<1x2x64xf32> to vector<2x64xf32>
    %178 = vector.shape_cast %174 : vector<2x64xf32> to vector<1x2x64xf32>
    tpu.vector_store %arg5[%175, %c0_48, %c0_49], %178 {strides = array<i32>} : memref<8x2x64xf32, #tpu.memory_space<vmem>>, vector<1x2x64xf32>,
    %c5_i32 = arith.constant 5 : i32
    %c2_i32_50 = arith.constant 2 : i32
    %179 = arith.muli %c5_i32, %c2_i32_50 : i32
    %180 = arith.index_cast %179 : i32 to index
    %c0_51 = arith.constant 0 : index
    %181 = vector.load %arg8[%180, %c0_51] : memref<16x256xf32, #tpu.memory_space<vmem>>, vector<2x256xf32>
    %cst_52 = arith.constant dense<0.000000e+00> : vector<2x256xf32>
    %182 = tpu.matmul %174, %7, %cst_52 {dimension_numbers = #tpu.dot_dimension_numbers<[1], [0], [0], [1], [0, 0, 1, 1], [], []>} : vector<2x64xf32>, vector<64x256xf32>, vector<2x256xf32> -> vector<2x256xf32>
    %183 = arith.addf %181, %182 : vector<2x256xf32>
    %184 = vector.extract_strided_slice %183 {offsets = [0, 0], sizes = [2, 64], strides = [1, 1]} : vector<2x256xf32> to vector<2x64xf32>
    %185 = arith.negf %184 : vector<2x64xf32>
    %186 = math.exp %185 : vector<2x64xf32>
    %cst_53 = arith.constant 1.000000e+00 : f32
    %187 = vector.broadcast %cst_53 : f32 to vector<2x64xf32>
    %188 = arith.addf %187, %186 : vector<2x64xf32>
    %189 = arith.divf %187, %188 : vector<2x64xf32>
    %190 = vector.extract_strided_slice %183 {offsets = [0, 64], sizes = [2, 64], strides = [1, 1]} : vector<2x256xf32> to vector<2x64xf32>
    %191 = arith.negf %190 : vector<2x64xf32>
    %192 = math.exp %191 : vector<2x64xf32>
    %cst_54 = arith.constant 1.000000e+00 : f32
    %193 = vector.broadcast %cst_54 : f32 to vector<2x64xf32>
    %194 = arith.addf %193, %192 : vector<2x64xf32>
    %195 = arith.divf %193, %194 : vector<2x64xf32>
    %196 = vector.extract_strided_slice %183 {offsets = [0, 128], sizes = [2, 64], strides = [1, 1]} : vector<2x256xf32> to vector<2x64xf32>
    %197 = math.tanh %196 : vector<2x64xf32>
    %198 = vector.extract_strided_slice %183 {offsets = [0, 192], sizes = [2, 64], strides = [1, 1]} : vector<2x256xf32> to vector<2x64xf32>
    %199 = arith.negf %198 : vector<2x64xf32>
    %200 = math.exp %199 : vector<2x64xf32>
    %cst_55 = arith.constant 1.000000e+00 : f32
    %201 = vector.broadcast %cst_55 : f32 to vector<2x64xf32>
    %202 = arith.addf %201, %200 : vector<2x64xf32>
    %203 = arith.divf %201, %202 : vector<2x64xf32>
    %204 = arith.mulf %195, %172 : vector<2x64xf32>
    %205 = arith.mulf %189, %197 : vector<2x64xf32>
    %206 = arith.addf %204, %205 : vector<2x64xf32>
    %207 = math.tanh %206 : vector<2x64xf32>
    %208 = arith.mulf %203, %207 : vector<2x64xf32>
    %209 = arith.index_cast %c5_i32 : i32 to index
    %c0_56 = arith.constant 0 : index
    %c0_57 = arith.constant 0 : index
    %210 = vector.load %arg5[%209, %c0_56, %c0_57] : memref<8x2x64xf32, #tpu.memory_space<vmem>>, vector<1x2x64xf32>
    %211 = vector.shape_cast %210 : vector<1x2x64xf32> to vector<2x64xf32>
    %212 = vector.shape_cast %208 : vector<2x64xf32> to vector<1x2x64xf32>
    tpu.vector_store %arg5[%209, %c0_56, %c0_57], %212 {strides = array<i32>} : memref<8x2x64xf32, #tpu.memory_space<vmem>>, vector<1x2x64xf32>,
    %c6_i32 = arith.constant 6 : i32
    %c2_i32_58 = arith.constant 2 : i32
    %213 = arith.muli %c6_i32, %c2_i32_58 : i32
    %214 = arith.index_cast %213 : i32 to index
    %c0_59 = arith.constant 0 : index
    %215 = vector.load %arg8[%214, %c0_59] : memref<16x256xf32, #tpu.memory_space<vmem>>, vector<2x256xf32>
    %cst_60 = arith.constant dense<0.000000e+00> : vector<2x256xf32>
    %216 = tpu.matmul %208, %7, %cst_60 {dimension_numbers = #tpu.dot_dimension_numbers<[1], [0], [0], [1], [0, 0, 1, 1], [], []>} : vector<2x64xf32>, vector<64x256xf32>, vector<2x256xf32> -> vector<2x256xf32>
    %217 = arith.addf %215, %216 : vector<2x256xf32>
    %218 = vector.extract_strided_slice %217 {offsets = [0, 0], sizes = [2, 64], strides = [1, 1]} : vector<2x256xf32> to vector<2x64xf32>
    %219 = arith.negf %218 : vector<2x64xf32>
    %220 = math.exp %219 : vector<2x64xf32>
    %cst_61 = arith.constant 1.000000e+00 : f32
    %221 = vector.broadcast %cst_61 : f32 to vector<2x64xf32>
    %222 = arith.addf %221, %220 : vector<2x64xf32>
    %223 = arith.divf %221, %222 : vector<2x64xf32>
    %224 = vector.extract_strided_slice %217 {offsets = [0, 64], sizes = [2, 64], strides = [1, 1]} : vector<2x256xf32> to vector<2x64xf32>
    %225 = arith.negf %224 : vector<2x64xf32>
    %226 = math.exp %225 : vector<2x64xf32>
    %cst_62 = arith.constant 1.000000e+00 : f32
    %227 = vector.broadcast %cst_62 : f32 to vector<2x64xf32>
    %228 = arith.addf %227, %226 : vector<2x64xf32>
    %229 = arith.divf %227, %228 : vector<2x64xf32>
    %230 = vector.extract_strided_slice %217 {offsets = [0, 128], sizes = [2, 64], strides = [1, 1]} : vector<2x256xf32> to vector<2x64xf32>
    %231 = math.tanh %230 : vector<2x64xf32>
    %232 = vector.extract_strided_slice %217 {offsets = [0, 192], sizes = [2, 64], strides = [1, 1]} : vector<2x256xf32> to vector<2x64xf32>
    %233 = arith.negf %232 : vector<2x64xf32>
    %234 = math.exp %233 : vector<2x64xf32>
    %cst_63 = arith.constant 1.000000e+00 : f32
    %235 = vector.broadcast %cst_63 : f32 to vector<2x64xf32>
    %236 = arith.addf %235, %234 : vector<2x64xf32>
    %237 = arith.divf %235, %236 : vector<2x64xf32>
    %238 = arith.mulf %229, %206 : vector<2x64xf32>
    %239 = arith.mulf %223, %231 : vector<2x64xf32>
    %240 = arith.addf %238, %239 : vector<2x64xf32>
    %241 = math.tanh %240 : vector<2x64xf32>
    %242 = arith.mulf %237, %241 : vector<2x64xf32>
    %243 = arith.index_cast %c6_i32 : i32 to index
    %c0_64 = arith.constant 0 : index
    %c0_65 = arith.constant 0 : index
    %244 = vector.load %arg5[%243, %c0_64, %c0_65] : memref<8x2x64xf32, #tpu.memory_space<vmem>>, vector<1x2x64xf32>
    %245 = vector.shape_cast %244 : vector<1x2x64xf32> to vector<2x64xf32>
    %246 = vector.shape_cast %242 : vector<2x64xf32> to vector<1x2x64xf32>
    tpu.vector_store %arg5[%243, %c0_64, %c0_65], %246 {strides = array<i32>} : memref<8x2x64xf32, #tpu.memory_space<vmem>>, vector<1x2x64xf32>,
    %c7_i32 = arith.constant 7 : i32
    %c2_i32_66 = arith.constant 2 : i32
    %247 = arith.muli %c7_i32, %c2_i32_66 : i32
    %248 = arith.index_cast %247 : i32 to index
    %c0_67 = arith.constant 0 : index
    %249 = vector.load %arg8[%248, %c0_67] : memref<16x256xf32, #tpu.memory_space<vmem>>, vector<2x256xf32>
    %cst_68 = arith.constant dense<0.000000e+00> : vector<2x256xf32>
    %250 = tpu.matmul %242, %7, %cst_68 {dimension_numbers = #tpu.dot_dimension_numbers<[1], [0], [0], [1], [0, 0, 1, 1], [], []>} : vector<2x64xf32>, vector<64x256xf32>, vector<2x256xf32> -> vector<2x256xf32>
    %251 = arith.addf %249, %250 : vector<2x256xf32>
    %252 = vector.extract_strided_slice %251 {offsets = [0, 0], sizes = [2, 64], strides = [1, 1]} : vector<2x256xf32> to vector<2x64xf32>
    %253 = arith.negf %252 : vector<2x64xf32>
    %254 = math.exp %253 : vector<2x64xf32>
    %cst_69 = arith.constant 1.000000e+00 : f32
    %255 = vector.broadcast %cst_69 : f32 to vector<2x64xf32>
    %256 = arith.addf %255, %254 : vector<2x64xf32>
    %257 = arith.divf %255, %256 : vector<2x64xf32>
    %258 = vector.extract_strided_slice %251 {offsets = [0, 64], sizes = [2, 64], strides = [1, 1]} : vector<2x256xf32> to vector<2x64xf32>
    %259 = arith.negf %258 : vector<2x64xf32>
    %260 = math.exp %259 : vector<2x64xf32>
    %cst_70 = arith.constant 1.000000e+00 : f32
    %261 = vector.broadcast %cst_70 : f32 to vector<2x64xf32>
    %262 = arith.addf %261, %260 : vector<2x64xf32>
    %263 = arith.divf %261, %262 : vector<2x64xf32>
    %264 = vector.extract_strided_slice %251 {offsets = [0, 128], sizes = [2, 64], strides = [1, 1]} : vector<2x256xf32> to vector<2x64xf32>
    %265 = math.tanh %264 : vector<2x64xf32>
    %266 = vector.extract_strided_slice %251 {offsets = [0, 192], sizes = [2, 64], strides = [1, 1]} : vector<2x256xf32> to vector<2x64xf32>
    %267 = arith.negf %266 : vector<2x64xf32>
    %268 = math.exp %267 : vector<2x64xf32>
    %cst_71 = arith.constant 1.000000e+00 : f32
    %269 = vector.broadcast %cst_71 : f32 to vector<2x64xf32>
    %270 = arith.addf %269, %268 : vector<2x64xf32>
    %271 = arith.divf %269, %270 : vector<2x64xf32>
    %272 = arith.mulf %263, %240 : vector<2x64xf32>
    %273 = arith.mulf %257, %265 : vector<2x64xf32>
    %274 = arith.addf %272, %273 : vector<2x64xf32>
    %275 = math.tanh %274 : vector<2x64xf32>
    %276 = arith.mulf %271, %275 : vector<2x64xf32>
    %277 = arith.index_cast %c7_i32 : i32 to index
    %c0_72 = arith.constant 0 : index
    %c0_73 = arith.constant 0 : index
    %278 = vector.load %arg5[%277, %c0_72, %c0_73] : memref<8x2x64xf32, #tpu.memory_space<vmem>>, vector<1x2x64xf32>
    %279 = vector.shape_cast %278 : vector<1x2x64xf32> to vector<2x64xf32>
    %280 = vector.shape_cast %276 : vector<2x64xf32> to vector<1x2x64xf32>
    tpu.vector_store %arg5[%277, %c0_72, %c0_73], %280 {strides = array<i32>} : memref<8x2x64xf32, #tpu.memory_space<vmem>>, vector<1x2x64xf32>,
    %c8_i32 = arith.constant 8 : i32
    %c0_74 = arith.constant 0 : index
    %c0_75 = arith.constant 0 : index
    %281 = vector.load %arg6[%c0_74, %c0_75] : memref<2x64xf32, #tpu.memory_space<vmem>>, vector<2x64xf32>
    tpu.vector_store %arg6[%c0_74, %c0_75], %276 {strides = array<i32>} : memref<2x64xf32, #tpu.memory_space<vmem>>, vector<2x64xf32>,
    %c0_76 = arith.constant 0 : index
    %c0_77 = arith.constant 0 : index
    %282 = vector.load %arg7[%c0_76, %c0_77] : memref<2x64xf32, #tpu.memory_space<vmem>>, vector<2x64xf32>
    tpu.vector_store %arg7[%c0_76, %c0_77], %274 {strides = array<i32>} : memref<2x64xf32, #tpu.memory_space<vmem>>, vector<2x64xf32>,
    return
  }
  func.func @transform_0(%arg0: i32) -> (i32, i32) {
    %c0_i32 = arith.constant 0 : i32
    %c0_i32_0 = arith.constant 0 : i32
    %c0_i32_1 = arith.constant 0 : i32
    return %c0_i32, %c0_i32_0 : i32, i32
  }
  func.func @transform_1(%arg0: i32) -> (i32, i32) {
    %c0_i32 = arith.constant 0 : i32
    %c0_i32_0 = arith.constant 0 : i32
    %c0_i32_1 = arith.constant 0 : i32
    return %c0_i32, %c0_i32_0 : i32, i32
  }
  func.func @transform_2(%arg0: i32) -> (i32, i32) {
    %c0_i32 = arith.constant 0 : i32
    %c0_i32_0 = arith.constant 0 : i32
    %c0_i32_1 = arith.constant 0 : i32
    return %c0_i32, %c0_i32_0 : i32, i32
  }
  func.func @transform_3(%arg0: i32) -> (i32, i32) {
    %c0_i32 = arith.constant 0 : i32
    %c0_i32_0 = arith.constant 0 : i32
    %c0_i32_1 = arith.constant 0 : i32
    return %c0_i32, %c0_i32_0 : i32, i32
  }
  func.func @transform_4(%arg0: i32) -> (i32, i32, i32) {
    %c0_i32 = arith.constant 0 : i32
    %c0_i32_0 = arith.constant 0 : i32
    %c0_i32_1 = arith.constant 0 : i32
    %c0_i32_2 = arith.constant 0 : i32
    return %c0_i32, %c0_i32_0, %c0_i32_1 : i32, i32, i32
  }
  func.func @transform_5(%arg0: i32) -> (i32, i32) {
    %c0_i32 = arith.constant 0 : i32
    %c0_i32_0 = arith.constant 0 : i32
    %c0_i32_1 = arith.constant 0 : i32
    return %c0_i32, %c0_i32_0 : i32, i32
  }
  func.func @transform_6(%arg0: i32) -> (i32, i32) {
    %c0_i32 = arith.constant 0 : i32
    %c0_i32_0 = arith.constant 0 : i32
    %c0_i32_1 = arith.constant 0 : i32
    return %c0_i32, %c0_i32_0 : i32, i32
  }
}

module attributes {stable_mosaic.version = 11 : i64} {
  func.func @attn_proj_kernel(%arg0: i32, %arg1: memref<2x8x64xf32, #tpu.memory_space<vmem>>, %arg2: memref<2x10x64xf32, #tpu.memory_space<vmem>>, %arg3: memref<128x32xf32, #tpu.memory_space<vmem>>, %arg4: memref<1x32xf32, #tpu.memory_space<vmem>>, %arg5: memref<32x40xf32, #tpu.memory_space<vmem>>, %arg6: memref<1x40xf32, #tpu.memory_space<vmem>>, %arg7: memref<2x8x40xf32, #tpu.memory_space<vmem>>) attributes {dimension_semantics = [#tpu.dimension_semantics<arbitrary>], iteration_bounds = array<i64: 1>, scalar_prefetch = 0 : i64, scratch_operands = 0 : i64, tpu.core_type = #tpu.core_type<tc>, window_params = [{pipeline_mode = #tpu.pipeline_mode<synchronous>, transform_indices = @transform_0, window_bounds = array<i64: 2, 8, 64>}, {pipeline_mode = #tpu.pipeline_mode<synchronous>, transform_indices = @transform_1, window_bounds = array<i64: 2, 10, 64>}, {pipeline_mode = #tpu.pipeline_mode<synchronous>, transform_indices = @transform_2, window_bounds = array<i64: 128, 32>}, {pipeline_mode = #tpu.pipeline_mode<synchronous>, transform_indices = @transform_3, window_bounds = array<i64: 1, 32>}, {pipeline_mode = #tpu.pipeline_mode<synchronous>, transform_indices = @transform_4, window_bounds = array<i64: 32, 40>}, {pipeline_mode = #tpu.pipeline_mode<synchronous>, transform_indices = @transform_5, window_bounds = array<i64: 1, 40>}, {pipeline_mode = #tpu.pipeline_mode<synchronous>, transform_indices = @transform_6, window_bounds = array<i64: 2, 8, 40>}]} {
    %c0 = arith.constant 0 : index
    %c0_0 = arith.constant 0 : index
    %c0_1 = arith.constant 0 : index
    %0 = vector.load %arg1[%c0, %c0_0, %c0_1] : memref<2x8x64xf32, #tpu.memory_space<vmem>>, vector<2x8x64xf32>
    %c0_2 = arith.constant 0 : index
    %c0_3 = arith.constant 0 : index
    %c0_4 = arith.constant 0 : index
    %1 = vector.load %arg2[%c0_2, %c0_3, %c0_4] : memref<2x10x64xf32, #tpu.memory_space<vmem>>, vector<2x10x64xf32>
    "tpu.trace_start"() <{level = 10 : i32, message = "btd,bsd->bts"}> : () -> ()
    %cst = arith.constant dense<0.000000e+00> : vector<2x8x10xf32>
    %2 = tpu.matmul %0, %1, %cst {dimension_numbers = #tpu.dot_dimension_numbers<[2], [2], [1], [1], [0, 0, 0, 1, 1, 1], [0], [0]>} : vector<2x8x64xf32>, vector<2x10x64xf32>, vector<2x8x10xf32> -> vector<2x8x10xf32>
    "tpu.trace_stop"() : () -> ()
    %cst_5 = arith.constant dense<0xFF800000> : vector<2x8xf32>
    %3 = vector.multi_reduction <maximumf>, %2, %cst_5 [2] : vector<2x8x10xf32> to vector<2x8xf32>
    %4 = vector.shape_cast %3 : vector<2x8xf32> to vector<2x8x1xf32>
    %5 = vector.broadcast %4 : vector<2x8x1xf32> to vector<2x8x10xf32>
    %6 = arith.subf %2, %5 : vector<2x8x10xf32>
    %7 = math.exp %6 : vector<2x8x10xf32>
    %cst_6 = arith.constant dense<0.000000e+00> : vector<2x8xf32>
    %8 = vector.multi_reduction <add>, %7, %cst_6 [2] : vector<2x8x10xf32> to vector<2x8xf32>
    %9 = vector.shape_cast %8 : vector<2x8xf32> to vector<2x8x1xf32>
    %10 = vector.broadcast %9 : vector<2x8x1xf32> to vector<2x8x10xf32>
    %11 = arith.divf %7, %10 : vector<2x8x10xf32>
    "tpu.trace_start"() <{level = 10 : i32, message = "bts,bsd->btd"}> : () -> ()
    %cst_7 = arith.constant dense<0.000000e+00> : vector<2x8x64xf32>
    %12 = tpu.matmul %11, %1, %cst_7 {dimension_numbers = #tpu.dot_dimension_numbers<[2], [1], [1], [2], [0, 0, 0, 1, 1, 2], [0], [0]>} : vector<2x8x10xf32>, vector<2x10x64xf32>, vector<2x8x64xf32> -> vector<2x8x64xf32>
    "tpu.trace_stop"() : () -> ()
    %13 = vector.shape_cast %12 : vector<2x8x64xf32> to vector<16x64xf32>
    %14 = vector.shape_cast %0 : vector<2x8x64xf32> to vector<16x64xf32>
    %c0_8 = arith.constant 0 : index
    %c0_9 = arith.constant 0 : index
    %15 = vector.load %arg3[%c0_8, %c0_9] : memref<128x32xf32, #tpu.memory_space<vmem>>, vector<64x32xf32>
    %cst_10 = arith.constant dense<0.000000e+00> : vector<16x32xf32>
    %16 = tpu.matmul %13, %15, %cst_10 {dimension_numbers = #tpu.dot_dimension_numbers<[1], [0], [0], [1], [0, 0, 1, 1], [], []>} : vector<16x64xf32>, vector<64x32xf32>, vector<16x32xf32> -> vector<16x32xf32>
    %c64 = arith.constant 64 : index
    %c0_11 = arith.constant 0 : index
    %17 = vector.load %arg3[%c64, %c0_11] : memref<128x32xf32, #tpu.memory_space<vmem>>, vector<64x32xf32>
    %cst_12 = arith.constant dense<0.000000e+00> : vector<16x32xf32>
    %18 = tpu.matmul %14, %17, %cst_12 {dimension_numbers = #tpu.dot_dimension_numbers<[1], [0], [0], [1], [0, 0, 1, 1], [], []>} : vector<16x64xf32>, vector<64x32xf32>, vector<16x32xf32> -> vector<16x32xf32>
    %19 = arith.addf %16, %18 : vector<16x32xf32>
    %c0_13 = arith.constant 0 : index
    %c0_14 = arith.constant 0 : index
    %20 = vector.load %arg4[%c0_13, %c0_14] : memref<1x32xf32, #tpu.memory_space<vmem>>, vector<1x32xf32>
    %21 = vector.broadcast %20 : vector<1x32xf32> to vector<16x32xf32>
    %22 = arith.addf %19, %21 : vector<16x32xf32>
    %23 = math.tanh %22 : vector<16x32xf32>
    %c0_15 = arith.constant 0 : index
    %c0_16 = arith.constant 0 : index
    %24 = vector.load %arg5[%c0_15, %c0_16] : memref<32x40xf32, #tpu.memory_space<vmem>>, vector<32x40xf32>
    %cst_17 = arith.constant dense<0.000000e+00> : vector<16x40xf32>
    %25 = tpu.matmul %23, %24, %cst_17 {dimension_numbers = #tpu.dot_dimension_numbers<[1], [0], [0], [1], [0, 0, 1, 1], [], []>} : vector<16x32xf32>, vector<32x40xf32>, vector<16x40xf32> -> vector<16x40xf32>
    %c0_18 = arith.constant 0 : index
    %c0_19 = arith.constant 0 : index
    %26 = vector.load %arg6[%c0_18, %c0_19] : memref<1x40xf32, #tpu.memory_space<vmem>>, vector<1x40xf32>
    %27 = vector.broadcast %26 : vector<1x40xf32> to vector<16x40xf32>
    %28 = arith.addf %25, %27 : vector<16x40xf32>
    %cst_20 = arith.constant dense<0xFF800000> : vector<16xf32>
    %29 = vector.multi_reduction <maximumf>, %28, %cst_20 [1] : vector<16x40xf32> to vector<16xf32>
    %30 = vector.shape_cast %29 : vector<16xf32> to vector<16x1xf32>
    %31 = vector.broadcast %30 : vector<16x1xf32> to vector<16x40xf32>
    %32 = arith.subf %28, %31 : vector<16x40xf32>
    %33 = math.exp %32 : vector<16x40xf32>
    %cst_21 = arith.constant dense<0.000000e+00> : vector<16xf32>
    %34 = vector.multi_reduction <add>, %33, %cst_21 [1] : vector<16x40xf32> to vector<16xf32>
    %35 = vector.shape_cast %34 : vector<16xf32> to vector<16x1xf32>
    %36 = math.log %35 : vector<16x1xf32>
    %37 = vector.broadcast %36 : vector<16x1xf32> to vector<16x40xf32>
    %38 = arith.subf %32, %37 : vector<16x40xf32>
    %39 = vector.shape_cast %38 : vector<16x40xf32> to vector<2x8x40xf32>
    %c0_22 = arith.constant 0 : index
    %c0_23 = arith.constant 0 : index
    %c0_24 = arith.constant 0 : index
    %40 = vector.load %arg7[%c0_22, %c0_23, %c0_24] : memref<2x8x40xf32, #tpu.memory_space<vmem>>, vector<2x8x40xf32>
    tpu.vector_store %arg7[%c0_22, %c0_23, %c0_24], %39 {strides = array<i32>} : memref<2x8x40xf32, #tpu.memory_space<vmem>>, vector<2x8x40xf32>,
    return
  }
  func.func @transform_0(%arg0: i32) -> (i32, i32, i32) {
    %c0_i32 = arith.constant 0 : i32
    %c0_i32_0 = arith.constant 0 : i32
    %c0_i32_1 = arith.constant 0 : i32
    %c0_i32_2 = arith.constant 0 : i32
    return %c0_i32, %c0_i32_0, %c0_i32_1 : i32, i32, i32
  }
  func.func @transform_1(%arg0: i32) -> (i32, i32, i32) {
    %c0_i32 = arith.constant 0 : i32
    %c0_i32_0 = arith.constant 0 : i32
    %c0_i32_1 = arith.constant 0 : i32
    %c0_i32_2 = arith.constant 0 : i32
    return %c0_i32, %c0_i32_0, %c0_i32_1 : i32, i32, i32
  }
  func.func @transform_2(%arg0: i32) -> (i32, i32) {
    %c0_i32 = arith.constant 0 : i32
    %c0_i32_0 = arith.constant 0 : i32
    %c0_i32_1 = arith.constant 0 : i32
    return %c0_i32, %c0_i32_0 : i32, i32
  }
  func.func @transform_3(%arg0: i32) -> (i32, i32) {
    %c0_i32 = arith.constant 0 : i32
    %c0_i32_0 = arith.constant 0 : i32
    %c0_i32_1 = arith.constant 0 : i32
    return %c0_i32, %c0_i32_0 : i32, i32
  }
  func.func @transform_4(%arg0: i32) -> (i32, i32) {
    %c0_i32 = arith.constant 0 : i32
    %c0_i32_0 = arith.constant 0 : i32
    %c0_i32_1 = arith.constant 0 : i32
    return %c0_i32, %c0_i32_0 : i32, i32
  }
  func.func @transform_5(%arg0: i32) -> (i32, i32) {
    %c0_i32 = arith.constant 0 : i32
    %c0_i32_0 = arith.constant 0 : i32
    %c0_i32_1 = arith.constant 0 : i32
    return %c0_i32, %c0_i32_0 : i32, i32
  }
  func.func @transform_6(%arg0: i32) -> (i32, i32, i32) {
    %c0_i32 = arith.constant 0 : i32
    %c0_i32_0 = arith.constant 0 : i32
    %c0_i32_1 = arith.constant 0 : i32
    %c0_i32_2 = arith.constant 0 : i32
    return %c0_i32, %c0_i32_0, %c0_i32_1 : i32, i32, i32
  }
}

module attributes {stable_mosaic.version = 11 : i64} {
  func.func @enc_bilstm_kernel(%arg0: i32, %arg1: memref<20x32xf32, #tpu.memory_space<vmem>>, %arg2: memref<32x256xf32, #tpu.memory_space<vmem>>, %arg3: memref<1x256xf32, #tpu.memory_space<vmem>>, %arg4: memref<32x128xf32, #tpu.memory_space<vmem>>, %arg5: memref<32x128xf32, #tpu.memory_space<vmem>>, %arg6: memref<10x2x64xf32, #tpu.memory_space<vmem>>, %arg7: memref<20x256xf32, #tpu.memory_space<vmem>>) attributes {dimension_semantics = [#tpu.dimension_semantics<arbitrary>], iteration_bounds = array<i64: 1>, scalar_prefetch = 0 : i64, scratch_operands = 1 : i64, tpu.core_type = #tpu.core_type<tc>, window_params = [{pipeline_mode = #tpu.pipeline_mode<synchronous>, transform_indices = @transform_0, window_bounds = array<i64: 20, 32>}, {pipeline_mode = #tpu.pipeline_mode<synchronous>, transform_indices = @transform_1, window_bounds = array<i64: 32, 256>}, {pipeline_mode = #tpu.pipeline_mode<synchronous>, transform_indices = @transform_2, window_bounds = array<i64: 1, 256>}, {pipeline_mode = #tpu.pipeline_mode<synchronous>, transform_indices = @transform_3, window_bounds = array<i64: 32, 128>}, {pipeline_mode = #tpu.pipeline_mode<synchronous>, transform_indices = @transform_4, window_bounds = array<i64: 32, 128>}, {pipeline_mode = #tpu.pipeline_mode<synchronous>, transform_indices = @transform_5, window_bounds = array<i64: 10, 2, 64>}]} {
    %c0 = arith.constant 0 : index
    %c0_0 = arith.constant 0 : index
    %0 = vector.load %arg1[%c0, %c0_0] : memref<20x32xf32, #tpu.memory_space<vmem>>, vector<20x32xf32>
    %c0_1 = arith.constant 0 : index
    %c0_2 = arith.constant 0 : index
    %1 = vector.load %arg2[%c0_1, %c0_2] : memref<32x256xf32, #tpu.memory_space<vmem>>, vector<32x256xf32>
    %cst = arith.constant dense<0.000000e+00> : vector<20x256xf32>
    %2 = tpu.matmul %0, %1, %cst {dimension_numbers = #tpu.dot_dimension_numbers<[1], [0], [0], [1], [0, 0, 1, 1], [], []>} : vector<20x32xf32>, vector<32x256xf32>, vector<20x256xf32> -> vector<20x256xf32>
    %c0_3 = arith.constant 0 : index
    %c0_4 = arith.constant 0 : index
    %3 = vector.load %arg3[%c0_3, %c0_4] : memref<1x256xf32, #tpu.memory_space<vmem>>, vector<1x256xf32>
    %4 = vector.broadcast %3 : vector<1x256xf32> to vector<20x256xf32>
    %5 = arith.addf %2, %4 : vector<20x256xf32>
    %c0_5 = arith.constant 0 : index
    %c0_6 = arith.constant 0 : index
    %6 = vector.load %arg7[%c0_5, %c0_6] : memref<20x256xf32, #tpu.memory_space<vmem>>, vector<20x256xf32>
    tpu.vector_store %arg7[%c0_5, %c0_6], %5 {strides = array<i32>} : memref<20x256xf32, #tpu.memory_space<vmem>>, vector<20x256xf32>,
    %c0_7 = arith.constant 0 : index
    %c0_8 = arith.constant 0 : index
    %7 = vector.load %arg4[%c0_7, %c0_8] : memref<32x128xf32, #tpu.memory_space<vmem>>, vector<32x128xf32>
    %c0_9 = arith.constant 0 : index
    %c0_10 = arith.constant 0 : index
    %8 = vector.load %arg5[%c0_9, %c0_10] : memref<32x128xf32, #tpu.memory_space<vmem>>, vector<32x128xf32>
    %cst_11 = arith.constant 0.000000e+00 : f32
    %9 = vector.broadcast %cst_11 : f32 to vector<2x32xf32>
    %c0_i32 = arith.constant 0 : i32
    %c9_i32 = arith.constant 9 : i32
    %10 = arith.subi %c9_i32, %c0_i32 : i32
    %c2_i32 = arith.constant 2 : i32
    %11 = arith.muli %c0_i32, %c2_i32 : i32
    %12 = arith.index_cast %11 : i32 to index
    %c0_12 = arith.constant 0 : index
    %13 = vector.load %arg7[%12, %c0_12] : memref<20x256xf32, #tpu.memory_space<vmem>>, vector<2x256xf32>
    %c2_i32_13 = arith.constant 2 : i32
    %14 = arith.muli %10, %c2_i32_13 : i32
    %15 = arith.index_cast %14 : i32 to index
    %c0_14 = arith.constant 0 : index
    %16 = vector.load %arg7[%15, %c0_14] : memref<20x256xf32, #tpu.memory_space<vmem>>, vector<2x256xf32>
    %17 = vector.extract_strided_slice %13 {offsets = [0, 0], sizes = [2, 128], strides = [1, 1]} : vector<2x256xf32> to vector<2x128xf32>
    %cst_15 = arith.constant dense<0.000000e+00> : vector<2x128xf32>
    %18 = tpu.matmul %9, %7, %cst_15 {dimension_numbers = #tpu.dot_dimension_numbers<[1], [0], [0], [1], [0, 0, 1, 1], [], []>} : vector<2x32xf32>, vector<32x128xf32>, vector<2x128xf32> -> vector<2x128xf32>
    %19 = arith.addf %17, %18 : vector<2x128xf32>
    %20 = vector.extract_strided_slice %16 {offsets = [0, 128], sizes = [2, 128], strides = [1, 1]} : vector<2x256xf32> to vector<2x128xf32>
    %cst_16 = arith.constant dense<0.000000e+00> : vector<2x128xf32>
    %21 = tpu.matmul %9, %8, %cst_16 {dimension_numbers = #tpu.dot_dimension_numbers<[1], [0], [0], [1], [0, 0, 1, 1], [], []>} : vector<2x32xf32>, vector<32x128xf32>, vector<2x128xf32> -> vector<2x128xf32>
    %22 = arith.addf %20, %21 : vector<2x128xf32>
    %23 = vector.extract_strided_slice %19 {offsets = [0, 0], sizes = [2, 32], strides = [1, 1]} : vector<2x128xf32> to vector<2x32xf32>
    %24 = arith.negf %23 : vector<2x32xf32>
    %25 = math.exp %24 : vector<2x32xf32>
    %cst_17 = arith.constant 1.000000e+00 : f32
    %26 = vector.broadcast %cst_17 : f32 to vector<2x32xf32>
    %27 = arith.addf %26, %25 : vector<2x32xf32>
    %28 = arith.divf %26, %27 : vector<2x32xf32>
    %29 = vector.extract_strided_slice %19 {offsets = [0, 32], sizes = [2, 32], strides = [1, 1]} : vector<2x128xf32> to vector<2x32xf32>
    %30 = arith.negf %29 : vector<2x32xf32>
    %31 = math.exp %30 : vector<2x32xf32>
    %cst_18 = arith.constant 1.000000e+00 : f32
    %32 = vector.broadcast %cst_18 : f32 to vector<2x32xf32>
    %33 = arith.addf %32, %31 : vector<2x32xf32>
    %34 = arith.divf %32, %33 : vector<2x32xf32>
    %35 = vector.extract_strided_slice %19 {offsets = [0, 64], sizes = [2, 32], strides = [1, 1]} : vector<2x128xf32> to vector<2x32xf32>
    %36 = math.tanh %35 : vector<2x32xf32>
    %37 = vector.extract_strided_slice %19 {offsets = [0, 96], sizes = [2, 32], strides = [1, 1]} : vector<2x128xf32> to vector<2x32xf32>
    %38 = arith.negf %37 : vector<2x32xf32>
    %39 = math.exp %38 : vector<2x32xf32>
    %cst_19 = arith.constant 1.000000e+00 : f32
    %40 = vector.broadcast %cst_19 : f32 to vector<2x32xf32>
    %41 = arith.addf %40, %39 : vector<2x32xf32>
    %42 = arith.divf %40, %41 : vector<2x32xf32>
    %43 = arith.mulf %34, %9 : vector<2x32xf32>
    %44 = arith.mulf %28, %36 : vector<2x32xf32>
    %45 = arith.addf %43, %44 : vector<2x32xf32>
    %46 = math.tanh %45 : vector<2x32xf32>
    %47 = arith.mulf %42, %46 : vector<2x32xf32>
    %48 = vector.extract_strided_slice %22 {offsets = [0, 0], sizes = [2, 32], strides = [1, 1]} : vector<2x128xf32> to vector<2x32xf32>
    %49 = arith.negf %48 : vector<2x32xf32>
    %50 = math.exp %49 : vector<2x32xf32>
    %cst_20 = arith.constant 1.000000e+00 : f32
    %51 = vector.broadcast %cst_20 : f32 to vector<2x32xf32>
    %52 = arith.addf %51, %50 : vector<2x32xf32>
    %53 = arith.divf %51, %52 : vector<2x32xf32>
    %54 = vector.extract_strided_slice %22 {offsets = [0, 32], sizes = [2, 32], strides = [1, 1]} : vector<2x128xf32> to vector<2x32xf32>
    %55 = arith.negf %54 : vector<2x32xf32>
    %56 = math.exp %55 : vector<2x32xf32>
    %cst_21 = arith.constant 1.000000e+00 : f32
    %57 = vector.broadcast %cst_21 : f32 to vector<2x32xf32>
    %58 = arith.addf %57, %56 : vector<2x32xf32>
    %59 = arith.divf %57, %58 : vector<2x32xf32>
    %60 = vector.extract_strided_slice %22 {offsets = [0, 64], sizes = [2, 32], strides = [1, 1]} : vector<2x128xf32> to vector<2x32xf32>
    %61 = math.tanh %60 : vector<2x32xf32>
    %62 = vector.extract_strided_slice %22 {offsets = [0, 96], sizes = [2, 32], strides = [1, 1]} : vector<2x128xf32> to vector<2x32xf32>
    %63 = arith.negf %62 : vector<2x32xf32>
    %64 = math.exp %63 : vector<2x32xf32>
    %cst_22 = arith.constant 1.000000e+00 : f32
    %65 = vector.broadcast %cst_22 : f32 to vector<2x32xf32>
    %66 = arith.addf %65, %64 : vector<2x32xf32>
    %67 = arith.divf %65, %66 : vector<2x32xf32>
    %68 = arith.mulf %59, %9 : vector<2x32xf32>
    %69 = arith.mulf %53, %61 : vector<2x32xf32>
    %70 = arith.addf %68, %69 : vector<2x32xf32>
    %71 = math.tanh %70 : vector<2x32xf32>
    %72 = arith.mulf %67, %71 : vector<2x32xf32>
    %73 = arith.index_cast %c0_i32 : i32 to index
    %c0_23 = arith.constant 0 : index
    %c0_24 = arith.constant 0 : index
    %74 = vector.load %arg6[%73, %c0_23, %c0_24] : memref<10x2x64xf32, #tpu.memory_space<vmem>>, vector<1x2x32xf32>
    %75 = vector.shape_cast %74 : vector<1x2x32xf32> to vector<2x32xf32>
    %76 = vector.shape_cast %47 : vector<2x32xf32> to vector<1x2x32xf32>
    tpu.vector_store %arg6[%73, %c0_23, %c0_24], %76 {strides = array<i32>} : memref<10x2x64xf32, #tpu.memory_space<vmem>>, vector<1x2x32xf32>,
    %77 = arith.index_cast %10 : i32 to index
    %c0_25 = arith.constant 0 : index
    %c32 = arith.constant 32 : index
    %78 = vector.load %arg6[%77, %c0_25, %c32] : memref<10x2x64xf32, #tpu.memory_space<vmem>>, vector<1x2x32xf32>
    %79 = vector.shape_cast %78 : vector<1x2x32xf32> to vector<2x32xf32>
    %80 = vector.shape_cast %72 : vector<2x32xf32> to vector<1x2x32xf32>
    tpu.vector_store %arg6[%77, %c0_25, %c32], %80 {strides = array<i32>} : memref<10x2x64xf32, #tpu.memory_space<vmem>>, vector<1x2x32xf32>,
    %c1_i32 = arith.constant 1 : i32
    %c9_i32_26 = arith.constant 9 : i32
    %81 = arith.subi %c9_i32_26, %c1_i32 : i32
    %c2_i32_27 = arith.constant 2 : i32
    %82 = arith.muli %c1_i32, %c2_i32_27 : i32
    %83 = arith.index_cast %82 : i32 to index
    %c0_28 = arith.constant 0 : index
    %84 = vector.load %arg7[%83, %c0_28] : memref<20x256xf32, #tpu.memory_space<vmem>>, vector<2x256xf32>
    %c2_i32_29 = arith.constant 2 : i32
    %85 = arith.muli %81, %c2_i32_29 : i32
    %86 = arith.index_cast %85 : i32 to index
    %c0_30 = arith.constant 0 : index
    %87 = vector.load %arg7[%86, %c0_30] : memref<20x256xf32, #tpu.memory_space<vmem>>, vector<2x256xf32>
    %88 = vector.extract_strided_slice %84 {offsets = [0, 0], sizes = [2, 128], strides = [1, 1]} : vector<2x256xf32> to vector<2x128xf32>
    %cst_31 = arith.constant dense<0.000000e+00> : vector<2x128xf32>
    %89 = tpu.matmul %47, %7, %cst_31 {dimension_numbers = #tpu.dot_dimension_numbers<[1], [0], [0], [1], [0, 0, 1, 1], [], []>} : vector<2x32xf32>, vector<32x128xf32>, vector<2x128xf32> -> vector<2x128xf32>
    %90 = arith.addf %88, %89 : vector<2x128xf32>
    %91 = vector.extract_strided_slice %87 {offsets = [0, 128], sizes = [2, 128], strides = [1, 1]} : vector<2x256xf32> to vector<2x128xf32>
    %cst_32 = arith.constant dense<0.000000e+00> : vector<2x128xf32>
    %92 = tpu.matmul %72, %8, %cst_32 {dimension_numbers = #tpu.dot_dimension_numbers<[1], [0], [0], [1], [0, 0, 1, 1], [], []>} : vector<2x32xf32>, vector<32x128xf32>, vector<2x128xf32> -> vector<2x128xf32>
    %93 = arith.addf %91, %92 : vector<2x128xf32>
    %94 = vector.extract_strided_slice %90 {offsets = [0, 0], sizes = [2, 32], strides = [1, 1]} : vector<2x128xf32> to vector<2x32xf32>
    %95 = arith.negf %94 : vector<2x32xf32>
    %96 = math.exp %95 : vector<2x32xf32>
    %cst_33 = arith.constant 1.000000e+00 : f32
    %97 = vector.broadcast %cst_33 : f32 to vector<2x32xf32>
    %98 = arith.addf %97, %96 : vector<2x32xf32>
    %99 = arith.divf %97, %98 : vector<2x32xf32>
    %100 = vector.extract_strided_slice %90 {offsets = [0, 32], sizes = [2, 32], strides = [1, 1]} : vector<2x128xf32> to vector<2x32xf32>
    %101 = arith.negf %100 : vector<2x32xf32>
    %102 = math.exp %101 : vector<2x32xf32>
    %cst_34 = arith.constant 1.000000e+00 : f32
    %103 = vector.broadcast %cst_34 : f32 to vector<2x32xf32>
    %104 = arith.addf %103, %102 : vector<2x32xf32>
    %105 = arith.divf %103, %104 : vector<2x32xf32>
    %106 = vector.extract_strided_slice %90 {offsets = [0, 64], sizes = [2, 32], strides = [1, 1]} : vector<2x128xf32> to vector<2x32xf32>
    %107 = math.tanh %106 : vector<2x32xf32>
    %108 = vector.extract_strided_slice %90 {offsets = [0, 96], sizes = [2, 32], strides = [1, 1]} : vector<2x128xf32> to vector<2x32xf32>
    %109 = arith.negf %108 : vector<2x32xf32>
    %110 = math.exp %109 : vector<2x32xf32>
    %cst_35 = arith.constant 1.000000e+00 : f32
    %111 = vector.broadcast %cst_35 : f32 to vector<2x32xf32>
    %112 = arith.addf %111, %110 : vector<2x32xf32>
    %113 = arith.divf %111, %112 : vector<2x32xf32>
    %114 = arith.mulf %105, %45 : vector<2x32xf32>
    %115 = arith.mulf %99, %107 : vector<2x32xf32>
    %116 = arith.addf %114, %115 : vector<2x32xf32>
    %117 = math.tanh %116 : vector<2x32xf32>
    %118 = arith.mulf %113, %117 : vector<2x32xf32>
    %119 = vector.extract_strided_slice %93 {offsets = [0, 0], sizes = [2, 32], strides = [1, 1]} : vector<2x128xf32> to vector<2x32xf32>
    %120 = arith.negf %119 : vector<2x32xf32>
    %121 = math.exp %120 : vector<2x32xf32>
    %cst_36 = arith.constant 1.000000e+00 : f32
    %122 = vector.broadcast %cst_36 : f32 to vector<2x32xf32>
    %123 = arith.addf %122, %121 : vector<2x32xf32>
    %124 = arith.divf %122, %123 : vector<2x32xf32>
    %125 = vector.extract_strided_slice %93 {offsets = [0, 32], sizes = [2, 32], strides = [1, 1]} : vector<2x128xf32> to vector<2x32xf32>
    %126 = arith.negf %125 : vector<2x32xf32>
    %127 = math.exp %126 : vector<2x32xf32>
    %cst_37 = arith.constant 1.000000e+00 : f32
    %128 = vector.broadcast %cst_37 : f32 to vector<2x32xf32>
    %129 = arith.addf %128, %127 : vector<2x32xf32>
    %130 = arith.divf %128, %129 : vector<2x32xf32>
    %131 = vector.extract_strided_slice %93 {offsets = [0, 64], sizes = [2, 32], strides = [1, 1]} : vector<2x128xf32> to vector<2x32xf32>
    %132 = math.tanh %131 : vector<2x32xf32>
    %133 = vector.extract_strided_slice %93 {offsets = [0, 96], sizes = [2, 32], strides = [1, 1]} : vector<2x128xf32> to vector<2x32xf32>
    %134 = arith.negf %133 : vector<2x32xf32>
    %135 = math.exp %134 : vector<2x32xf32>
    %cst_38 = arith.constant 1.000000e+00 : f32
    %136 = vector.broadcast %cst_38 : f32 to vector<2x32xf32>
    %137 = arith.addf %136, %135 : vector<2x32xf32>
    %138 = arith.divf %136, %137 : vector<2x32xf32>
    %139 = arith.mulf %130, %70 : vector<2x32xf32>
    %140 = arith.mulf %124, %132 : vector<2x32xf32>
    %141 = arith.addf %139, %140 : vector<2x32xf32>
    %142 = math.tanh %141 : vector<2x32xf32>
    %143 = arith.mulf %138, %142 : vector<2x32xf32>
    %144 = arith.index_cast %c1_i32 : i32 to index
    %c0_39 = arith.constant 0 : index
    %c0_40 = arith.constant 0 : index
    %145 = vector.load %arg6[%144, %c0_39, %c0_40] : memref<10x2x64xf32, #tpu.memory_space<vmem>>, vector<1x2x32xf32>
    %146 = vector.shape_cast %145 : vector<1x2x32xf32> to vector<2x32xf32>
    %147 = vector.shape_cast %118 : vector<2x32xf32> to vector<1x2x32xf32>
    tpu.vector_store %arg6[%144, %c0_39, %c0_40], %147 {strides = array<i32>} : memref<10x2x64xf32, #tpu.memory_space<vmem>>, vector<1x2x32xf32>,
    %148 = arith.index_cast %81 : i32 to index
    %c0_41 = arith.constant 0 : index
    %c32_42 = arith.constant 32 : index
    %149 = vector.load %arg6[%148, %c0_41, %c32_42] : memref<10x2x64xf32, #tpu.memory_space<vmem>>, vector<1x2x32xf32>
    %150 = vector.shape_cast %149 : vector<1x2x32xf32> to vector<2x32xf32>
    %151 = vector.shape_cast %143 : vector<2x32xf32> to vector<1x2x32xf32>
    tpu.vector_store %arg6[%148, %c0_41, %c32_42], %151 {strides = array<i32>} : memref<10x2x64xf32, #tpu.memory_space<vmem>>, vector<1x2x32xf32>,
    %c2_i32_43 = arith.constant 2 : i32
    %c9_i32_44 = arith.constant 9 : i32
    %152 = arith.subi %c9_i32_44, %c2_i32_43 : i32
    %c2_i32_45 = arith.constant 2 : i32
    %153 = arith.muli %c2_i32_43, %c2_i32_45 : i32
    %154 = arith.index_cast %153 : i32 to index
    %c0_46 = arith.constant 0 : index
    %155 = vector.load %arg7[%154, %c0_46] : memref<20x256xf32, #tpu.memory_space<vmem>>, vector<2x256xf32>
    %c2_i32_47 = arith.constant 2 : i32
    %156 = arith.muli %152, %c2_i32_47 : i32
    %157 = arith.index_cast %156 : i32 to index
    %c0_48 = arith.constant 0 : index
    %158 = vector.load %arg7[%157, %c0_48] : memref<20x256xf32, #tpu.memory_space<vmem>>, vector<2x256xf32>
    %159 = vector.extract_strided_slice %155 {offsets = [0, 0], sizes = [2, 128], strides = [1, 1]} : vector<2x256xf32> to vector<2x128xf32>
    %cst_49 = arith.constant dense<0.000000e+00> : vector<2x128xf32>
    %160 = tpu.matmul %118, %7, %cst_49 {dimension_numbers = #tpu.dot_dimension_numbers<[1], [0], [0], [1], [0, 0, 1, 1], [], []>} : vector<2x32xf32>, vector<32x128xf32>, vector<2x128xf32> -> vector<2x128xf32>
    %161 = arith.addf %159, %160 : vector<2x128xf32>
    %162 = vector.extract_strided_slice %158 {offsets = [0, 128], sizes = [2, 128], strides = [1, 1]} : vector<2x256xf32> to vector<2x128xf32>
    %cst_50 = arith.constant dense<0.000000e+00> : vector<2x128xf32>
    %163 = tpu.matmul %143, %8, %cst_50 {dimension_numbers = #tpu.dot_dimension_numbers<[1], [0], [0], [1], [0, 0, 1, 1], [], []>} : vector<2x32xf32>, vector<32x128xf32>, vector<2x128xf32> -> vector<2x128xf32>
    %164 = arith.addf %162, %163 : vector<2x128xf32>
    %165 = vector.extract_strided_slice %161 {offsets = [0, 0], sizes = [2, 32], strides = [1, 1]} : vector<2x128xf32> to vector<2x32xf32>
    %166 = arith.negf %165 : vector<2x32xf32>
    %167 = math.exp %166 : vector<2x32xf32>
    %cst_51 = arith.constant 1.000000e+00 : f32
    %168 = vector.broadcast %cst_51 : f32 to vector<2x32xf32>
    %169 = arith.addf %168, %167 : vector<2x32xf32>
    %170 = arith.divf %168, %169 : vector<2x32xf32>
    %171 = vector.extract_strided_slice %161 {offsets = [0, 32], sizes = [2, 32], strides = [1, 1]} : vector<2x128xf32> to vector<2x32xf32>
    %172 = arith.negf %171 : vector<2x32xf32>
    %173 = math.exp %172 : vector<2x32xf32>
    %cst_52 = arith.constant 1.000000e+00 : f32
    %174 = vector.broadcast %cst_52 : f32 to vector<2x32xf32>
    %175 = arith.addf %174, %173 : vector<2x32xf32>
    %176 = arith.divf %174, %175 : vector<2x32xf32>
    %177 = vector.extract_strided_slice %161 {offsets = [0, 64], sizes = [2, 32], strides = [1, 1]} : vector<2x128xf32> to vector<2x32xf32>
    %178 = math.tanh %177 : vector<2x32xf32>
    %179 = vector.extract_strided_slice %161 {offsets = [0, 96], sizes = [2, 32], strides = [1, 1]} : vector<2x128xf32> to vector<2x32xf32>
    %180 = arith.negf %179 : vector<2x32xf32>
    %181 = math.exp %180 : vector<2x32xf32>
    %cst_53 = arith.constant 1.000000e+00 : f32
    %182 = vector.broadcast %cst_53 : f32 to vector<2x32xf32>
    %183 = arith.addf %182, %181 : vector<2x32xf32>
    %184 = arith.divf %182, %183 : vector<2x32xf32>
    %185 = arith.mulf %176, %116 : vector<2x32xf32>
    %186 = arith.mulf %170, %178 : vector<2x32xf32>
    %187 = arith.addf %185, %186 : vector<2x32xf32>
    %188 = math.tanh %187 : vector<2x32xf32>
    %189 = arith.mulf %184, %188 : vector<2x32xf32>
    %190 = vector.extract_strided_slice %164 {offsets = [0, 0], sizes = [2, 32], strides = [1, 1]} : vector<2x128xf32> to vector<2x32xf32>
    %191 = arith.negf %190 : vector<2x32xf32>
    %192 = math.exp %191 : vector<2x32xf32>
    %cst_54 = arith.constant 1.000000e+00 : f32
    %193 = vector.broadcast %cst_54 : f32 to vector<2x32xf32>
    %194 = arith.addf %193, %192 : vector<2x32xf32>
    %195 = arith.divf %193, %194 : vector<2x32xf32>
    %196 = vector.extract_strided_slice %164 {offsets = [0, 32], sizes = [2, 32], strides = [1, 1]} : vector<2x128xf32> to vector<2x32xf32>
    %197 = arith.negf %196 : vector<2x32xf32>
    %198 = math.exp %197 : vector<2x32xf32>
    %cst_55 = arith.constant 1.000000e+00 : f32
    %199 = vector.broadcast %cst_55 : f32 to vector<2x32xf32>
    %200 = arith.addf %199, %198 : vector<2x32xf32>
    %201 = arith.divf %199, %200 : vector<2x32xf32>
    %202 = vector.extract_strided_slice %164 {offsets = [0, 64], sizes = [2, 32], strides = [1, 1]} : vector<2x128xf32> to vector<2x32xf32>
    %203 = math.tanh %202 : vector<2x32xf32>
    %204 = vector.extract_strided_slice %164 {offsets = [0, 96], sizes = [2, 32], strides = [1, 1]} : vector<2x128xf32> to vector<2x32xf32>
    %205 = arith.negf %204 : vector<2x32xf32>
    %206 = math.exp %205 : vector<2x32xf32>
    %cst_56 = arith.constant 1.000000e+00 : f32
    %207 = vector.broadcast %cst_56 : f32 to vector<2x32xf32>
    %208 = arith.addf %207, %206 : vector<2x32xf32>
    %209 = arith.divf %207, %208 : vector<2x32xf32>
    %210 = arith.mulf %201, %141 : vector<2x32xf32>
    %211 = arith.mulf %195, %203 : vector<2x32xf32>
    %212 = arith.addf %210, %211 : vector<2x32xf32>
    %213 = math.tanh %212 : vector<2x32xf32>
    %214 = arith.mulf %209, %213 : vector<2x32xf32>
    %215 = arith.index_cast %c2_i32_43 : i32 to index
    %c0_57 = arith.constant 0 : index
    %c0_58 = arith.constant 0 : index
    %216 = vector.load %arg6[%215, %c0_57, %c0_58] : memref<10x2x64xf32, #tpu.memory_space<vmem>>, vector<1x2x32xf32>
    %217 = vector.shape_cast %216 : vector<1x2x32xf32> to vector<2x32xf32>
    %218 = vector.shape_cast %189 : vector<2x32xf32> to vector<1x2x32xf32>
    tpu.vector_store %arg6[%215, %c0_57, %c0_58], %218 {strides = array<i32>} : memref<10x2x64xf32, #tpu.memory_space<vmem>>, vector<1x2x32xf32>,
    %219 = arith.index_cast %152 : i32 to index
    %c0_59 = arith.constant 0 : index
    %c32_60 = arith.constant 32 : index
    %220 = vector.load %arg6[%219, %c0_59, %c32_60] : memref<10x2x64xf32, #tpu.memory_space<vmem>>, vector<1x2x32xf32>
    %221 = vector.shape_cast %220 : vector<1x2x32xf32> to vector<2x32xf32>
    %222 = vector.shape_cast %214 : vector<2x32xf32> to vector<1x2x32xf32>
    tpu.vector_store %arg6[%219, %c0_59, %c32_60], %222 {strides = array<i32>} : memref<10x2x64xf32, #tpu.memory_space<vmem>>, vector<1x2x32xf32>,
    %c3_i32 = arith.constant 3 : i32
    %c9_i32_61 = arith.constant 9 : i32
    %223 = arith.subi %c9_i32_61, %c3_i32 : i32
    %c2_i32_62 = arith.constant 2 : i32
    %224 = arith.muli %c3_i32, %c2_i32_62 : i32
    %225 = arith.index_cast %224 : i32 to index
    %c0_63 = arith.constant 0 : index
    %226 = vector.load %arg7[%225, %c0_63] : memref<20x256xf32, #tpu.memory_space<vmem>>, vector<2x256xf32>
    %c2_i32_64 = arith.constant 2 : i32
    %227 = arith.muli %223, %c2_i32_64 : i32
    %228 = arith.index_cast %227 : i32 to index
    %c0_65 = arith.constant 0 : index
    %229 = vector.load %arg7[%228, %c0_65] : memref<20x256xf32, #tpu.memory_space<vmem>>, vector<2x256xf32>
    %230 = vector.extract_strided_slice %226 {offsets = [0, 0], sizes = [2, 128], strides = [1, 1]} : vector<2x256xf32> to vector<2x128xf32>
    %cst_66 = arith.constant dense<0.000000e+00> : vector<2x128xf32>
    %231 = tpu.matmul %189, %7, %cst_66 {dimension_numbers = #tpu.dot_dimension_numbers<[1], [0], [0], [1], [0, 0, 1, 1], [], []>} : vector<2x32xf32>, vector<32x128xf32>, vector<2x128xf32> -> vector<2x128xf32>
    %232 = arith.addf %230, %231 : vector<2x128xf32>
    %233 = vector.extract_strided_slice %229 {offsets = [0, 128], sizes = [2, 128], strides = [1, 1]} : vector<2x256xf32> to vector<2x128xf32>
    %cst_67 = arith.constant dense<0.000000e+00> : vector<2x128xf32>
    %234 = tpu.matmul %214, %8, %cst_67 {dimension_numbers = #tpu.dot_dimension_numbers<[1], [0], [0], [1], [0, 0, 1, 1], [], []>} : vector<2x32xf32>, vector<32x128xf32>, vector<2x128xf32> -> vector<2x128xf32>
    %235 = arith.addf %233, %234 : vector<2x128xf32>
    %236 = vector.extract_strided_slice %232 {offsets = [0, 0], sizes = [2, 32], strides = [1, 1]} : vector<2x128xf32> to vector<2x32xf32>
    %237 = arith.negf %236 : vector<2x32xf32>
    %238 = math.exp %237 : vector<2x32xf32>
    %cst_68 = arith.constant 1.000000e+00 : f32
    %239 = vector.broadcast %cst_68 : f32 to vector<2x32xf32>
    %240 = arith.addf %239, %238 : vector<2x32xf32>
    %241 = arith.divf %239, %240 : vector<2x32xf32>
    %242 = vector.extract_strided_slice %232 {offsets = [0, 32], sizes = [2, 32], strides = [1, 1]} : vector<2x128xf32> to vector<2x32xf32>
    %243 = arith.negf %242 : vector<2x32xf32>
    %244 = math.exp %243 : vector<2x32xf32>
    %cst_69 = arith.constant 1.000000e+00 : f32
    %245 = vector.broadcast %cst_69 : f32 to vector<2x32xf32>
    %246 = arith.addf %245, %244 : vector<2x32xf32>
    %247 = arith.divf %245, %246 : vector<2x32xf32>
    %248 = vector.extract_strided_slice %232 {offsets = [0, 64], sizes = [2, 32], strides = [1, 1]} : vector<2x128xf32> to vector<2x32xf32>
    %249 = math.tanh %248 : vector<2x32xf32>
    %250 = vector.extract_strided_slice %232 {offsets = [0, 96], sizes = [2, 32], strides = [1, 1]} : vector<2x128xf32> to vector<2x32xf32>
    %251 = arith.negf %250 : vector<2x32xf32>
    %252 = math.exp %251 : vector<2x32xf32>
    %cst_70 = arith.constant 1.000000e+00 : f32
    %253 = vector.broadcast %cst_70 : f32 to vector<2x32xf32>
    %254 = arith.addf %253, %252 : vector<2x32xf32>
    %255 = arith.divf %253, %254 : vector<2x32xf32>
    %256 = arith.mulf %247, %187 : vector<2x32xf32>
    %257 = arith.mulf %241, %249 : vector<2x32xf32>
    %258 = arith.addf %256, %257 : vector<2x32xf32>
    %259 = math.tanh %258 : vector<2x32xf32>
    %260 = arith.mulf %255, %259 : vector<2x32xf32>
    %261 = vector.extract_strided_slice %235 {offsets = [0, 0], sizes = [2, 32], strides = [1, 1]} : vector<2x128xf32> to vector<2x32xf32>
    %262 = arith.negf %261 : vector<2x32xf32>
    %263 = math.exp %262 : vector<2x32xf32>
    %cst_71 = arith.constant 1.000000e+00 : f32
    %264 = vector.broadcast %cst_71 : f32 to vector<2x32xf32>
    %265 = arith.addf %264, %263 : vector<2x32xf32>
    %266 = arith.divf %264, %265 : vector<2x32xf32>
    %267 = vector.extract_strided_slice %235 {offsets = [0, 32], sizes = [2, 32], strides = [1, 1]} : vector<2x128xf32> to vector<2x32xf32>
    %268 = arith.negf %267 : vector<2x32xf32>
    %269 = math.exp %268 : vector<2x32xf32>
    %cst_72 = arith.constant 1.000000e+00 : f32
    %270 = vector.broadcast %cst_72 : f32 to vector<2x32xf32>
    %271 = arith.addf %270, %269 : vector<2x32xf32>
    %272 = arith.divf %270, %271 : vector<2x32xf32>
    %273 = vector.extract_strided_slice %235 {offsets = [0, 64], sizes = [2, 32], strides = [1, 1]} : vector<2x128xf32> to vector<2x32xf32>
    %274 = math.tanh %273 : vector<2x32xf32>
    %275 = vector.extract_strided_slice %235 {offsets = [0, 96], sizes = [2, 32], strides = [1, 1]} : vector<2x128xf32> to vector<2x32xf32>
    %276 = arith.negf %275 : vector<2x32xf32>
    %277 = math.exp %276 : vector<2x32xf32>
    %cst_73 = arith.constant 1.000000e+00 : f32
    %278 = vector.broadcast %cst_73 : f32 to vector<2x32xf32>
    %279 = arith.addf %278, %277 : vector<2x32xf32>
    %280 = arith.divf %278, %279 : vector<2x32xf32>
    %281 = arith.mulf %272, %212 : vector<2x32xf32>
    %282 = arith.mulf %266, %274 : vector<2x32xf32>
    %283 = arith.addf %281, %282 : vector<2x32xf32>
    %284 = math.tanh %283 : vector<2x32xf32>
    %285 = arith.mulf %280, %284 : vector<2x32xf32>
    %286 = arith.index_cast %c3_i32 : i32 to index
    %c0_74 = arith.constant 0 : index
    %c0_75 = arith.constant 0 : index
    %287 = vector.load %arg6[%286, %c0_74, %c0_75] : memref<10x2x64xf32, #tpu.memory_space<vmem>>, vector<1x2x32xf32>
    %288 = vector.shape_cast %287 : vector<1x2x32xf32> to vector<2x32xf32>
    %289 = vector.shape_cast %260 : vector<2x32xf32> to vector<1x2x32xf32>
    tpu.vector_store %arg6[%286, %c0_74, %c0_75], %289 {strides = array<i32>} : memref<10x2x64xf32, #tpu.memory_space<vmem>>, vector<1x2x32xf32>,
    %290 = arith.index_cast %223 : i32 to index
    %c0_76 = arith.constant 0 : index
    %c32_77 = arith.constant 32 : index
    %291 = vector.load %arg6[%290, %c0_76, %c32_77] : memref<10x2x64xf32, #tpu.memory_space<vmem>>, vector<1x2x32xf32>
    %292 = vector.shape_cast %291 : vector<1x2x32xf32> to vector<2x32xf32>
    %293 = vector.shape_cast %285 : vector<2x32xf32> to vector<1x2x32xf32>
    tpu.vector_store %arg6[%290, %c0_76, %c32_77], %293 {strides = array<i32>} : memref<10x2x64xf32, #tpu.memory_space<vmem>>, vector<1x2x32xf32>,
    %c4_i32 = arith.constant 4 : i32
    %c9_i32_78 = arith.constant 9 : i32
    %294 = arith.subi %c9_i32_78, %c4_i32 : i32
    %c2_i32_79 = arith.constant 2 : i32
    %295 = arith.muli %c4_i32, %c2_i32_79 : i32
    %296 = arith.index_cast %295 : i32 to index
    %c0_80 = arith.constant 0 : index
    %297 = vector.load %arg7[%296, %c0_80] : memref<20x256xf32, #tpu.memory_space<vmem>>, vector<2x256xf32>
    %c2_i32_81 = arith.constant 2 : i32
    %298 = arith.muli %294, %c2_i32_81 : i32
    %299 = arith.index_cast %298 : i32 to index
    %c0_82 = arith.constant 0 : index
    %300 = vector.load %arg7[%299, %c0_82] : memref<20x256xf32, #tpu.memory_space<vmem>>, vector<2x256xf32>
    %301 = vector.extract_strided_slice %297 {offsets = [0, 0], sizes = [2, 128], strides = [1, 1]} : vector<2x256xf32> to vector<2x128xf32>
    %cst_83 = arith.constant dense<0.000000e+00> : vector<2x128xf32>
    %302 = tpu.matmul %260, %7, %cst_83 {dimension_numbers = #tpu.dot_dimension_numbers<[1], [0], [0], [1], [0, 0, 1, 1], [], []>} : vector<2x32xf32>, vector<32x128xf32>, vector<2x128xf32> -> vector<2x128xf32>
    %303 = arith.addf %301, %302 : vector<2x128xf32>
    %304 = vector.extract_strided_slice %300 {offsets = [0, 128], sizes = [2, 128], strides = [1, 1]} : vector<2x256xf32> to vector<2x128xf32>
    %cst_84 = arith.constant dense<0.000000e+00> : vector<2x128xf32>
    %305 = tpu.matmul %285, %8, %cst_84 {dimension_numbers = #tpu.dot_dimension_numbers<[1], [0], [0], [1], [0, 0, 1, 1], [], []>} : vector<2x32xf32>, vector<32x128xf32>, vector<2x128xf32> -> vector<2x128xf32>
    %306 = arith.addf %304, %305 : vector<2x128xf32>
    %307 = vector.extract_strided_slice %303 {offsets = [0, 0], sizes = [2, 32], strides = [1, 1]} : vector<2x128xf32> to vector<2x32xf32>
    %308 = arith.negf %307 : vector<2x32xf32>
    %309 = math.exp %308 : vector<2x32xf32>
    %cst_85 = arith.constant 1.000000e+00 : f32
    %310 = vector.broadcast %cst_85 : f32 to vector<2x32xf32>
    %311 = arith.addf %310, %309 : vector<2x32xf32>
    %312 = arith.divf %310, %311 : vector<2x32xf32>
    %313 = vector.extract_strided_slice %303 {offsets = [0, 32], sizes = [2, 32], strides = [1, 1]} : vector<2x128xf32> to vector<2x32xf32>
    %314 = arith.negf %313 : vector<2x32xf32>
    %315 = math.exp %314 : vector<2x32xf32>
    %cst_86 = arith.constant 1.000000e+00 : f32
    %316 = vector.broadcast %cst_86 : f32 to vector<2x32xf32>
    %317 = arith.addf %316, %315 : vector<2x32xf32>
    %318 = arith.divf %316, %317 : vector<2x32xf32>
    %319 = vector.extract_strided_slice %303 {offsets = [0, 64], sizes = [2, 32], strides = [1, 1]} : vector<2x128xf32> to vector<2x32xf32>
    %320 = math.tanh %319 : vector<2x32xf32>
    %321 = vector.extract_strided_slice %303 {offsets = [0, 96], sizes = [2, 32], strides = [1, 1]} : vector<2x128xf32> to vector<2x32xf32>
    %322 = arith.negf %321 : vector<2x32xf32>
    %323 = math.exp %322 : vector<2x32xf32>
    %cst_87 = arith.constant 1.000000e+00 : f32
    %324 = vector.broadcast %cst_87 : f32 to vector<2x32xf32>
    %325 = arith.addf %324, %323 : vector<2x32xf32>
    %326 = arith.divf %324, %325 : vector<2x32xf32>
    %327 = arith.mulf %318, %258 : vector<2x32xf32>
    %328 = arith.mulf %312, %320 : vector<2x32xf32>
    %329 = arith.addf %327, %328 : vector<2x32xf32>
    %330 = math.tanh %329 : vector<2x32xf32>
    %331 = arith.mulf %326, %330 : vector<2x32xf32>
    %332 = vector.extract_strided_slice %306 {offsets = [0, 0], sizes = [2, 32], strides = [1, 1]} : vector<2x128xf32> to vector<2x32xf32>
    %333 = arith.negf %332 : vector<2x32xf32>
    %334 = math.exp %333 : vector<2x32xf32>
    %cst_88 = arith.constant 1.000000e+00 : f32
    %335 = vector.broadcast %cst_88 : f32 to vector<2x32xf32>
    %336 = arith.addf %335, %334 : vector<2x32xf32>
    %337 = arith.divf %335, %336 : vector<2x32xf32>
    %338 = vector.extract_strided_slice %306 {offsets = [0, 32], sizes = [2, 32], strides = [1, 1]} : vector<2x128xf32> to vector<2x32xf32>
    %339 = arith.negf %338 : vector<2x32xf32>
    %340 = math.exp %339 : vector<2x32xf32>
    %cst_89 = arith.constant 1.000000e+00 : f32
    %341 = vector.broadcast %cst_89 : f32 to vector<2x32xf32>
    %342 = arith.addf %341, %340 : vector<2x32xf32>
    %343 = arith.divf %341, %342 : vector<2x32xf32>
    %344 = vector.extract_strided_slice %306 {offsets = [0, 64], sizes = [2, 32], strides = [1, 1]} : vector<2x128xf32> to vector<2x32xf32>
    %345 = math.tanh %344 : vector<2x32xf32>
    %346 = vector.extract_strided_slice %306 {offsets = [0, 96], sizes = [2, 32], strides = [1, 1]} : vector<2x128xf32> to vector<2x32xf32>
    %347 = arith.negf %346 : vector<2x32xf32>
    %348 = math.exp %347 : vector<2x32xf32>
    %cst_90 = arith.constant 1.000000e+00 : f32
    %349 = vector.broadcast %cst_90 : f32 to vector<2x32xf32>
    %350 = arith.addf %349, %348 : vector<2x32xf32>
    %351 = arith.divf %349, %350 : vector<2x32xf32>
    %352 = arith.mulf %343, %283 : vector<2x32xf32>
    %353 = arith.mulf %337, %345 : vector<2x32xf32>
    %354 = arith.addf %352, %353 : vector<2x32xf32>
    %355 = math.tanh %354 : vector<2x32xf32>
    %356 = arith.mulf %351, %355 : vector<2x32xf32>
    %357 = arith.index_cast %c4_i32 : i32 to index
    %c0_91 = arith.constant 0 : index
    %c0_92 = arith.constant 0 : index
    %358 = vector.load %arg6[%357, %c0_91, %c0_92] : memref<10x2x64xf32, #tpu.memory_space<vmem>>, vector<1x2x32xf32>
    %359 = vector.shape_cast %358 : vector<1x2x32xf32> to vector<2x32xf32>
    %360 = vector.shape_cast %331 : vector<2x32xf32> to vector<1x2x32xf32>
    tpu.vector_store %arg6[%357, %c0_91, %c0_92], %360 {strides = array<i32>} : memref<10x2x64xf32, #tpu.memory_space<vmem>>, vector<1x2x32xf32>,
    %361 = arith.index_cast %294 : i32 to index
    %c0_93 = arith.constant 0 : index
    %c32_94 = arith.constant 32 : index
    %362 = vector.load %arg6[%361, %c0_93, %c32_94] : memref<10x2x64xf32, #tpu.memory_space<vmem>>, vector<1x2x32xf32>
    %363 = vector.shape_cast %362 : vector<1x2x32xf32> to vector<2x32xf32>
    %364 = vector.shape_cast %356 : vector<2x32xf32> to vector<1x2x32xf32>
    tpu.vector_store %arg6[%361, %c0_93, %c32_94], %364 {strides = array<i32>} : memref<10x2x64xf32, #tpu.memory_space<vmem>>, vector<1x2x32xf32>,
    %c5_i32 = arith.constant 5 : i32
    %c9_i32_95 = arith.constant 9 : i32
    %365 = arith.subi %c9_i32_95, %c5_i32 : i32
    %c2_i32_96 = arith.constant 2 : i32
    %366 = arith.muli %c5_i32, %c2_i32_96 : i32
    %367 = arith.index_cast %366 : i32 to index
    %c0_97 = arith.constant 0 : index
    %368 = vector.load %arg7[%367, %c0_97] : memref<20x256xf32, #tpu.memory_space<vmem>>, vector<2x256xf32>
    %c2_i32_98 = arith.constant 2 : i32
    %369 = arith.muli %365, %c2_i32_98 : i32
    %370 = arith.index_cast %369 : i32 to index
    %c0_99 = arith.constant 0 : index
    %371 = vector.load %arg7[%370, %c0_99] : memref<20x256xf32, #tpu.memory_space<vmem>>, vector<2x256xf32>
    %372 = vector.extract_strided_slice %368 {offsets = [0, 0], sizes = [2, 128], strides = [1, 1]} : vector<2x256xf32> to vector<2x128xf32>
    %cst_100 = arith.constant dense<0.000000e+00> : vector<2x128xf32>
    %373 = tpu.matmul %331, %7, %cst_100 {dimension_numbers = #tpu.dot_dimension_numbers<[1], [0], [0], [1], [0, 0, 1, 1], [], []>} : vector<2x32xf32>, vector<32x128xf32>, vector<2x128xf32> -> vector<2x128xf32>
    %374 = arith.addf %372, %373 : vector<2x128xf32>
    %375 = vector.extract_strided_slice %371 {offsets = [0, 128], sizes = [2, 128], strides = [1, 1]} : vector<2x256xf32> to vector<2x128xf32>
    %cst_101 = arith.constant dense<0.000000e+00> : vector<2x128xf32>
    %376 = tpu.matmul %356, %8, %cst_101 {dimension_numbers = #tpu.dot_dimension_numbers<[1], [0], [0], [1], [0, 0, 1, 1], [], []>} : vector<2x32xf32>, vector<32x128xf32>, vector<2x128xf32> -> vector<2x128xf32>
    %377 = arith.addf %375, %376 : vector<2x128xf32>
    %378 = vector.extract_strided_slice %374 {offsets = [0, 0], sizes = [2, 32], strides = [1, 1]} : vector<2x128xf32> to vector<2x32xf32>
    %379 = arith.negf %378 : vector<2x32xf32>
    %380 = math.exp %379 : vector<2x32xf32>
    %cst_102 = arith.constant 1.000000e+00 : f32
    %381 = vector.broadcast %cst_102 : f32 to vector<2x32xf32>
    %382 = arith.addf %381, %380 : vector<2x32xf32>
    %383 = arith.divf %381, %382 : vector<2x32xf32>
    %384 = vector.extract_strided_slice %374 {offsets = [0, 32], sizes = [2, 32], strides = [1, 1]} : vector<2x128xf32> to vector<2x32xf32>
    %385 = arith.negf %384 : vector<2x32xf32>
    %386 = math.exp %385 : vector<2x32xf32>
    %cst_103 = arith.constant 1.000000e+00 : f32
    %387 = vector.broadcast %cst_103 : f32 to vector<2x32xf32>
    %388 = arith.addf %387, %386 : vector<2x32xf32>
    %389 = arith.divf %387, %388 : vector<2x32xf32>
    %390 = vector.extract_strided_slice %374 {offsets = [0, 64], sizes = [2, 32], strides = [1, 1]} : vector<2x128xf32> to vector<2x32xf32>
    %391 = math.tanh %390 : vector<2x32xf32>
    %392 = vector.extract_strided_slice %374 {offsets = [0, 96], sizes = [2, 32], strides = [1, 1]} : vector<2x128xf32> to vector<2x32xf32>
    %393 = arith.negf %392 : vector<2x32xf32>
    %394 = math.exp %393 : vector<2x32xf32>
    %cst_104 = arith.constant 1.000000e+00 : f32
    %395 = vector.broadcast %cst_104 : f32 to vector<2x32xf32>
    %396 = arith.addf %395, %394 : vector<2x32xf32>
    %397 = arith.divf %395, %396 : vector<2x32xf32>
    %398 = arith.mulf %389, %329 : vector<2x32xf32>
    %399 = arith.mulf %383, %391 : vector<2x32xf32>
    %400 = arith.addf %398, %399 : vector<2x32xf32>
    %401 = math.tanh %400 : vector<2x32xf32>
    %402 = arith.mulf %397, %401 : vector<2x32xf32>
    %403 = vector.extract_strided_slice %377 {offsets = [0, 0], sizes = [2, 32], strides = [1, 1]} : vector<2x128xf32> to vector<2x32xf32>
    %404 = arith.negf %403 : vector<2x32xf32>
    %405 = math.exp %404 : vector<2x32xf32>
    %cst_105 = arith.constant 1.000000e+00 : f32
    %406 = vector.broadcast %cst_105 : f32 to vector<2x32xf32>
    %407 = arith.addf %406, %405 : vector<2x32xf32>
    %408 = arith.divf %406, %407 : vector<2x32xf32>
    %409 = vector.extract_strided_slice %377 {offsets = [0, 32], sizes = [2, 32], strides = [1, 1]} : vector<2x128xf32> to vector<2x32xf32>
    %410 = arith.negf %409 : vector<2x32xf32>
    %411 = math.exp %410 : vector<2x32xf32>
    %cst_106 = arith.constant 1.000000e+00 : f32
    %412 = vector.broadcast %cst_106 : f32 to vector<2x32xf32>
    %413 = arith.addf %412, %411 : vector<2x32xf32>
    %414 = arith.divf %412, %413 : vector<2x32xf32>
    %415 = vector.extract_strided_slice %377 {offsets = [0, 64], sizes = [2, 32], strides = [1, 1]} : vector<2x128xf32> to vector<2x32xf32>
    %416 = math.tanh %415 : vector<2x32xf32>
    %417 = vector.extract_strided_slice %377 {offsets = [0, 96], sizes = [2, 32], strides = [1, 1]} : vector<2x128xf32> to vector<2x32xf32>
    %418 = arith.negf %417 : vector<2x32xf32>
    %419 = math.exp %418 : vector<2x32xf32>
    %cst_107 = arith.constant 1.000000e+00 : f32
    %420 = vector.broadcast %cst_107 : f32 to vector<2x32xf32>
    %421 = arith.addf %420, %419 : vector<2x32xf32>
    %422 = arith.divf %420, %421 : vector<2x32xf32>
    %423 = arith.mulf %414, %354 : vector<2x32xf32>
    %424 = arith.mulf %408, %416 : vector<2x32xf32>
    %425 = arith.addf %423, %424 : vector<2x32xf32>
    %426 = math.tanh %425 : vector<2x32xf32>
    %427 = arith.mulf %422, %426 : vector<2x32xf32>
    %428 = arith.index_cast %c5_i32 : i32 to index
    %c0_108 = arith.constant 0 : index
    %c0_109 = arith.constant 0 : index
    %429 = vector.load %arg6[%428, %c0_108, %c0_109] : memref<10x2x64xf32, #tpu.memory_space<vmem>>, vector<1x2x32xf32>
    %430 = vector.shape_cast %429 : vector<1x2x32xf32> to vector<2x32xf32>
    %431 = vector.shape_cast %402 : vector<2x32xf32> to vector<1x2x32xf32>
    tpu.vector_store %arg6[%428, %c0_108, %c0_109], %431 {strides = array<i32>} : memref<10x2x64xf32, #tpu.memory_space<vmem>>, vector<1x2x32xf32>,
    %432 = arith.index_cast %365 : i32 to index
    %c0_110 = arith.constant 0 : index
    %c32_111 = arith.constant 32 : index
    %433 = vector.load %arg6[%432, %c0_110, %c32_111] : memref<10x2x64xf32, #tpu.memory_space<vmem>>, vector<1x2x32xf32>
    %434 = vector.shape_cast %433 : vector<1x2x32xf32> to vector<2x32xf32>
    %435 = vector.shape_cast %427 : vector<2x32xf32> to vector<1x2x32xf32>
    tpu.vector_store %arg6[%432, %c0_110, %c32_111], %435 {strides = array<i32>} : memref<10x2x64xf32, #tpu.memory_space<vmem>>, vector<1x2x32xf32>,
    %c6_i32 = arith.constant 6 : i32
    %c9_i32_112 = arith.constant 9 : i32
    %436 = arith.subi %c9_i32_112, %c6_i32 : i32
    %c2_i32_113 = arith.constant 2 : i32
    %437 = arith.muli %c6_i32, %c2_i32_113 : i32
    %438 = arith.index_cast %437 : i32 to index
    %c0_114 = arith.constant 0 : index
    %439 = vector.load %arg7[%438, %c0_114] : memref<20x256xf32, #tpu.memory_space<vmem>>, vector<2x256xf32>
    %c2_i32_115 = arith.constant 2 : i32
    %440 = arith.muli %436, %c2_i32_115 : i32
    %441 = arith.index_cast %440 : i32 to index
    %c0_116 = arith.constant 0 : index
    %442 = vector.load %arg7[%441, %c0_116] : memref<20x256xf32, #tpu.memory_space<vmem>>, vector<2x256xf32>
    %443 = vector.extract_strided_slice %439 {offsets = [0, 0], sizes = [2, 128], strides = [1, 1]} : vector<2x256xf32> to vector<2x128xf32>
    %cst_117 = arith.constant dense<0.000000e+00> : vector<2x128xf32>
    %444 = tpu.matmul %402, %7, %cst_117 {dimension_numbers = #tpu.dot_dimension_numbers<[1], [0], [0], [1], [0, 0, 1, 1], [], []>} : vector<2x32xf32>, vector<32x128xf32>, vector<2x128xf32> -> vector<2x128xf32>
    %445 = arith.addf %443, %444 : vector<2x128xf32>
    %446 = vector.extract_strided_slice %442 {offsets = [0, 128], sizes = [2, 128], strides = [1, 1]} : vector<2x256xf32> to vector<2x128xf32>
    %cst_118 = arith.constant dense<0.000000e+00> : vector<2x128xf32>
    %447 = tpu.matmul %427, %8, %cst_118 {dimension_numbers = #tpu.dot_dimension_numbers<[1], [0], [0], [1], [0, 0, 1, 1], [], []>} : vector<2x32xf32>, vector<32x128xf32>, vector<2x128xf32> -> vector<2x128xf32>
    %448 = arith.addf %446, %447 : vector<2x128xf32>
    %449 = vector.extract_strided_slice %445 {offsets = [0, 0], sizes = [2, 32], strides = [1, 1]} : vector<2x128xf32> to vector<2x32xf32>
    %450 = arith.negf %449 : vector<2x32xf32>
    %451 = math.exp %450 : vector<2x32xf32>
    %cst_119 = arith.constant 1.000000e+00 : f32
    %452 = vector.broadcast %cst_119 : f32 to vector<2x32xf32>
    %453 = arith.addf %452, %451 : vector<2x32xf32>
    %454 = arith.divf %452, %453 : vector<2x32xf32>
    %455 = vector.extract_strided_slice %445 {offsets = [0, 32], sizes = [2, 32], strides = [1, 1]} : vector<2x128xf32> to vector<2x32xf32>
    %456 = arith.negf %455 : vector<2x32xf32>
    %457 = math.exp %456 : vector<2x32xf32>
    %cst_120 = arith.constant 1.000000e+00 : f32
    %458 = vector.broadcast %cst_120 : f32 to vector<2x32xf32>
    %459 = arith.addf %458, %457 : vector<2x32xf32>
    %460 = arith.divf %458, %459 : vector<2x32xf32>
    %461 = vector.extract_strided_slice %445 {offsets = [0, 64], sizes = [2, 32], strides = [1, 1]} : vector<2x128xf32> to vector<2x32xf32>
    %462 = math.tanh %461 : vector<2x32xf32>
    %463 = vector.extract_strided_slice %445 {offsets = [0, 96], sizes = [2, 32], strides = [1, 1]} : vector<2x128xf32> to vector<2x32xf32>
    %464 = arith.negf %463 : vector<2x32xf32>
    %465 = math.exp %464 : vector<2x32xf32>
    %cst_121 = arith.constant 1.000000e+00 : f32
    %466 = vector.broadcast %cst_121 : f32 to vector<2x32xf32>
    %467 = arith.addf %466, %465 : vector<2x32xf32>
    %468 = arith.divf %466, %467 : vector<2x32xf32>
    %469 = arith.mulf %460, %400 : vector<2x32xf32>
    %470 = arith.mulf %454, %462 : vector<2x32xf32>
    %471 = arith.addf %469, %470 : vector<2x32xf32>
    %472 = math.tanh %471 : vector<2x32xf32>
    %473 = arith.mulf %468, %472 : vector<2x32xf32>
    %474 = vector.extract_strided_slice %448 {offsets = [0, 0], sizes = [2, 32], strides = [1, 1]} : vector<2x128xf32> to vector<2x32xf32>
    %475 = arith.negf %474 : vector<2x32xf32>
    %476 = math.exp %475 : vector<2x32xf32>
    %cst_122 = arith.constant 1.000000e+00 : f32
    %477 = vector.broadcast %cst_122 : f32 to vector<2x32xf32>
    %478 = arith.addf %477, %476 : vector<2x32xf32>
    %479 = arith.divf %477, %478 : vector<2x32xf32>
    %480 = vector.extract_strided_slice %448 {offsets = [0, 32], sizes = [2, 32], strides = [1, 1]} : vector<2x128xf32> to vector<2x32xf32>
    %481 = arith.negf %480 : vector<2x32xf32>
    %482 = math.exp %481 : vector<2x32xf32>
    %cst_123 = arith.constant 1.000000e+00 : f32
    %483 = vector.broadcast %cst_123 : f32 to vector<2x32xf32>
    %484 = arith.addf %483, %482 : vector<2x32xf32>
    %485 = arith.divf %483, %484 : vector<2x32xf32>
    %486 = vector.extract_strided_slice %448 {offsets = [0, 64], sizes = [2, 32], strides = [1, 1]} : vector<2x128xf32> to vector<2x32xf32>
    %487 = math.tanh %486 : vector<2x32xf32>
    %488 = vector.extract_strided_slice %448 {offsets = [0, 96], sizes = [2, 32], strides = [1, 1]} : vector<2x128xf32> to vector<2x32xf32>
    %489 = arith.negf %488 : vector<2x32xf32>
    %490 = math.exp %489 : vector<2x32xf32>
    %cst_124 = arith.constant 1.000000e+00 : f32
    %491 = vector.broadcast %cst_124 : f32 to vector<2x32xf32>
    %492 = arith.addf %491, %490 : vector<2x32xf32>
    %493 = arith.divf %491, %492 : vector<2x32xf32>
    %494 = arith.mulf %485, %425 : vector<2x32xf32>
    %495 = arith.mulf %479, %487 : vector<2x32xf32>
    %496 = arith.addf %494, %495 : vector<2x32xf32>
    %497 = math.tanh %496 : vector<2x32xf32>
    %498 = arith.mulf %493, %497 : vector<2x32xf32>
    %499 = arith.index_cast %c6_i32 : i32 to index
    %c0_125 = arith.constant 0 : index
    %c0_126 = arith.constant 0 : index
    %500 = vector.load %arg6[%499, %c0_125, %c0_126] : memref<10x2x64xf32, #tpu.memory_space<vmem>>, vector<1x2x32xf32>
    %501 = vector.shape_cast %500 : vector<1x2x32xf32> to vector<2x32xf32>
    %502 = vector.shape_cast %473 : vector<2x32xf32> to vector<1x2x32xf32>
    tpu.vector_store %arg6[%499, %c0_125, %c0_126], %502 {strides = array<i32>} : memref<10x2x64xf32, #tpu.memory_space<vmem>>, vector<1x2x32xf32>,
    %503 = arith.index_cast %436 : i32 to index
    %c0_127 = arith.constant 0 : index
    %c32_128 = arith.constant 32 : index
    %504 = vector.load %arg6[%503, %c0_127, %c32_128] : memref<10x2x64xf32, #tpu.memory_space<vmem>>, vector<1x2x32xf32>
    %505 = vector.shape_cast %504 : vector<1x2x32xf32> to vector<2x32xf32>
    %506 = vector.shape_cast %498 : vector<2x32xf32> to vector<1x2x32xf32>
    tpu.vector_store %arg6[%503, %c0_127, %c32_128], %506 {strides = array<i32>} : memref<10x2x64xf32, #tpu.memory_space<vmem>>, vector<1x2x32xf32>,
    %c7_i32 = arith.constant 7 : i32
    %c9_i32_129 = arith.constant 9 : i32
    %507 = arith.subi %c9_i32_129, %c7_i32 : i32
    %c2_i32_130 = arith.constant 2 : i32
    %508 = arith.muli %c7_i32, %c2_i32_130 : i32
    %509 = arith.index_cast %508 : i32 to index
    %c0_131 = arith.constant 0 : index
    %510 = vector.load %arg7[%509, %c0_131] : memref<20x256xf32, #tpu.memory_space<vmem>>, vector<2x256xf32>
    %c2_i32_132 = arith.constant 2 : i32
    %511 = arith.muli %507, %c2_i32_132 : i32
    %512 = arith.index_cast %511 : i32 to index
    %c0_133 = arith.constant 0 : index
    %513 = vector.load %arg7[%512, %c0_133] : memref<20x256xf32, #tpu.memory_space<vmem>>, vector<2x256xf32>
    %514 = vector.extract_strided_slice %510 {offsets = [0, 0], sizes = [2, 128], strides = [1, 1]} : vector<2x256xf32> to vector<2x128xf32>
    %cst_134 = arith.constant dense<0.000000e+00> : vector<2x128xf32>
    %515 = tpu.matmul %473, %7, %cst_134 {dimension_numbers = #tpu.dot_dimension_numbers<[1], [0], [0], [1], [0, 0, 1, 1], [], []>} : vector<2x32xf32>, vector<32x128xf32>, vector<2x128xf32> -> vector<2x128xf32>
    %516 = arith.addf %514, %515 : vector<2x128xf32>
    %517 = vector.extract_strided_slice %513 {offsets = [0, 128], sizes = [2, 128], strides = [1, 1]} : vector<2x256xf32> to vector<2x128xf32>
    %cst_135 = arith.constant dense<0.000000e+00> : vector<2x128xf32>
    %518 = tpu.matmul %498, %8, %cst_135 {dimension_numbers = #tpu.dot_dimension_numbers<[1], [0], [0], [1], [0, 0, 1, 1], [], []>} : vector<2x32xf32>, vector<32x128xf32>, vector<2x128xf32> -> vector<2x128xf32>
    %519 = arith.addf %517, %518 : vector<2x128xf32>
    %520 = vector.extract_strided_slice %516 {offsets = [0, 0], sizes = [2, 32], strides = [1, 1]} : vector<2x128xf32> to vector<2x32xf32>
    %521 = arith.negf %520 : vector<2x32xf32>
    %522 = math.exp %521 : vector<2x32xf32>
    %cst_136 = arith.constant 1.000000e+00 : f32
    %523 = vector.broadcast %cst_136 : f32 to vector<2x32xf32>
    %524 = arith.addf %523, %522 : vector<2x32xf32>
    %525 = arith.divf %523, %524 : vector<2x32xf32>
    %526 = vector.extract_strided_slice %516 {offsets = [0, 32], sizes = [2, 32], strides = [1, 1]} : vector<2x128xf32> to vector<2x32xf32>
    %527 = arith.negf %526 : vector<2x32xf32>
    %528 = math.exp %527 : vector<2x32xf32>
    %cst_137 = arith.constant 1.000000e+00 : f32
    %529 = vector.broadcast %cst_137 : f32 to vector<2x32xf32>
    %530 = arith.addf %529, %528 : vector<2x32xf32>
    %531 = arith.divf %529, %530 : vector<2x32xf32>
    %532 = vector.extract_strided_slice %516 {offsets = [0, 64], sizes = [2, 32], strides = [1, 1]} : vector<2x128xf32> to vector<2x32xf32>
    %533 = math.tanh %532 : vector<2x32xf32>
    %534 = vector.extract_strided_slice %516 {offsets = [0, 96], sizes = [2, 32], strides = [1, 1]} : vector<2x128xf32> to vector<2x32xf32>
    %535 = arith.negf %534 : vector<2x32xf32>
    %536 = math.exp %535 : vector<2x32xf32>
    %cst_138 = arith.constant 1.000000e+00 : f32
    %537 = vector.broadcast %cst_138 : f32 to vector<2x32xf32>
    %538 = arith.addf %537, %536 : vector<2x32xf32>
    %539 = arith.divf %537, %538 : vector<2x32xf32>
    %540 = arith.mulf %531, %471 : vector<2x32xf32>
    %541 = arith.mulf %525, %533 : vector<2x32xf32>
    %542 = arith.addf %540, %541 : vector<2x32xf32>
    %543 = math.tanh %542 : vector<2x32xf32>
    %544 = arith.mulf %539, %543 : vector<2x32xf32>
    %545 = vector.extract_strided_slice %519 {offsets = [0, 0], sizes = [2, 32], strides = [1, 1]} : vector<2x128xf32> to vector<2x32xf32>
    %546 = arith.negf %545 : vector<2x32xf32>
    %547 = math.exp %546 : vector<2x32xf32>
    %cst_139 = arith.constant 1.000000e+00 : f32
    %548 = vector.broadcast %cst_139 : f32 to vector<2x32xf32>
    %549 = arith.addf %548, %547 : vector<2x32xf32>
    %550 = arith.divf %548, %549 : vector<2x32xf32>
    %551 = vector.extract_strided_slice %519 {offsets = [0, 32], sizes = [2, 32], strides = [1, 1]} : vector<2x128xf32> to vector<2x32xf32>
    %552 = arith.negf %551 : vector<2x32xf32>
    %553 = math.exp %552 : vector<2x32xf32>
    %cst_140 = arith.constant 1.000000e+00 : f32
    %554 = vector.broadcast %cst_140 : f32 to vector<2x32xf32>
    %555 = arith.addf %554, %553 : vector<2x32xf32>
    %556 = arith.divf %554, %555 : vector<2x32xf32>
    %557 = vector.extract_strided_slice %519 {offsets = [0, 64], sizes = [2, 32], strides = [1, 1]} : vector<2x128xf32> to vector<2x32xf32>
    %558 = math.tanh %557 : vector<2x32xf32>
    %559 = vector.extract_strided_slice %519 {offsets = [0, 96], sizes = [2, 32], strides = [1, 1]} : vector<2x128xf32> to vector<2x32xf32>
    %560 = arith.negf %559 : vector<2x32xf32>
    %561 = math.exp %560 : vector<2x32xf32>
    %cst_141 = arith.constant 1.000000e+00 : f32
    %562 = vector.broadcast %cst_141 : f32 to vector<2x32xf32>
    %563 = arith.addf %562, %561 : vector<2x32xf32>
    %564 = arith.divf %562, %563 : vector<2x32xf32>
    %565 = arith.mulf %556, %496 : vector<2x32xf32>
    %566 = arith.mulf %550, %558 : vector<2x32xf32>
    %567 = arith.addf %565, %566 : vector<2x32xf32>
    %568 = math.tanh %567 : vector<2x32xf32>
    %569 = arith.mulf %564, %568 : vector<2x32xf32>
    %570 = arith.index_cast %c7_i32 : i32 to index
    %c0_142 = arith.constant 0 : index
    %c0_143 = arith.constant 0 : index
    %571 = vector.load %arg6[%570, %c0_142, %c0_143] : memref<10x2x64xf32, #tpu.memory_space<vmem>>, vector<1x2x32xf32>
    %572 = vector.shape_cast %571 : vector<1x2x32xf32> to vector<2x32xf32>
    %573 = vector.shape_cast %544 : vector<2x32xf32> to vector<1x2x32xf32>
    tpu.vector_store %arg6[%570, %c0_142, %c0_143], %573 {strides = array<i32>} : memref<10x2x64xf32, #tpu.memory_space<vmem>>, vector<1x2x32xf32>,
    %574 = arith.index_cast %507 : i32 to index
    %c0_144 = arith.constant 0 : index
    %c32_145 = arith.constant 32 : index
    %575 = vector.load %arg6[%574, %c0_144, %c32_145] : memref<10x2x64xf32, #tpu.memory_space<vmem>>, vector<1x2x32xf32>
    %576 = vector.shape_cast %575 : vector<1x2x32xf32> to vector<2x32xf32>
    %577 = vector.shape_cast %569 : vector<2x32xf32> to vector<1x2x32xf32>
    tpu.vector_store %arg6[%574, %c0_144, %c32_145], %577 {strides = array<i32>} : memref<10x2x64xf32, #tpu.memory_space<vmem>>, vector<1x2x32xf32>,
    %c8_i32 = arith.constant 8 : i32
    %c9_i32_146 = arith.constant 9 : i32
    %578 = arith.subi %c9_i32_146, %c8_i32 : i32
    %c2_i32_147 = arith.constant 2 : i32
    %579 = arith.muli %c8_i32, %c2_i32_147 : i32
    %580 = arith.index_cast %579 : i32 to index
    %c0_148 = arith.constant 0 : index
    %581 = vector.load %arg7[%580, %c0_148] : memref<20x256xf32, #tpu.memory_space<vmem>>, vector<2x256xf32>
    %c2_i32_149 = arith.constant 2 : i32
    %582 = arith.muli %578, %c2_i32_149 : i32
    %583 = arith.index_cast %582 : i32 to index
    %c0_150 = arith.constant 0 : index
    %584 = vector.load %arg7[%583, %c0_150] : memref<20x256xf32, #tpu.memory_space<vmem>>, vector<2x256xf32>
    %585 = vector.extract_strided_slice %581 {offsets = [0, 0], sizes = [2, 128], strides = [1, 1]} : vector<2x256xf32> to vector<2x128xf32>
    %cst_151 = arith.constant dense<0.000000e+00> : vector<2x128xf32>
    %586 = tpu.matmul %544, %7, %cst_151 {dimension_numbers = #tpu.dot_dimension_numbers<[1], [0], [0], [1], [0, 0, 1, 1], [], []>} : vector<2x32xf32>, vector<32x128xf32>, vector<2x128xf32> -> vector<2x128xf32>
    %587 = arith.addf %585, %586 : vector<2x128xf32>
    %588 = vector.extract_strided_slice %584 {offsets = [0, 128], sizes = [2, 128], strides = [1, 1]} : vector<2x256xf32> to vector<2x128xf32>
    %cst_152 = arith.constant dense<0.000000e+00> : vector<2x128xf32>
    %589 = tpu.matmul %569, %8, %cst_152 {dimension_numbers = #tpu.dot_dimension_numbers<[1], [0], [0], [1], [0, 0, 1, 1], [], []>} : vector<2x32xf32>, vector<32x128xf32>, vector<2x128xf32> -> vector<2x128xf32>
    %590 = arith.addf %588, %589 : vector<2x128xf32>
    %591 = vector.extract_strided_slice %587 {offsets = [0, 0], sizes = [2, 32], strides = [1, 1]} : vector<2x128xf32> to vector<2x32xf32>
    %592 = arith.negf %591 : vector<2x32xf32>
    %593 = math.exp %592 : vector<2x32xf32>
    %cst_153 = arith.constant 1.000000e+00 : f32
    %594 = vector.broadcast %cst_153 : f32 to vector<2x32xf32>
    %595 = arith.addf %594, %593 : vector<2x32xf32>
    %596 = arith.divf %594, %595 : vector<2x32xf32>
    %597 = vector.extract_strided_slice %587 {offsets = [0, 32], sizes = [2, 32], strides = [1, 1]} : vector<2x128xf32> to vector<2x32xf32>
    %598 = arith.negf %597 : vector<2x32xf32>
    %599 = math.exp %598 : vector<2x32xf32>
    %cst_154 = arith.constant 1.000000e+00 : f32
    %600 = vector.broadcast %cst_154 : f32 to vector<2x32xf32>
    %601 = arith.addf %600, %599 : vector<2x32xf32>
    %602 = arith.divf %600, %601 : vector<2x32xf32>
    %603 = vector.extract_strided_slice %587 {offsets = [0, 64], sizes = [2, 32], strides = [1, 1]} : vector<2x128xf32> to vector<2x32xf32>
    %604 = math.tanh %603 : vector<2x32xf32>
    %605 = vector.extract_strided_slice %587 {offsets = [0, 96], sizes = [2, 32], strides = [1, 1]} : vector<2x128xf32> to vector<2x32xf32>
    %606 = arith.negf %605 : vector<2x32xf32>
    %607 = math.exp %606 : vector<2x32xf32>
    %cst_155 = arith.constant 1.000000e+00 : f32
    %608 = vector.broadcast %cst_155 : f32 to vector<2x32xf32>
    %609 = arith.addf %608, %607 : vector<2x32xf32>
    %610 = arith.divf %608, %609 : vector<2x32xf32>
    %611 = arith.mulf %602, %542 : vector<2x32xf32>
    %612 = arith.mulf %596, %604 : vector<2x32xf32>
    %613 = arith.addf %611, %612 : vector<2x32xf32>
    %614 = math.tanh %613 : vector<2x32xf32>
    %615 = arith.mulf %610, %614 : vector<2x32xf32>
    %616 = vector.extract_strided_slice %590 {offsets = [0, 0], sizes = [2, 32], strides = [1, 1]} : vector<2x128xf32> to vector<2x32xf32>
    %617 = arith.negf %616 : vector<2x32xf32>
    %618 = math.exp %617 : vector<2x32xf32>
    %cst_156 = arith.constant 1.000000e+00 : f32
    %619 = vector.broadcast %cst_156 : f32 to vector<2x32xf32>
    %620 = arith.addf %619, %618 : vector<2x32xf32>
    %621 = arith.divf %619, %620 : vector<2x32xf32>
    %622 = vector.extract_strided_slice %590 {offsets = [0, 32], sizes = [2, 32], strides = [1, 1]} : vector<2x128xf32> to vector<2x32xf32>
    %623 = arith.negf %622 : vector<2x32xf32>
    %624 = math.exp %623 : vector<2x32xf32>
    %cst_157 = arith.constant 1.000000e+00 : f32
    %625 = vector.broadcast %cst_157 : f32 to vector<2x32xf32>
    %626 = arith.addf %625, %624 : vector<2x32xf32>
    %627 = arith.divf %625, %626 : vector<2x32xf32>
    %628 = vector.extract_strided_slice %590 {offsets = [0, 64], sizes = [2, 32], strides = [1, 1]} : vector<2x128xf32> to vector<2x32xf32>
    %629 = math.tanh %628 : vector<2x32xf32>
    %630 = vector.extract_strided_slice %590 {offsets = [0, 96], sizes = [2, 32], strides = [1, 1]} : vector<2x128xf32> to vector<2x32xf32>
    %631 = arith.negf %630 : vector<2x32xf32>
    %632 = math.exp %631 : vector<2x32xf32>
    %cst_158 = arith.constant 1.000000e+00 : f32
    %633 = vector.broadcast %cst_158 : f32 to vector<2x32xf32>
    %634 = arith.addf %633, %632 : vector<2x32xf32>
    %635 = arith.divf %633, %634 : vector<2x32xf32>
    %636 = arith.mulf %627, %567 : vector<2x32xf32>
    %637 = arith.mulf %621, %629 : vector<2x32xf32>
    %638 = arith.addf %636, %637 : vector<2x32xf32>
    %639 = math.tanh %638 : vector<2x32xf32>
    %640 = arith.mulf %635, %639 : vector<2x32xf32>
    %641 = arith.index_cast %c8_i32 : i32 to index
    %c0_159 = arith.constant 0 : index
    %c0_160 = arith.constant 0 : index
    %642 = vector.load %arg6[%641, %c0_159, %c0_160] : memref<10x2x64xf32, #tpu.memory_space<vmem>>, vector<1x2x32xf32>
    %643 = vector.shape_cast %642 : vector<1x2x32xf32> to vector<2x32xf32>
    %644 = vector.shape_cast %615 : vector<2x32xf32> to vector<1x2x32xf32>
    tpu.vector_store %arg6[%641, %c0_159, %c0_160], %644 {strides = array<i32>} : memref<10x2x64xf32, #tpu.memory_space<vmem>>, vector<1x2x32xf32>,
    %645 = arith.index_cast %578 : i32 to index
    %c0_161 = arith.constant 0 : index
    %c32_162 = arith.constant 32 : index
    %646 = vector.load %arg6[%645, %c0_161, %c32_162] : memref<10x2x64xf32, #tpu.memory_space<vmem>>, vector<1x2x32xf32>
    %647 = vector.shape_cast %646 : vector<1x2x32xf32> to vector<2x32xf32>
    %648 = vector.shape_cast %640 : vector<2x32xf32> to vector<1x2x32xf32>
    tpu.vector_store %arg6[%645, %c0_161, %c32_162], %648 {strides = array<i32>} : memref<10x2x64xf32, #tpu.memory_space<vmem>>, vector<1x2x32xf32>,
    %c9_i32_163 = arith.constant 9 : i32
    %c9_i32_164 = arith.constant 9 : i32
    %649 = arith.subi %c9_i32_164, %c9_i32_163 : i32
    %c2_i32_165 = arith.constant 2 : i32
    %650 = arith.muli %c9_i32_163, %c2_i32_165 : i32
    %651 = arith.index_cast %650 : i32 to index
    %c0_166 = arith.constant 0 : index
    %652 = vector.load %arg7[%651, %c0_166] : memref<20x256xf32, #tpu.memory_space<vmem>>, vector<2x256xf32>
    %c2_i32_167 = arith.constant 2 : i32
    %653 = arith.muli %649, %c2_i32_167 : i32
    %654 = arith.index_cast %653 : i32 to index
    %c0_168 = arith.constant 0 : index
    %655 = vector.load %arg7[%654, %c0_168] : memref<20x256xf32, #tpu.memory_space<vmem>>, vector<2x256xf32>
    %656 = vector.extract_strided_slice %652 {offsets = [0, 0], sizes = [2, 128], strides = [1, 1]} : vector<2x256xf32> to vector<2x128xf32>
    %cst_169 = arith.constant dense<0.000000e+00> : vector<2x128xf32>
    %657 = tpu.matmul %615, %7, %cst_169 {dimension_numbers = #tpu.dot_dimension_numbers<[1], [0], [0], [1], [0, 0, 1, 1], [], []>} : vector<2x32xf32>, vector<32x128xf32>, vector<2x128xf32> -> vector<2x128xf32>
    %658 = arith.addf %656, %657 : vector<2x128xf32>
    %659 = vector.extract_strided_slice %655 {offsets = [0, 128], sizes = [2, 128], strides = [1, 1]} : vector<2x256xf32> to vector<2x128xf32>
    %cst_170 = arith.constant dense<0.000000e+00> : vector<2x128xf32>
    %660 = tpu.matmul %640, %8, %cst_170 {dimension_numbers = #tpu.dot_dimension_numbers<[1], [0], [0], [1], [0, 0, 1, 1], [], []>} : vector<2x32xf32>, vector<32x128xf32>, vector<2x128xf32> -> vector<2x128xf32>
    %661 = arith.addf %659, %660 : vector<2x128xf32>
    %662 = vector.extract_strided_slice %658 {offsets = [0, 0], sizes = [2, 32], strides = [1, 1]} : vector<2x128xf32> to vector<2x32xf32>
    %663 = arith.negf %662 : vector<2x32xf32>
    %664 = math.exp %663 : vector<2x32xf32>
    %cst_171 = arith.constant 1.000000e+00 : f32
    %665 = vector.broadcast %cst_171 : f32 to vector<2x32xf32>
    %666 = arith.addf %665, %664 : vector<2x32xf32>
    %667 = arith.divf %665, %666 : vector<2x32xf32>
    %668 = vector.extract_strided_slice %658 {offsets = [0, 32], sizes = [2, 32], strides = [1, 1]} : vector<2x128xf32> to vector<2x32xf32>
    %669 = arith.negf %668 : vector<2x32xf32>
    %670 = math.exp %669 : vector<2x32xf32>
    %cst_172 = arith.constant 1.000000e+00 : f32
    %671 = vector.broadcast %cst_172 : f32 to vector<2x32xf32>
    %672 = arith.addf %671, %670 : vector<2x32xf32>
    %673 = arith.divf %671, %672 : vector<2x32xf32>
    %674 = vector.extract_strided_slice %658 {offsets = [0, 64], sizes = [2, 32], strides = [1, 1]} : vector<2x128xf32> to vector<2x32xf32>
    %675 = math.tanh %674 : vector<2x32xf32>
    %676 = vector.extract_strided_slice %658 {offsets = [0, 96], sizes = [2, 32], strides = [1, 1]} : vector<2x128xf32> to vector<2x32xf32>
    %677 = arith.negf %676 : vector<2x32xf32>
    %678 = math.exp %677 : vector<2x32xf32>
    %cst_173 = arith.constant 1.000000e+00 : f32
    %679 = vector.broadcast %cst_173 : f32 to vector<2x32xf32>
    %680 = arith.addf %679, %678 : vector<2x32xf32>
    %681 = arith.divf %679, %680 : vector<2x32xf32>
    %682 = arith.mulf %673, %613 : vector<2x32xf32>
    %683 = arith.mulf %667, %675 : vector<2x32xf32>
    %684 = arith.addf %682, %683 : vector<2x32xf32>
    %685 = math.tanh %684 : vector<2x32xf32>
    %686 = arith.mulf %681, %685 : vector<2x32xf32>
    %687 = vector.extract_strided_slice %661 {offsets = [0, 0], sizes = [2, 32], strides = [1, 1]} : vector<2x128xf32> to vector<2x32xf32>
    %688 = arith.negf %687 : vector<2x32xf32>
    %689 = math.exp %688 : vector<2x32xf32>
    %cst_174 = arith.constant 1.000000e+00 : f32
    %690 = vector.broadcast %cst_174 : f32 to vector<2x32xf32>
    %691 = arith.addf %690, %689 : vector<2x32xf32>
    %692 = arith.divf %690, %691 : vector<2x32xf32>
    %693 = vector.extract_strided_slice %661 {offsets = [0, 32], sizes = [2, 32], strides = [1, 1]} : vector<2x128xf32> to vector<2x32xf32>
    %694 = arith.negf %693 : vector<2x32xf32>
    %695 = math.exp %694 : vector<2x32xf32>
    %cst_175 = arith.constant 1.000000e+00 : f32
    %696 = vector.broadcast %cst_175 : f32 to vector<2x32xf32>
    %697 = arith.addf %696, %695 : vector<2x32xf32>
    %698 = arith.divf %696, %697 : vector<2x32xf32>
    %699 = vector.extract_strided_slice %661 {offsets = [0, 64], sizes = [2, 32], strides = [1, 1]} : vector<2x128xf32> to vector<2x32xf32>
    %700 = math.tanh %699 : vector<2x32xf32>
    %701 = vector.extract_strided_slice %661 {offsets = [0, 96], sizes = [2, 32], strides = [1, 1]} : vector<2x128xf32> to vector<2x32xf32>
    %702 = arith.negf %701 : vector<2x32xf32>
    %703 = math.exp %702 : vector<2x32xf32>
    %cst_176 = arith.constant 1.000000e+00 : f32
    %704 = vector.broadcast %cst_176 : f32 to vector<2x32xf32>
    %705 = arith.addf %704, %703 : vector<2x32xf32>
    %706 = arith.divf %704, %705 : vector<2x32xf32>
    %707 = arith.mulf %698, %638 : vector<2x32xf32>
    %708 = arith.mulf %692, %700 : vector<2x32xf32>
    %709 = arith.addf %707, %708 : vector<2x32xf32>
    %710 = math.tanh %709 : vector<2x32xf32>
    %711 = arith.mulf %706, %710 : vector<2x32xf32>
    %712 = arith.index_cast %c9_i32_163 : i32 to index
    %c0_177 = arith.constant 0 : index
    %c0_178 = arith.constant 0 : index
    %713 = vector.load %arg6[%712, %c0_177, %c0_178] : memref<10x2x64xf32, #tpu.memory_space<vmem>>, vector<1x2x32xf32>
    %714 = vector.shape_cast %713 : vector<1x2x32xf32> to vector<2x32xf32>
    %715 = vector.shape_cast %686 : vector<2x32xf32> to vector<1x2x32xf32>
    tpu.vector_store %arg6[%712, %c0_177, %c0_178], %715 {strides = array<i32>} : memref<10x2x64xf32, #tpu.memory_space<vmem>>, vector<1x2x32xf32>,
    %716 = arith.index_cast %649 : i32 to index
    %c0_179 = arith.constant 0 : index
    %c32_180 = arith.constant 32 : index
    %717 = vector.load %arg6[%716, %c0_179, %c32_180] : memref<10x2x64xf32, #tpu.memory_space<vmem>>, vector<1x2x32xf32>
    %718 = vector.shape_cast %717 : vector<1x2x32xf32> to vector<2x32xf32>
    %719 = vector.shape_cast %711 : vector<2x32xf32> to vector<1x2x32xf32>
    tpu.vector_store %arg6[%716, %c0_179, %c32_180], %719 {strides = array<i32>} : memref<10x2x64xf32, #tpu.memory_space<vmem>>, vector<1x2x32xf32>,
    %c10_i32 = arith.constant 10 : i32
    return
  }
  func.func @transform_0(%arg0: i32) -> (i32, i32) {
    %c0_i32 = arith.constant 0 : i32
    %c0_i32_0 = arith.constant 0 : i32
    %c0_i32_1 = arith.constant 0 : i32
    return %c0_i32, %c0_i32_0 : i32, i32
  }
  func.func @transform_1(%arg0: i32) -> (i32, i32) {
    %c0_i32 = arith.constant 0 : i32
    %c0_i32_0 = arith.constant 0 : i32
    %c0_i32_1 = arith.constant 0 : i32
    return %c0_i32, %c0_i32_0 : i32, i32
  }
  func.func @transform_2(%arg0: i32) -> (i32, i32) {
    %c0_i32 = arith.constant 0 : i32
    %c0_i32_0 = arith.constant 0 : i32
    %c0_i32_1 = arith.constant 0 : i32
    return %c0_i32, %c0_i32_0 : i32, i32
  }
  func.func @transform_3(%arg0: i32) -> (i32, i32) {
    %c0_i32 = arith.constant 0 : i32
    %c0_i32_0 = arith.constant 0 : i32
    %c0_i32_1 = arith.constant 0 : i32
    return %c0_i32, %c0_i32_0 : i32, i32
  }
  func.func @transform_4(%arg0: i32) -> (i32, i32) {
    %c0_i32 = arith.constant 0 : i32
    %c0_i32_0 = arith.constant 0 : i32
    %c0_i32_1 = arith.constant 0 : i32
    return %c0_i32, %c0_i32_0 : i32, i32
  }
  func.func @transform_5(%arg0: i32) -> (i32, i32, i32) {
    %c0_i32 = arith.constant 0 : i32
    %c0_i32_0 = arith.constant 0 : i32
    %c0_i32_1 = arith.constant 0 : i32
    %c0_i32_2 = arith.constant 0 : i32
    return %c0_i32, %c0_i32_0, %c0_i32_1 : i32, i32, i32
  }
}

</mosaic_0001>

<llo_original>
// kernel: seq2seq_forward.5
$region0: #{seq2seq_forward.5}
  #allocation0 [shape = 'u32[]', space=smem, size = 0x4, offset = 0x4, fixed_abs, tag = 'smem constant byte address 0x4 - core index']
  #allocation1 [shape = 'u32[144,128]{1,0:T(1,128)}', space=vmem, size = 0x12000, scoped, tag = 'internal scratch']
  %s0 = inlined_call_operand.vmem [shape: f32[2,8,64], index: 0, kind: input, shape index: {}]
  %s1 = inlined_call_operand.vmem [shape: f32[2,10,64], index: 1, kind: input, shape index: {}]
  %s2 = inlined_call_operand.vmem [shape: f32[128,32], index: 2, kind: input, shape index: {}]
  %s3 = inlined_call_operand.vmem [shape: f32[1,32], index: 3, kind: input, shape index: {}]
  %s4 = inlined_call_operand.vmem [shape: f32[32,40], index: 4, kind: input, shape index: {}]
  %s5 = inlined_call_operand.vmem [shape: f32[1,40], index: 5, kind: input, shape index: {}]
  %s6 = inlined_call_operand.vmem [shape: f32[2,8,40], index: 6, kind: output, shape index: {}]
  %s7 = sld [smem:[#allocation0]]
  $region34: #{seq2seq_forward.5} parent=0
    _
  %s9 = ssub.s32 1, %s7
  %s10 = scalar_select 0, %s9, %s7
  // Predicated region
  $region2: #{seq2seq_forward.5} parent=0 // pred_check
    _
  $region3: #{seq2seq_forward.5} parent=0 // pred_check_branch
    %12 = sbr.rel (0) target = $region5
  $region4: #{seq2seq_forward.5} parent=0 // pred_region
    _
  $region5: #{seq2seq_forward.5} parent=0 // pred_fallthru
    _
  // Predicated region
  $region6: #{seq2seq_forward.5} parent=0 // pred_check
    _
  $region7: #{seq2seq_forward.5} parent=0 // pred_check_branch
    %14 = sbr.rel (0) target = $region9
  $region8: #{seq2seq_forward.5} parent=0 // pred_region
    _
  $region9: #{seq2seq_forward.5} parent=0 // pred_fallthru
    _
  // Predicated region
  $region10: #{seq2seq_forward.5} parent=0 // pred_check
    _
  $region11: #{seq2seq_forward.5} parent=0 // pred_check_branch
    %16 = sbr.rel (0) target = $region13
  $region12: #{seq2seq_forward.5} parent=0 // pred_region
    _
  $region13: #{seq2seq_forward.5} parent=0 // pred_fallthru
    _
  // Predicated region
  $region14: #{seq2seq_forward.5} parent=0 // pred_check
    _
  $region15: #{seq2seq_forward.5} parent=0 // pred_check_branch
    %18 = sbr.rel (0) target = $region17
  $region16: #{seq2seq_forward.5} parent=0 // pred_region
    _
  $region17: #{seq2seq_forward.5} parent=0 // pred_fallthru
    _
  // Predicated region
  $region18: #{seq2seq_forward.5} parent=0 // pred_check
    _
  $region19: #{seq2seq_forward.5} parent=0 // pred_check_branch
    %20 = sbr.rel (0) target = $region21
  $region20: #{seq2seq_forward.5} parent=0 // pred_region
    _
  $region21: #{seq2seq_forward.5} parent=0 // pred_fallthru
    _
  // Predicated region
  $region22: #{seq2seq_forward.5} parent=0 // pred_check
    _
  $region23: #{seq2seq_forward.5} parent=0 // pred_check_branch
    %22 = sbr.rel (0) target = $region25
  $region24: #{seq2seq_forward.5} parent=0 // pred_region
    _
  $region25: #{seq2seq_forward.5} parent=0 // pred_fallthru
    _
  %v23 = vld [vmem:[%s0] sm:$0xff]
  %v24 = vld [vmem:[%s0 + $0x8] sm:$0xff]
  %v25 = vld [vmem:[%s1] sm:$0xff]
  %v26 = vld [vmem:[%s1 + $0x8] sm:$0x3]
  %v27 = vld [vmem:[%s1 + $0x10] sm:$0xff]
  %v28 = vld [vmem:[%s1 + $0x18] sm:$0x3]
  %vm29 = vcmask 523264
  %v31 = vsel %vm29, %v23, 0
  %v34 = vsel %vm29, %v25, 0
  %v37 = vsel %vm29, %v26, 0
  %39 = vmatprep.subr.mxu0 0.0
  %40 = vmatpush1.xpose.msra.mxu0 0.0
  %41 = vmatprep.subr.mxu0 0.0
  %42 = vmatpush1.xpose.msra.mxu0 0.0
  %43 = vmatprep.subr.mxu0 0.0
  %44 = vmatpush1.xpose.msra.mxu0 0.0
  %45 = vmatprep.subr.mxu0 0.0
  %46 = vmatpush1.xpose.msra.mxu0 0.0
  %47 = vmatprep.subr.mxu0 0.0
  %48 = vmatpush1.xpose.msra.mxu0 0.0
  %49 = vmatprep.subr.mxu0 0.0
  %50 = vmatpush1.xpose.msra.mxu0 0.0
  %51 = vmatprep.subr.mxu0 0.0
  %52 = vmatpush1.xpose.msra.mxu0 0.0
  %53 = vmatprep.subr.mxu0 0.0
  %54 = vmatpush1.xpose.msra.mxu0 0.0
  %55 = vmatprep.subr.mxu0 0.0
  %56 = vmatpush1.xpose.msra.mxu0 0.0
  %57 = vmatprep.subr.mxu0 0.0
  %58 = vmatpush1.xpose.msra.mxu0 0.0
  %59 = vmatprep.subr.mxu0 0.0
  %60 = vmatpush1.xpose.msra.mxu0 0.0
  %61 = vmatprep.subr.mxu0 0.0
  %62 = vmatpush1.xpose.msra.mxu0 0.0
  %63 = vmatprep.subr.mxu0 0.0
  %64 = vmatpush1.xpose.msra.mxu0 0.0
  %65 = vmatprep.subr.mxu0 0.0
  %66 = vmatpush1.xpose.msra.mxu0 0.0
  %67 = vmatprep.subr.mxu0 0.0
  %68 = vmatpush1.xpose.msra.mxu0 %v37
  %69 = vmatprep.subr.mxu0 0.0
  %70 = vmatpush1.xpose.msra.mxu0 %v34
  %71 = vmatprep.subr.mxu0 0.0
  %72 = vmatpush2.xpose.msra.mxu0 0.0
  %73 = vmatprep.subr.mxu0 0.0
  %74 = vmatpush2.xpose.msra.mxu0 0.0
  %75 = vmatprep.subr.mxu0 0.0
  %76 = vmatpush2.xpose.msra.mxu0 0.0
  %77 = vmatprep.subr.mxu0 0.0
  %78 = vmatpush2.xpose.msra.mxu0 0.0
  %79 = vmatprep.subr.mxu0 0.0
  %80 = vmatpush2.xpose.msra.mxu0 0.0
  %81 = vmatprep.subr.mxu0 0.0
  %82 = vmatpush2.xpose.msra.mxu0 0.0
  %83 = vmatprep.subr.mxu0 0.0
  %84 = vmatpush2.xpose.msra.mxu0 0.0
  %85 = vmatprep.subr.mxu0 0.0
  %86 = vmatpush2.xpose.msra.mxu0 0.0
  %87 = vmatprep.subr.mxu0 0.0
  %88 = vmatpush2.xpose.msra.mxu0 0.0
  %89 = vmatprep.subr.mxu0 0.0
  %90 = vmatpush2.xpose.msra.mxu0 0.0
  %91 = vmatprep.subr.mxu0 0.0
  %92 = vmatpush2.xpose.msra.mxu0 0.0
  %93 = vmatprep.subr.mxu0 0.0
  %94 = vmatpush2.xpose.msra.mxu0 0.0
  %95 = vmatprep.subr.mxu0 0.0
  %96 = vmatpush2.xpose.msra.mxu0 0.0
  %97 = vmatprep.subr.mxu0 0.0
  %98 = vmatpush2.xpose.msra.mxu0 0.0
  %99 = vmatprep.subr.mxu0 0.0
  %100 = vmatpush2.xpose.msra.mxu0 0.0
  %101 = vmatprep.subr.mxu0 0.0
  %102 = vmatpush2.xpose.msra.mxu0 0.0
  %103 = vmatprep.mubr.f32.mxu0 0.0
  %104 = vmatmul.mubr.f32.gmra.mxu0 %v31
  %v105 = vpop.f32.mrf.mxu0
  %v106 = vadd.f32 0.0, %v105
  %v107 = vpop.f32.mrf.mxu0
  %108 = vdwg.mxu0
  %v110 = vsel %vm29, %v24, 0
  %v113 = vsel %vm29, %v27, 0
  %v116 = vsel %vm29, %v28, 0
  %118 = vmatprep.subr.mxu0 0.0
  %119 = vmatpush1.xpose.msra.mxu0 0.0
  %120 = vmatprep.subr.mxu0 0.0
  %121 = vmatpush1.xpose.msra.mxu0 0.0
  %122 = vmatprep.subr.mxu0 0.0
  %123 = vmatpush1.xpose.msra.mxu0 0.0
  %124 = vmatprep.subr.mxu0 0.0
  %125 = vmatpush1.xpose.msra.mxu0 0.0
  %126 = vmatprep.subr.mxu0 0.0
  %127 = vmatpush1.xpose.msra.mxu0 0.0
  %128 = vmatprep.subr.mxu0 0.0
  %129 = vmatpush1.xpose.msra.mxu0 0.0
  %130 = vmatprep.subr.mxu0 0.0
  %131 = vmatpush1.xpose.msra.mxu0 0.0
  %132 = vmatprep.subr.mxu0 0.0
  %133 = vmatpush1.xpose.msra.mxu0 0.0
  %134 = vmatprep.subr.mxu0 0.0
  %135 = vmatpush1.xpose.msra.mxu0 0.0
  %136 = vmatprep.subr.mxu0 0.0
  %137 = vmatpush1.xpose.msra.mxu0 0.0
  %138 = vmatprep.subr.mxu0 0.0
  %139 = vmatpush1.xpose.msra.mxu0 0.0
  %140 = vmatprep.subr.mxu0 0.0
  %141 = vmatpush1.xpose.msra.mxu0 0.0
  %142 = vmatprep.subr.mxu0 0.0
  %143 = vmatpush1.xpose.msra.mxu0 0.0
  %144 = vmatprep.subr.mxu0 0.0
  %145 = vmatpush1.xpose.msra.mxu0 0.0
  %146 = vmatprep.subr.mxu0 0.0
  %147 = vmatpush1.xpose.msra.mxu0 %v116
  %148 = vmatprep.subr.mxu0 0.0
  %149 = vmatpush1.xpose.msra.mxu0 %v113
  %150 = vmatprep.subr.mxu0 0.0
  %151 = vmatpush2.xpose.msra.mxu0 0.0
  %152 = vmatprep.subr.mxu0 0.0
  %153 = vmatpush2.xpose.msra.mxu0 0.0
  %154 = vmatprep.subr.mxu0 0.0
  %155 = vmatpush2.xpose.msra.mxu0 0.0
  %156 = vmatprep.subr.mxu0 0.0
  %157 = vmatpush2.xpose.msra.mxu0 0.0
  %158 = vmatprep.subr.mxu0 0.0
  %159 = vmatpush2.xpose.msra.mxu0 0.0
  %160 = vmatprep.subr.mxu0 0.0
  %161 = vmatpush2.xpose.msra.mxu0 0.0
  %162 = vmatprep.subr.mxu0 0.0
  %163 = vmatpush2.xpose.msra.mxu0 0.0
  %164 = vmatprep.subr.mxu0 0.0
  %165 = vmatpush2.xpose.msra.mxu0 0.0
  %166 = vmatprep.subr.mxu0 0.0
  %167 = vmatpush2.xpose.msra.mxu0 0.0
  %168 = vmatprep.subr.mxu0 0.0
  %169 = vmatpush2.xpose.msra.mxu0 0.0
  %170 = vmatprep.subr.mxu0 0.0
  %171 = vmatpush2.xpose.msra.mxu0 0.0
  %172 = vmatprep.subr.mxu0 0.0
  %173 = vmatpush2.xpose.msra.mxu0 0.0
  %174 = vmatprep.subr.mxu0 0.0
  %175 = vmatpush2.xpose.msra.mxu0 0.0
  %176 = vmatprep.subr.mxu0 0.0
  %177 = vmatpush2.xpose.msra.mxu0 0.0
  %178 = vmatprep.subr.mxu0 0.0
  %179 = vmatpush2.xpose.msra.mxu0 0.0
  %180 = vmatprep.subr.mxu0 0.0
  %181 = vmatpush2.xpose.msra.mxu0 0.0
  %182 = vmatprep.mubr.f32.mxu0 0.0
  %183 = vmatmul.mubr.f32.gmra.mxu0 %v110
  %v184 = vpop.f32.mrf.mxu0
  %v185 = vadd.f32 0.0, %v184
  %v186 = vpop.f32.mrf.mxu0
  %187 = vdwg.mxu0
  %vm188 = vcmask 80896
  %v189 = vsel %vm188, %v106, -inf
  %190 = vmax.xlane.f32.xlu0 %v189
  %v191 = vpop.xlane.xlu0 %190
  %v192 = vsel %vm188, %v185, -inf
  %193 = vmax.xlane.f32.xlu0 %v192
  %v194 = vpop.xlane.xlu0 %193
  %v195 = vsub.f32 %v106, %v191
  %v196 = vsub.f32 %v185, %v194
  %v197 = vmul.f32 %v195, 1.442695
  %v198 = vpow.pop %v197
  %v199 = vmul.f32 %v196, 1.442695
  %v200 = vpow.pop %v199
  %v201 = vsel %vm188, %v198, 0.0
  %202 = vadd.xlane.f32.xlu0 %v201
  %v203 = vpop.xlane.xlu0 %202
  %v204 = vsel %vm188, %v200, 0.0
  %205 = vadd.xlane.f32.xlu0 %v204
  %v206 = vpop.xlane.xlu0 %205
  %v207 = vrcp.pop %v203
  %v208 = vmul.f32 %v198, %v207
  %v209 = vrcp.pop %v206
  %v210 = vmul.f32 %v200, %v209
  %v212 = vsel %vm188, %v208, 0
  %vm214 = vcmask 1041408
  %v215 = vsel %vm214, %v26, 0
  %217 = vmatprep.subr.mxu0 0.0
  %218 = vmatpush1.msra.mxu0 0.0
  %219 = vmatprep.subr.mxu0 0.0
  %220 = vmatpush1.msra.mxu0 0.0
  %221 = vmatprep.subr.mxu0 0.0
  %222 = vmatpush1.msra.mxu0 0.0
  %223 = vmatprep.subr.mxu0 0.0
  %224 = vmatpush1.msra.mxu0 0.0
  %225 = vmatprep.subr.mxu0 0.0
  %226 = vmatpush1.msra.mxu0 0.0
  %227 = vmatprep.subr.mxu0 0.0
  %228 = vmatpush1.msra.mxu0 0.0
  %229 = vmatprep.subr.mxu0 0.0
  %230 = vmatpush1.msra.mxu0 0.0
  %231 = vmatprep.subr.mxu0 0.0
  %232 = vmatpush1.msra.mxu0 0.0
  %233 = vmatprep.subr.mxu0 0.0
  %234 = vmatpush1.msra.mxu0 0.0
  %235 = vmatprep.subr.mxu0 0.0
  %236 = vmatpush1.msra.mxu0 0.0
  %237 = vmatprep.subr.mxu0 0.0
  %238 = vmatpush1.msra.mxu0 0.0
  %239 = vmatprep.subr.mxu0 0.0
  %240 = vmatpush1.msra.mxu0 0.0
  %241 = vmatprep.subr.mxu0 0.0
  %242 = vmatpush1.msra.mxu0 0.0
  %243 = vmatprep.subr.mxu0 0.0
  %244 = vmatpush1.msra.mxu0 0.0
  %245 = vmatprep.subr.mxu0 0.0
  %246 = vmatpush1.msra.mxu0 %v215
  %247 = vmatprep.subr.mxu0 0.0
  %248 = vmatpush1.msra.mxu0 %v25
  %249 = vmatprep.subr.mxu0 0.0
  %250 = vmatpush2.msra.mxu0 0.0
  %251 = vmatprep.subr.mxu0 0.0
  %252 = vmatpush2.msra.mxu0 0.0
  %253 = vmatprep.subr.mxu0 0.0
  %254 = vmatpush2.msra.mxu0 0.0
  %255 = vmatprep.subr.mxu0 0.0
  %256 = vmatpush2.msra.mxu0 0.0
  %257 = vmatprep.subr.mxu0 0.0
  %258 = vmatpush2.msra.mxu0 0.0
  %259 = vmatprep.subr.mxu0 0.0
  %260 = vmatpush2.msra.mxu0 0.0
  %261 = vmatprep.subr.mxu0 0.0
  %262 = vmatpush2.msra.mxu0 0.0
  %263 = vmatprep.subr.mxu0 0.0
  %264 = vmatpush2.msra.mxu0 0.0
  %265 = vmatprep.subr.mxu0 0.0
  %266 = vmatpush2.msra.mxu0 0.0
  %267 = vmatprep.subr.mxu0 0.0
  %268 = vmatpush2.msra.mxu0 0.0
  %269 = vmatprep.subr.mxu0 0.0
  %270 = vmatpush2.msra.mxu0 0.0
  %271 = vmatprep.subr.mxu0 0.0
  %272 = vmatpush2.msra.mxu0 0.0
  %273 = vmatprep.subr.mxu0 0.0
  %274 = vmatpush2.msra.mxu0 0.0
  %275 = vmatprep.subr.mxu0 0.0
  %276 = vmatpush2.msra.mxu0 0.0
  %277 = vmatprep.subr.mxu0 0.0
  %278 = vmatpush2.msra.mxu0 0.0
  %279 = vmatprep.subr.mxu0 0.0
  %280 = vmatpush2.msra.mxu0 0.0
  %281 = vmatprep.mubr.f32.mxu0 0.0
  %282 = vmatmul.mubr.f32.gmra.mxu0 %v212
  %v283 = vpop.f32.mrf.mxu0
  %v284 = vadd.f32 0.0, %v283
  %v285 = vpop.f32.mrf.mxu0
  %286 = vdwg.mxu0
  %v288 = vsel %vm188, %v210, 0
  %v290 = vsel %vm214, %v28, 0
  %292 = vmatprep.subr.mxu0 0.0
  %293 = vmatpush1.msra.mxu0 0.0
  %294 = vmatprep.subr.mxu0 0.0
  %295 = vmatpush1.msra.mxu0 0.0
  %296 = vmatprep.subr.mxu0 0.0
  %297 = vmatpush1.msra.mxu0 0.0
  %298 = vmatprep.subr.mxu0 0.0
  %299 = vmatpush1.msra.mxu0 0.0
  %300 = vmatprep.subr.mxu0 0.0
  %301 = vmatpush1.msra.mxu0 0.0
  %302 = vmatprep.subr.mxu0 0.0
  %303 = vmatpush1.msra.mxu0 0.0
  %304 = vmatprep.subr.mxu0 0.0
  %305 = vmatpush1.msra.mxu0 0.0
  %306 = vmatprep.subr.mxu0 0.0
  %307 = vmatpush1.msra.mxu0 0.0
  %308 = vmatprep.subr.mxu0 0.0
  %309 = vmatpush1.msra.mxu0 0.0
  %310 = vmatprep.subr.mxu0 0.0
  %311 = vmatpush1.msra.mxu0 0.0
  %312 = vmatprep.subr.mxu0 0.0
  %313 = vmatpush1.msra.mxu0 0.0
  %314 = vmatprep.subr.mxu0 0.0
  %315 = vmatpush1.msra.mxu0 0.0
  %316 = vmatprep.subr.mxu0 0.0
  %317 = vmatpush1.msra.mxu0 0.0
  %318 = vmatprep.subr.mxu0 0.0
  %319 = vmatpush1.msra.mxu0 0.0
  %320 = vmatprep.subr.mxu0 0.0
  %321 = vmatpush1.msra.mxu0 %v290
  %322 = vmatprep.subr.mxu0 0.0
  %323 = vmatpush1.msra.mxu0 %v27
  %324 = vmatprep.subr.mxu0 0.0
  %325 = vmatpush2.msra.mxu0 0.0
  %326 = vmatprep.subr.mxu0 0.0
  %327 = vmatpush2.msra.mxu0 0.0
  %328 = vmatprep.subr.mxu0 0.0
  %329 = vmatpush2.msra.mxu0 0.0
  %330 = vmatprep.subr.mxu0 0.0
  %331 = vmatpush2.msra.mxu0 0.0
  %332 = vmatprep.subr.mxu0 0.0
  %333 = vmatpush2.msra.mxu0 0.0
  %334 = vmatprep.subr.mxu0 0.0
  %335 = vmatpush2.msra.mxu0 0.0
  %336 = vmatprep.subr.mxu0 0.0
  %337 = vmatpush2.msra.mxu0 0.0
  %338 = vmatprep.subr.mxu0 0.0
  %339 = vmatpush2.msra.mxu0 0.0
  %340 = vmatprep.subr.mxu0 0.0
  %341 = vmatpush2.msra.mxu0 0.0
  %342 = vmatprep.subr.mxu0 0.0
  %343 = vmatpush2.msra.mxu0 0.0
  %344 = vmatprep.subr.mxu0 0.0
  %345 = vmatpush2.msra.mxu0 0.0
  %346 = vmatprep.subr.mxu0 0.0
  %347 = vmatpush2.msra.mxu0 0.0
  %348 = vmatprep.subr.mxu0 0.0
  %349 = vmatpush2.msra.mxu0 0.0
  %350 = vmatprep.subr.mxu0 0.0
  %351 = vmatpush2.msra.mxu0 0.0
  %352 = vmatprep.subr.mxu0 0.0
  %353 = vmatpush2.msra.mxu0 0.0
  %354 = vmatprep.subr.mxu0 0.0
  %355 = vmatpush2.msra.mxu0 0.0
  %356 = vmatprep.mubr.f32.mxu0 0.0
  %357 = vmatmul.mubr.f32.gmra.mxu0 %v288
  %v358 = vpop.f32.mrf.mxu0
  %v359 = vadd.f32 0.0, %v358
  %v360 = vpop.f32.mrf.mxu0
  %361 = vdwg.mxu0
  %v362 = vld [vmem:[%s2] sm:$0xff]
  %v363 = vld [vmem:[%s2 + $0x8] sm:$0xff]
  %v364 = vld [vmem:[%s2 + $0x10] sm:$0xff]
  %v365 = vld [vmem:[%s2 + $0x18] sm:$0xff]
  %v366 = vld [vmem:[%s2 + $0x20] sm:$0xff]
  %v367 = vld [vmem:[%s2 + $0x28] sm:$0xff]
  %v368 = vld [vmem:[%s2 + $0x30] sm:$0xff]
  %v369 = vld [vmem:[%s2 + $0x38] sm:$0xff]
  %v370 = vld [vmem:[%s2 + $0x40] sm:$0xff]
  %v371 = vld [vmem:[%s2 + $0x48] sm:$0xff]
  %v372 = vld [vmem:[%s2 + $0x50] sm:$0xff]
  %v373 = vld [vmem:[%s2 + $0x58] sm:$0xff]
  %v374 = vld [vmem:[%s2 + $0x60] sm:$0xff]
  %v375 = vld [vmem:[%s2 + $0x68] sm:$0xff]
  %v376 = vld [vmem:[%s2 + $0x70] sm:$0xff]
  %v377 = vld [vmem:[%s2 + $0x78] sm:$0xff]
  %378 = vmatprep.subr.mxu0 0.0
  %379 = vmatpush1.msra.mxu0 0.0
  %380 = vmatprep.subr.mxu0 0.0
  %381 = vmatpush1.msra.mxu0 0.0
  %382 = vmatprep.subr.mxu0 0.0
  %383 = vmatpush1.msra.mxu0 0.0
  %384 = vmatprep.subr.mxu0 0.0
  %385 = vmatpush1.msra.mxu0 0.0
  %386 = vmatprep.subr.mxu0 0.0
  %387 = vmatpush1.msra.mxu0 0.0
  %388 = vmatprep.subr.mxu0 0.0
  %389 = vmatpush1.msra.mxu0 0.0
  %390 = vmatprep.subr.mxu0 0.0
  %391 = vmatpush1.msra.mxu0 0.0
  %392 = vmatprep.subr.mxu0 0.0
  %393 = vmatpush1.msra.mxu0 0.0
  %394 = vmatprep.subr.mxu0 0.0
  %395 = vmatpush1.msra.mxu0 %v377
  %396 = vmatprep.subr.mxu0 0.0
  %397 = vmatpush1.msra.mxu0 %v376
  %398 = vmatprep.subr.mxu0 0.0
  %399 = vmatpush1.msra.mxu0 %v375
  %400 = vmatprep.subr.mxu0 0.0
  %401 = vmatpush1.msra.mxu0 %v374
  %402 = vmatprep.subr.mxu0 0.0
  %403 = vmatpush1.msra.mxu0 %v373
  %404 = vmatprep.subr.mxu0 0.0
  %405 = vmatpush1.msra.mxu0 %v372
  %406 = vmatprep.subr.mxu0 0.0
  %407 = vmatpush1.msra.mxu0 %v371
  %408 = vmatprep.subr.mxu0 0.0
  %409 = vmatpush1.msra.mxu0 %v370
  %410 = vmatprep.subr.mxu0 0.0
  %411 = vmatpush2.msra.mxu0 0.0
  %412 = vmatprep.subr.mxu0 0.0
  %413 = vmatpush2.msra.mxu0 0.0
  %414 = vmatprep.subr.mxu0 0.0
  %415 = vmatpush2.msra.mxu0 0.0
  %416 = vmatprep.subr.mxu0 0.0
  %417 = vmatpush2.msra.mxu0 0.0
  %418 = vmatprep.subr.mxu0 0.0
  %419 = vmatpush2.msra.mxu0 0.0
  %420 = vmatprep.subr.mxu0 0.0
  %421 = vmatpush2.msra.mxu0 0.0
  %422 = vmatprep.subr.mxu0 0.0
  %423 = vmatpush2.msra.mxu0 0.0
  %424 = vmatprep.subr.mxu0 0.0
  %425 = vmatpush2.msra.mxu0 0.0
  %426 = vmatprep.subr.mxu0 0.0
  %427 = vmatpush2.msra.mxu0 0.0
  %428 = vmatprep.subr.mxu0 0.0
  %429 = vmatpush2.msra.mxu0 0.0
  %430 = vmatprep.subr.mxu0 0.0
  %431 = vmatpush2.msra.mxu0 0.0
  %432 = vmatprep.subr.mxu0 0.0
  %433 = vmatpush2.msra.mxu0 0.0
  %434 = vmatprep.subr.mxu0 0.0
  %435 = vmatpush2.msra.mxu0 0.0
  %436 = vmatprep.subr.mxu0 0.0
  %437 = vmatpush2.msra.mxu0 0.0
  %438 = vmatprep.subr.mxu0 0.0
  %439 = vmatpush2.msra.mxu0 0.0
  %440 = vmatprep.subr.mxu0 0.0
  %441 = vmatpush2.msra.mxu0 0.0
  %442 = vmatprep.mubr.f32.mxu0 0.0
  %443 = vmatmul.mubr.f32.gmra.mxu0 %v31
  %v444 = vpop.f32.mrf.mxu0
  %v445 = vadd.f32 0.0, %v444
  %v446 = vpop.f32.mrf.mxu0
  %447 = vmatprep.mubr.f32.mxu0 0.0
  %448 = vmatmul.mubr.f32.gmra.mxu0 %v110
  %v449 = vpop.f32.mrf.mxu0
  %v450 = vadd.f32 0.0, %v449
  %v451 = vpop.f32.mrf.mxu0
  %452 = vdwg.mxu0
  %v454 = vsel %vm29, %v284, 0
  %v457 = vsel %vm29, %v359, 0
  %459 = vmatprep.subr.mxu0 0.0
  %460 = vmatpush1.msra.mxu0 0.0
  %461 = vmatprep.subr.mxu0 0.0
  %462 = vmatpush1.msra.mxu0 0.0
  %463 = vmatprep.subr.mxu0 0.0
  %464 = vmatpush1.msra.mxu0 0.0
  %465 = vmatprep.subr.mxu0 0.0
  %466 = vmatpush1.msra.mxu0 0.0
  %467 = vmatprep.subr.mxu0 0.0
  %468 = vmatpush1.msra.mxu0 0.0
  %469 = vmatprep.subr.mxu0 0.0
  %470 = vmatpush1.msra.mxu0 0.0
  %471 = vmatprep.subr.mxu0 0.0
  %472 = vmatpush1.msra.mxu0 0.0
  %473 = vmatprep.subr.mxu0 0.0
  %474 = vmatpush1.msra.mxu0 0.0
  %475 = vmatprep.subr.mxu0 0.0
  %476 = vmatpush1.msra.mxu0 %v369
  %477 = vmatprep.subr.mxu0 0.0
  %478 = vmatpush1.msra.mxu0 %v368
  %479 = vmatprep.subr.mxu0 0.0
  %480 = vmatpush1.msra.mxu0 %v367
  %481 = vmatprep.subr.mxu0 0.0
  %482 = vmatpush1.msra.mxu0 %v366
  %483 = vmatprep.subr.mxu0 0.0
  %484 = vmatpush1.msra.mxu0 %v365
  %485 = vmatprep.subr.mxu0 0.0
  %486 = vmatpush1.msra.mxu0 %v364
  %487 = vmatprep.subr.mxu0 0.0
  %488 = vmatpush1.msra.mxu0 %v363
  %489 = vmatprep.subr.mxu0 0.0
  %490 = vmatpush1.msra.mxu0 %v362
  %491 = vmatprep.subr.mxu0 0.0
  %492 = vmatpush2.msra.mxu0 0.0
  %493 = vmatprep.subr.mxu0 0.0
  %494 = vmatpush2.msra.mxu0 0.0
  %495 = vmatprep.subr.mxu0 0.0
  %496 = vmatpush2.msra.mxu0 0.0
  %497 = vmatprep.subr.mxu0 0.0
  %498 = vmatpush2.msra.mxu0 0.0
  %499 = vmatprep.subr.mxu0 0.0
  %500 = vmatpush2.msra.mxu0 0.0
  %501 = vmatprep.subr.mxu0 0.0
  %502 = vmatpush2.msra.mxu0 0.0
  %503 = vmatprep.subr.mxu0 0.0
  %504 = vmatpush2.msra.mxu0 0.0
  %505 = vmatprep.subr.mxu0 0.0
  %506 = vmatpush2.msra.mxu0 0.0
  %507 = vmatprep.subr.mxu0 0.0
  %508 = vmatpush2.msra.mxu0 0.0
  %509 = vmatprep.subr.mxu0 0.0
  %510 = vmatpush2.msra.mxu0 0.0
  %511 = vmatprep.subr.mxu0 0.0
  %512 = vmatpush2.msra.mxu0 0.0
  %513 = vmatprep.subr.mxu0 0.0
  %514 = vmatpush2.msra.mxu0 0.0
  %515 = vmatprep.subr.mxu0 0.0
  %516 = vmatpush2.msra.mxu0 0.0
  %517 = vmatprep.subr.mxu0 0.0
  %518 = vmatpush2.msra.mxu0 0.0
  %519 = vmatprep.subr.mxu0 0.0
  %520 = vmatpush2.msra.mxu0 0.0
  %521 = vmatprep.subr.mxu0 0.0
  %522 = vmatpush2.msra.mxu0 0.0
  %523 = vmatprep.mubr.f32.mxu0 0.0
  %524 = vmatmul.mubr.f32.gmra.mxu0 %v454
  %v525 = vpop.f32.mrf.mxu0
  %v526 = vadd.f32 %v445, %v525
  %v527 = vpop.f32.mrf.mxu0
  %528 = vmatprep.mubr.f32.mxu0 0.0
  %529 = vmatmul.mubr.f32.gmra.mxu0 %v457
  %v530 = vpop.f32.mrf.mxu0
  %v531 = vadd.f32 %v450, %v530
  %v532 = vpop.f32.mrf.mxu0
  %533 = vdwg.mxu0
  %v534 = vld [vmem:[%s3] sm:$0x1]
  %v536 = vlaneseq
  %v537 = vshrl.u32 %v536, 7
  %v538 = vsub.s32 0, %v537
  %v539 = vrot.slane %v534, %v538
  %v541 = vadd.f32 %v526, %v539
  %v542 = vadd.f32 %v531, %v539
  %v543 = vtanh.pop %v541
  %v544 = vtanh.pop %v542
  %v545 = vld [vmem:[%s4] sm:$0xff]
  %v546 = vld [vmem:[%s4 + $0x8] sm:$0xff]
  %v547 = vld [vmem:[%s4 + $0x10] sm:$0xff]
  %v548 = vld [vmem:[%s4 + $0x18] sm:$0xff]
  %v549 = vld [vmem:[%s5] sm:$0x1]
  %v551 = vlaneseq
  %v552 = vshrl.u32 %v551, 7
  %v553 = vsub.s32 0, %v552
  %v554 = vrot.slane %v549, %v553
  %vm556 = vcmask 261120
  %v558 = vsel %vm556, %v543, 0
  %v561 = vsel %vm556, %v544, 0
  %563 = vmatprep.subr.mxu0 0.0
  %564 = vmatpush1.msra.mxu0 0.0
  %565 = vmatprep.subr.mxu0 0.0
  %566 = vmatpush1.msra.mxu0 0.0
  %567 = vmatprep.subr.mxu0 0.0
  %568 = vmatpush1.msra.mxu0 0.0
  %569 = vmatprep.subr.mxu0 0.0
  %570 = vmatpush1.msra.mxu0 0.0
  %571 = vmatprep.subr.mxu0 0.0
  %572 = vmatpush1.msra.mxu0 0.0
  %573 = vmatprep.subr.mxu0 0.0
  %574 = vmatpush1.msra.mxu0 0.0
  %575 = vmatprep.subr.mxu0 0.0
  %576 = vmatpush1.msra.mxu0 0.0
  %577 = vmatprep.subr.mxu0 0.0
  %578 = vmatpush1.msra.mxu0 0.0
  %579 = vmatprep.subr.mxu0 0.0
  %580 = vmatpush1.msra.mxu0 0.0
  %581 = vmatprep.subr.mxu0 0.0
  %582 = vmatpush1.msra.mxu0 0.0
  %583 = vmatprep.subr.mxu0 0.0
  %584 = vmatpush1.msra.mxu0 0.0
  %585 = vmatprep.subr.mxu0 0.0
  %586 = vmatpush1.msra.mxu0 0.0
  %587 = vmatprep.subr.mxu0 0.0
  %588 = vmatpush1.msra.mxu0 %v548
  %589 = vmatprep.subr.mxu0 0.0
  %590 = vmatpush1.msra.mxu0 %v547
  %591 = vmatprep.subr.mxu0 0.0
  %592 = vmatpush1.msra.mxu0 %v546
  %593 = vmatprep.subr.mxu0 0.0
  %594 = vmatpush1.msra.mxu0 %v545
  %595 = vmatprep.subr.mxu0 0.0
  %596 = vmatpush2.msra.mxu0 0.0
  %597 = vmatprep.subr.mxu0 0.0
  %598 = vmatpush2.msra.mxu0 0.0
  %599 = vmatprep.subr.mxu0 0.0
  %600 = vmatpush2.msra.mxu0 0.0
  %601 = vmatprep.subr.mxu0 0.0
  %602 = vmatpush2.msra.mxu0 0.0
  %603 = vmatprep.subr.mxu0 0.0
  %604 = vmatpush2.msra.mxu0 0.0
  %605 = vmatprep.subr.mxu0 0.0
  %606 = vmatpush2.msra.mxu0 0.0
  %607 = vmatprep.subr.mxu0 0.0
  %608 = vmatpush2.msra.mxu0 0.0
  %609 = vmatprep.subr.mxu0 0.0
  %610 = vmatpush2.msra.mxu0 0.0
  %611 = vmatprep.subr.mxu0 0.0
  %612 = vmatpush2.msra.mxu0 0.0
  %613 = vmatprep.subr.mxu0 0.0
  %614 = vmatpush2.msra.mxu0 0.0
  %615 = vmatprep.subr.mxu0 0.0
  %616 = vmatpush2.msra.mxu0 0.0
  %617 = vmatprep.subr.mxu0 0.0
  %618 = vmatpush2.msra.mxu0 0.0
  %619 = vmatprep.subr.mxu0 0.0
  %620 = vmatpush2.msra.mxu0 0.0
  %621 = vmatprep.subr.mxu0 0.0
  %622 = vmatpush2.msra.mxu0 0.0
  %623 = vmatprep.subr.mxu0 0.0
  %624 = vmatpush2.msra.mxu0 0.0
  %625 = vmatprep.subr.mxu0 0.0
  %626 = vmatpush2.msra.mxu0 0.0
  %627 = vmatprep.mubr.f32.mxu0 0.0
  %628 = vmatmul.mubr.f32.gmra.mxu0 %v558
  %v629 = vpop.f32.mrf.mxu0
  %v630 = vadd.f32 %v554, %v629
  %v631 = vpop.f32.mrf.mxu0
  %632 = vmatprep.mubr.f32.mxu0 0.0
  %633 = vmatmul.mubr.f32.gmra.mxu0 %v561
  %v634 = vpop.f32.mrf.mxu0
  %v635 = vadd.f32 %v554, %v634
  %v636 = vpop.f32.mrf.mxu0
  %637 = vdwg.mxu0
  %vm638 = vcmask 326656
  %v639 = vsel %vm638, %v630, -inf
  %640 = vmax.xlane.f32.xlu0 %v639
  %v641 = vpop.xlane.xlu0 %640
  %v642 = vsel %vm638, %v635, -inf
  %643 = vmax.xlane.f32.xlu0 %v642
  %v644 = vpop.xlane.xlu0 %643
  %v645 = vsub.f32 %v630, %v641
  %v646 = vsub.f32 %v635, %v644
  %v647 = vmul.f32 %v645, 1.442695
  %v648 = vpow.pop %v647
  %v649 = vmul.f32 %v646, 1.442695
  %v650 = vpow.pop %v649
  %v651 = vsel %vm638, %v648, 0.0
  %652 = vadd.xlane.f32.xlu0 %v651
  %v653 = vpop.xlane.xlu0 %652
  %v654 = vsel %vm638, %v650, 0.0
  %655 = vadd.xlane.f32.xlu0 %v654
  %v656 = vpop.xlane.xlu0 %655
  %v657 = vlog2.pop %v653
  %v658 = vmul.f32 %v657, 0.6931472
  %v659 = vlog2.pop %v656
  %v660 = vmul.f32 %v659, 0.6931472
  %v661 = vsub.f32 %v645, %v658
  %v662 = vsub.f32 %v646, %v660
  %663 = vst.msk [vmem:[%s6] sm:$0xff] %vm638, %v661
  %664 = vst.msk [vmem:[%s6 + $0x8] sm:$0xff] %vm638, %v662
  // Predicated region
  $region26: #{seq2seq_forward.5} parent=0 // pred_check
    _
  $region27: #{seq2seq_forward.5} parent=0 // pred_check_branch
    %666 = sbr.rel (0) target = $region29
  $region28: #{seq2seq_forward.5} parent=0 // pred_region
    _
  $region29: #{seq2seq_forward.5} parent=0 // pred_fallthru
    _
  // Predicated region
  $region30: #{seq2seq_forward.5} parent=0 // pred_check
    _
  $region31: #{seq2seq_forward.5} parent=0 // pred_check_branch
    %668 = sbr.rel (0) target = $region33
  $region32: #{seq2seq_forward.5} parent=0 // pred_region
    _
  $region33: #{seq2seq_forward.5} parent=0 // pred_fallthru
    _

// kernel: seq2seq_forward.4
$region0: #{seq2seq_forward.4}
  #allocation0 [shape = 'u32[]', space=smem, size = 0x4, offset = 0x4, fixed_abs, tag = 'smem constant byte address 0x4 - core index']
  #allocation1 [shape = 'u32[144,128]{1,0:T(1,128)}', space=vmem, size = 0x12000, scoped, tag = 'internal scratch']
  #allocation2 [shape = 'f32[16,256]{1,0:T(8,128)}', space=vmem, size = 0x4000, scoped, tag = 'scratch operand']
  %s0 = inlined_call_operand.vmem [shape: f32[16,32], index: 0, kind: input, shape index: {}]
  %s1 = inlined_call_operand.vmem [shape: f32[32,256], index: 1, kind: input, shape index: {}]
  %s2 = inlined_call_operand.vmem [shape: f32[1,256], index: 2, kind: input, shape index: {}]
  %s3 = inlined_call_operand.vmem [shape: f32[64,256], index: 3, kind: input, shape index: {}]
  %s4 = inlined_call_operand.vmem [shape: f32[8,2,64], index: 4, kind: output, shape index: {0}]
  %s5 = inlined_call_operand.hbm [shape: f32[2,64], index: 5, kind: output, shape index: {1}]
  %s6 = inlined_call_operand.hbm [shape: f32[2,64], index: 6, kind: output, shape index: {2}]
  %7 = xla_tuple %s4, %s5, %s6
  %s8 = sld [smem:[#allocation0]]
  $region42: #{seq2seq_forward.4} parent=0
    _
  %s10 = ssub.s32 1, %s8
  %s11 = scalar_select 0, %s10, %s8
  $region1: #{seq2seq_forward.4} parent=0
    #allocation3 [shape = 'u8[1024]{0}', space=vmem, size = 0x400, scoped, tag = 'output window, operand 1, single buffered']
    #allocation4 [shape = 's32[1]{0}', space=sflag, size = 0x4, scoped, tag = 'scoped memory for seq2seq_forward.4']
    #allocation5 [shape = 'u8[1024]{0}', space=vmem, size = 0x400, scoped, tag = 'output window, operand 2, single buffered']
    #allocation6 [shape = 's32[1]{0}', space=sflag, size = 0x4, scoped, tag = 'scoped memory for seq2seq_forward.4']
    %12 = vsyncpa [#allocation4], 0
    %13 = vsyncpa [#allocation6], 0
    // Predicated region
    $region2: #{seq2seq_forward.4} parent=1 // pred_check
      _
    $region3: #{seq2seq_forward.4} parent=1 // pred_check_branch
      %15 = sbr.rel (0) target = $region5
    $region4: #{seq2seq_forward.4} parent=1 // pred_region
      _
    $region5: #{seq2seq_forward.4} parent=1 // pred_fallthru
      _
    // Predicated region
    $region6: #{seq2seq_forward.4} parent=1 // pred_check
      _
    $region7: #{seq2seq_forward.4} parent=1 // pred_check_branch
      %17 = sbr.rel (0) target = $region9
    $region8: #{seq2seq_forward.4} parent=1 // pred_region
      _
    $region9: #{seq2seq_forward.4} parent=1 // pred_fallthru
      _
    // Predicated region
    $region10: #{seq2seq_forward.4} parent=1 // pred_check
      _
    $region11: #{seq2seq_forward.4} parent=1 // pred_check_branch
      %19 = sbr.rel (0) target = $region13
    $region12: #{seq2seq_forward.4} parent=1 // pred_region
      _
    $region13: #{seq2seq_forward.4} parent=1 // pred_fallthru
      _
    // Predicated region
    $region14: #{seq2seq_forward.4} parent=1 // pred_check
      _
    $region15: #{seq2seq_forward.4} parent=1 // pred_check_branch
      %21 = sbr.rel (0) target = $region17
    $region16: #{seq2seq_forward.4} parent=1 // pred_region
      _
    $region17: #{seq2seq_forward.4} parent=1 // pred_fallthru
      _
    %v22 = vld [vmem:[%s0] sm:$0xff]
    %v23 = vld [vmem:[%s0 + $0x8] sm:$0xff]
    %v24 = vld [vmem:[%s1] sm:$0xff]
    %v25 = vld [vmem:[%s1 + $0x8] sm:$0xff]
    %v26 = vld [vmem:[%s1 + $0x10] sm:$0xff]
    %v27 = vld [vmem:[%s1 + $0x18] sm:$0xff]
    %v28 = vld [vmem:[%s1 + $0x20] sm:$0xff]
    %v29 = vld [vmem:[%s1 + $0x28] sm:$0xff]
    %v30 = vld [vmem:[%s1 + $0x30] sm:$0xff]
    %v31 = vld [vmem:[%s1 + $0x38] sm:$0xff]
    %v32 = vld [vmem:[%s2] sm:$0x3]
    %v34 = vlaneseq
    %v35 = vshrl.u32 %v34, 7
    %v36 = vsub.s32 0, %v35
    %v37 = vrot.slane %v32, %v36
    %v38 = vlaneseq
    %v39 = vshrl.u32 %v38, 7
    %v40 = vsub.s32 1, %v39
    %v41 = vrot.slane %v32, %v40
    %vm44 = vcmask 261120
    %v46 = vsel %vm44, %v22, 0
    %v49 = vsel %vm44, %v23, 0
    %51 = vmatprep.subr.mxu0 0.0
    %52 = vmatpush1.msra.mxu0 0.0
    %53 = vmatprep.subr.mxu0 0.0
    %54 = vmatpush1.msra.mxu0 0.0
    %55 = vmatprep.subr.mxu0 0.0
    %56 = vmatpush1.msra.mxu0 0.0
    %57 = vmatprep.subr.mxu0 0.0
    %58 = vmatpush1.msra.mxu0 0.0
    %59 = vmatprep.subr.mxu0 0.0
    %60 = vmatpush1.msra.mxu0 0.0
    %61 = vmatprep.subr.mxu0 0.0
    %62 = vmatpush1.msra.mxu0 0.0
    %63 = vmatprep.subr.mxu0 0.0
    %64 = vmatpush1.msra.mxu0 0.0
    %65 = vmatprep.subr.mxu0 0.0
    %66 = vmatpush1.msra.mxu0 0.0
    %67 = vmatprep.subr.mxu0 0.0
    %68 = vmatpush1.msra.mxu0 0.0
    %69 = vmatprep.subr.mxu0 0.0
    %70 = vmatpush1.msra.mxu0 0.0
    %71 = vmatprep.subr.mxu0 0.0
    %72 = vmatpush1.msra.mxu0 0.0
    %73 = vmatprep.subr.mxu0 0.0
    %74 = vmatpush1.msra.mxu0 0.0
    %75 = vmatprep.subr.mxu0 %v31
    %76 = vmatpush1.msra.mxu0 %v30
    %77 = vmatprep.subr.mxu0 %v29
    %78 = vmatpush1.msra.mxu0 %v28
    %79 = vmatprep.subr.mxu0 %v27
    %80 = vmatpush1.msra.mxu0 %v26
    %81 = vmatprep.subr.mxu0 %v25
    %82 = vmatpush1.msra.mxu0 %v24
    %83 = vmatprep.subr.mxu0 0.0
    %84 = vmatpush2.msra.mxu0 0.0
    %85 = vmatprep.subr.mxu0 0.0
    %86 = vmatpush2.msra.mxu0 0.0
    %87 = vmatprep.subr.mxu0 0.0
    %88 = vmatpush2.msra.mxu0 0.0
    %89 = vmatprep.subr.mxu0 0.0
    %90 = vmatpush2.msra.mxu0 0.0
    %91 = vmatprep.subr.mxu0 0.0
    %92 = vmatpush2.msra.mxu0 0.0
    %93 = vmatprep.subr.mxu0 0.0
    %94 = vmatpush2.msra.mxu0 0.0
    %95 = vmatprep.subr.mxu0 0.0
    %96 = vmatpush2.msra.mxu0 0.0
    %97 = vmatprep.subr.mxu0 0.0
    %98 = vmatpush2.msra.mxu0 0.0
    %99 = vmatprep.subr.mxu0 0.0
    %100 = vmatpush2.msra.mxu0 0.0
    %101 = vmatprep.subr.mxu0 0.0
    %102 = vmatpush2.msra.mxu0 0.0
    %103 = vmatprep.subr.mxu0 0.0
    %104 = vmatpush2.msra.mxu0 0.0
    %105 = vmatprep.subr.mxu0 0.0
    %106 = vmatpush2.msra.mxu0 0.0
    %107 = vmatprep.subr.mxu0 0.0
    %108 = vmatpush2.msra.mxu0 0.0
    %109 = vmatprep.subr.mxu0 0.0
    %110 = vmatpush2.msra.mxu0 0.0
    %111 = vmatprep.subr.mxu0 0.0
    %112 = vmatpush2.msra.mxu0 0.0
    %113 = vmatprep.subr.mxu0 0.0
    %114 = vmatpush2.msra.mxu0 0.0
    %115 = vmatprep.mubr.f32.mxu0 0.0
    %116 = vmatmul.mubr.f32.gmra.mxu0 %v46
    %v117 = vpop.f32.mrf.mxu0
    %v118 = vadd.f32 %v37, %v117
    %v119 = vpop.f32.mrf.mxu0
    %v120 = vadd.f32 %v41, %v119
    %121 = vmatprep.mubr.f32.mxu0 0.0
    %122 = vmatmul.mubr.f32.gmra.mxu0 %v49
    %v123 = vpop.f32.mrf.mxu0
    %v124 = vadd.f32 %v37, %v123
    %v125 = vpop.f32.mrf.mxu0
    %v126 = vadd.f32 %v41, %v125
    %127 = vdwg.mxu0
    %128 = vst [vmem:[#allocation2] sm:$0xff] %v118
    %129 = vst [vmem:[#allocation2 + $0x8] sm:$0xff] %v120
    %130 = vst [vmem:[#allocation2 + $0x10] sm:$0xff] %v124
    %131 = vst [vmem:[#allocation2 + $0x18] sm:$0xff] %v126
    %v132 = vld [vmem:[%s3] sm:$0xff]
    %v133 = vld [vmem:[%s3 + $0x8] sm:$0xff]
    %v134 = vld [vmem:[%s3 + $0x10] sm:$0xff]
    %v135 = vld [vmem:[%s3 + $0x18] sm:$0xff]
    %v136 = vld [vmem:[%s3 + $0x20] sm:$0xff]
    %v137 = vld [vmem:[%s3 + $0x28] sm:$0xff]
    %v138 = vld [vmem:[%s3 + $0x30] sm:$0xff]
    %v139 = vld [vmem:[%s3 + $0x38] sm:$0xff]
    %v140 = vld [vmem:[%s3 + $0x40] sm:$0xff]
    %v141 = vld [vmem:[%s3 + $0x48] sm:$0xff]
    %v142 = vld [vmem:[%s3 + $0x50] sm:$0xff]
    %v143 = vld [vmem:[%s3 + $0x58] sm:$0xff]
    %v144 = vld [vmem:[%s3 + $0x60] sm:$0xff]
    %v145 = vld [vmem:[%s3 + $0x68] sm:$0xff]
    %v146 = vld [vmem:[%s3 + $0x70] sm:$0xff]
    %v147 = vld [vmem:[%s3 + $0x78] sm:$0xff]
    %v148 = vld [vmem:[#allocation2] sm:$0x3]
    %v149 = vld [vmem:[#allocation2 + $0x8] sm:$0x3]
    %vm150 = vcmask 523264
    %v152 = vsel %vm150, 0.0, 0
    %154 = vmatprep.subr.mxu0 0.0
    %155 = vmatpush1.msra.mxu0 0.0
    %156 = vmatprep.subr.mxu0 0.0
    %157 = vmatpush1.msra.mxu0 0.0
    %158 = vmatprep.subr.mxu0 0.0
    %159 = vmatpush1.msra.mxu0 0.0
    %160 = vmatprep.subr.mxu0 0.0
    %161 = vmatpush1.msra.mxu0 0.0
    %162 = vmatprep.subr.mxu0 0.0
    %163 = vmatpush1.msra.mxu0 0.0
    %164 = vmatprep.subr.mxu0 0.0
    %165 = vmatpush1.msra.mxu0 0.0
    %166 = vmatprep.subr.mxu0 0.0
    %167 = vmatpush1.msra.mxu0 0.0
    %168 = vmatprep.subr.mxu0 0.0
    %169 = vmatpush1.msra.mxu0 0.0
    %170 = vmatprep.subr.mxu0 %v147
    %171 = vmatpush1.msra.mxu0 %v146
    %172 = vmatprep.subr.mxu0 %v145
    %173 = vmatpush1.msra.mxu0 %v144
    %174 = vmatprep.subr.mxu0 %v143
    %175 = vmatpush1.msra.mxu0 %v142
    %176 = vmatprep.subr.mxu0 %v141
    %177 = vmatpush1.msra.mxu0 %v140
    %178 = vmatprep.subr.mxu0 %v139
    %179 = vmatpush1.msra.mxu0 %v138
    %180 = vmatprep.subr.mxu0 %v137
    %181 = vmatpush1.msra.mxu0 %v136
    %182 = vmatprep.subr.mxu0 %v135
    %183 = vmatpush1.msra.mxu0 %v134
    %184 = vmatprep.subr.mxu0 %v133
    %185 = vmatpush1.msra.mxu0 %v132
    %186 = vmatprep.subr.mxu0 0.0
    %187 = vmatpush2.msra.mxu0 0.0
    %188 = vmatprep.subr.mxu0 0.0
    %189 = vmatpush2.msra.mxu0 0.0
    %190 = vmatprep.subr.mxu0 0.0
    %191 = vmatpush2.msra.mxu0 0.0
    %192 = vmatprep.subr.mxu0 0.0
    %193 = vmatpush2.msra.mxu0 0.0
    %194 = vmatprep.subr.mxu0 0.0
    %195 = vmatpush2.msra.mxu0 0.0
    %196 = vmatprep.subr.mxu0 0.0
    %197 = vmatpush2.msra.mxu0 0.0
    %198 = vmatprep.subr.mxu0 0.0
    %199 = vmatpush2.msra.mxu0 0.0
    %200 = vmatprep.subr.mxu0 0.0
    %201 = vmatpush2.msra.mxu0 0.0
    %202 = vmatprep.subr.mxu0 0.0
    %203 = vmatpush2.msra.mxu0 0.0
    %204 = vmatprep.subr.mxu0 0.0
    %205 = vmatpush2.msra.mxu0 0.0
    %206 = vmatprep.subr.mxu0 0.0
    %207 = vmatpush2.msra.mxu0 0.0
    %208 = vmatprep.subr.mxu0 0.0
    %209 = vmatpush2.msra.mxu0 0.0
    %210 = vmatprep.subr.mxu0 0.0
    %211 = vmatpush2.msra.mxu0 0.0
    %212 = vmatprep.subr.mxu0 0.0
    %213 = vmatpush2.msra.mxu0 0.0
    %214 = vmatprep.subr.mxu0 0.0
    %215 = vmatpush2.msra.mxu0 0.0
    %216 = vmatprep.subr.mxu0 0.0
    %217 = vmatpush2.msra.mxu0 0.0
    %218 = vmatprep.mubr.f32.mxu0 0.0
    %219 = vmatmul.mubr.f32.gmra.mxu0 %v152
    %v220 = vpop.f32.mrf.mxu0
    %v221 = vadd.f32 0.0, %v220
    %v222 = vpop.f32.mrf.mxu0
    %v223 = vadd.f32 0.0, %v222
    %224 = vdwg.mxu0
    %v225 = vadd.f32 %v148, %v221
    %v226 = vadd.f32 %v149, %v223
    %v227 = vxor.u32 %v225, 2147483648
    %v228 = vmul.f32 %v227, 1.442695
    %v229 = vpow.pop %v228
    %v230 = vadd.f32 %v229, 1.0
    %v231 = vrcp.pop %v230
    %v232 = vmul.f32 1.0, %v231
    %v233 = vtanh.pop %v226
    %v234 = vxor.u32 %v226, 2147483648
    %v235 = vmul.f32 %v234, 1.442695
    %v236 = vpow.pop %v235
    %v237 = vadd.f32 %v236, 1.0
    %v238 = vrcp.pop %v237
    %v239 = vmul.f32 1.0, %v238
    %v240 = vmul.f32 %v232, 0.0
    %v241 = vmul.f32 %v232, %v233
    %243 = vrot.lane.b32.xlu0 %v241, 64
    %v244 = vpop.permute.xlu0 %243
    %v246 = vadd.f32 %v240, %v244
    %v247 = vtanh.pop %v246
    %v248 = vmul.f32 %v239, %v247
    %250 = vrot.lane.b32.xlu0 %v248, 64
    %v251 = vpop.permute.xlu0 %250
    %vm253 = vcmask 517120
    %254 = vst.msk [vmem:[%s4] sm:$0x3] %vm253, %v251
    %v255 = vld [vmem:[#allocation2] sm:$0xc]
    %v256 = vld [vmem:[#allocation2 + $0x8] sm:$0xc]
    %v257 = vsel %vm150, %v251, 0
    %259 = vmatprep.subr.mxu0 0.0
    %260 = vmatpush1.msra.mxu0 0.0
    %261 = vmatprep.subr.mxu0 0.0
    %262 = vmatpush1.msra.mxu0 0.0
    %263 = vmatprep.subr.mxu0 0.0
    %264 = vmatpush1.msra.mxu0 0.0
    %265 = vmatprep.subr.mxu0 0.0
    %266 = vmatpush1.msra.mxu0 0.0
    %267 = vmatprep.subr.mxu0 0.0
    %268 = vmatpush1.msra.mxu0 0.0
    %269 = vmatprep.subr.mxu0 0.0
    %270 = vmatpush1.msra.mxu0 0.0
    %271 = vmatprep.subr.mxu0 0.0
    %272 = vmatpush1.msra.mxu0 0.0
    %273 = vmatprep.subr.mxu0 0.0
    %274 = vmatpush1.msra.mxu0 0.0
    %275 = vmatprep.subr.mxu0 %v147
    %276 = vmatpush1.msra.mxu0 %v146
    %277 = vmatprep.subr.mxu0 %v145
    %278 = vmatpush1.msra.mxu0 %v144
    %279 = vmatprep.subr.mxu0 %v143
    %280 = vmatpush1.msra.mxu0 %v142
    %281 = vmatprep.subr.mxu0 %v141
    %282 = vmatpush1.msra.mxu0 %v140
    %283 = vmatprep.subr.mxu0 %v139
    %284 = vmatpush1.msra.mxu0 %v138
    %285 = vmatprep.subr.mxu0 %v137
    %286 = vmatpush1.msra.mxu0 %v136
    %287 = vmatprep.subr.mxu0 %v135
    %288 = vmatpush1.msra.mxu0 %v134
    %289 = vmatprep.subr.mxu0 %v133
    %290 = vmatpush1.msra.mxu0 %v132
    %291 = vmatprep.subr.mxu0 0.0
    %292 = vmatpush2.msra.mxu0 0.0
    %293 = vmatprep.subr.mxu0 0.0
    %294 = vmatpush2.msra.mxu0 0.0
    %295 = vmatprep.subr.mxu0 0.0
    %296 = vmatpush2.msra.mxu0 0.0
    %297 = vmatprep.subr.mxu0 0.0
    %298 = vmatpush2.msra.mxu0 0.0
    %299 = vmatprep.subr.mxu0 0.0
    %300 = vmatpush2.msra.mxu0 0.0
    %301 = vmatprep.subr.mxu0 0.0
    %302 = vmatpush2.msra.mxu0 0.0
    %303 = vmatprep.subr.mxu0 0.0
    %304 = vmatpush2.msra.mxu0 0.0
    %305 = vmatprep.subr.mxu0 0.0
    %306 = vmatpush2.msra.mxu0 0.0
    %307 = vmatprep.subr.mxu0 0.0
    %308 = vmatpush2.msra.mxu0 0.0
    %309 = vmatprep.subr.mxu0 0.0
    %310 = vmatpush2.msra.mxu0 0.0
    %311 = vmatprep.subr.mxu0 0.0
    %312 = vmatpush2.msra.mxu0 0.0
    %313 = vmatprep.subr.mxu0 0.0
    %314 = vmatpush2.msra.mxu0 0.0
    %315 = vmatprep.subr.mxu0 0.0
    %316 = vmatpush2.msra.mxu0 0.0
    %317 = vmatprep.subr.mxu0 0.0
    %318 = vmatpush2.msra.mxu0 0.0
    %319 = vmatprep.subr.mxu0 0.0
    %320 = vmatpush2.msra.mxu0 0.0
    %321 = vmatprep.subr.mxu0 0.0
    %322 = vmatpush2.msra.mxu0 0.0
    %323 = vmatprep.mubr.f32.mxu0 0.0
    %324 = vmatmul.mubr.f32.gmra.mxu0 %v257
    %v325 = vpop.f32.mrf.mxu0
    %v326 = vadd.f32 0.0, %v325
    %v327 = vpop.f32.mrf.mxu0
    %v328 = vadd.f32 0.0, %v327
    %329 = vdwg.mxu0
    %v332 = vrot.slane %v326, 6
    %v333 = vrot.slane %v328, 6
    %v336 = vadd.f32 %v255, %v332
    %v337 = vadd.f32 %v256, %v333
    %v338 = vxor.u32 %v336, 2147483648
    %v339 = vmul.f32 %v338, 1.442695
    %v340 = vpow.pop %v339
    %v341 = vadd.f32 %v340, 1.0
    %v342 = vrcp.pop %v341
    %v343 = vmul.f32 1.0, %v342
    %v344 = vtanh.pop %v337
    %v345 = vxor.u32 %v337, 2147483648
    %v346 = vmul.f32 %v345, 1.442695
    %v347 = vpow.pop %v346
    %v348 = vadd.f32 %v347, 1.0
    %v349 = vrcp.pop %v348
    %v350 = vmul.f32 1.0, %v349
    %v352 = vrot.slane %v246, 6
    %v354 = vmul.f32 %v343, %v352
    %v355 = vmul.f32 %v343, %v344
    %357 = vrot.lane.b32.xlu0 %v355, 64
    %v358 = vpop.permute.xlu0 %357
    %v360 = vadd.f32 %v354, %v358
    %v361 = vtanh.pop %v360
    %v362 = vmul.f32 %v350, %v361
    %364 = vrot.lane.b32.xlu0 %v362, 64
    %v365 = vpop.permute.xlu0 %364
    %s367 = scalar_lea.vmem %s4, 2
    %vm368 = vcmask 519170
    %369 = vst.msk [vmem:[%s367 - $0x2] sm:$0xc] %vm368, %v365
    %v370 = vld [vmem:[#allocation2] sm:$0x30]
    %v371 = vld [vmem:[#allocation2 + $0x8] sm:$0x30]
    %v372 = vrot.slane %v362, 2
    %373 = vrot.lane.b32.xlu0 %v372, 64
    %v374 = vpop.permute.xlu0 %373
    %v375 = vsel %vm150, %v374, 0
    %377 = vmatprep.subr.mxu0 0.0
    %378 = vmatpush1.msra.mxu0 0.0
    %379 = vmatprep.subr.mxu0 0.0
    %380 = vmatpush1.msra.mxu0 0.0
    %381 = vmatprep.subr.mxu0 0.0
    %382 = vmatpush1.msra.mxu0 0.0
    %383 = vmatprep.subr.mxu0 0.0
    %384 = vmatpush1.msra.mxu0 0.0
    %385 = vmatprep.subr.mxu0 0.0
    %386 = vmatpush1.msra.mxu0 0.0
    %387 = vmatprep.subr.mxu0 0.0
    %388 = vmatpush1.msra.mxu0 0.0
    %389 = vmatprep.subr.mxu0 0.0
    %390 = vmatpush1.msra.mxu0 0.0
    %391 = vmatprep.subr.mxu0 0.0
    %392 = vmatpush1.msra.mxu0 0.0
    %393 = vmatprep.subr.mxu0 %v147
    %394 = vmatpush1.msra.mxu0 %v146
    %395 = vmatprep.subr.mxu0 %v145
    %396 = vmatpush1.msra.mxu0 %v144
    %397 = vmatprep.subr.mxu0 %v143
    %398 = vmatpush1.msra.mxu0 %v142
    %399 = vmatprep.subr.mxu0 %v141
    %400 = vmatpush1.msra.mxu0 %v140
    %401 = vmatprep.subr.mxu0 %v139
    %402 = vmatpush1.msra.mxu0 %v138
    %403 = vmatprep.subr.mxu0 %v137
    %404 = vmatpush1.msra.mxu0 %v136
    %405 = vmatprep.subr.mxu0 %v135
    %406 = vmatpush1.msra.mxu0 %v134
    %407 = vmatprep.subr.mxu0 %v133
    %408 = vmatpush1.msra.mxu0 %v132
    %409 = vmatprep.subr.mxu0 0.0
    %410 = vmatpush2.msra.mxu0 0.0
    %411 = vmatprep.subr.mxu0 0.0
    %412 = vmatpush2.msra.mxu0 0.0
    %413 = vmatprep.subr.mxu0 0.0
    %414 = vmatpush2.msra.mxu0 0.0
    %415 = vmatprep.subr.mxu0 0.0
    %416 = vmatpush2.msra.mxu0 0.0
    %417 = vmatprep.subr.mxu0 0.0
    %418 = vmatpush2.msra.mxu0 0.0
    %419 = vmatprep.subr.mxu0 0.0
    %420 = vmatpush2.msra.mxu0 0.0
    %421 = vmatprep.subr.mxu0 0.0
    %422 = vmatpush2.msra.mxu0 0.0
    %423 = vmatprep.subr.mxu0 0.0
    %424 = vmatpush2.msra.mxu0 0.0
    %425 = vmatprep.subr.mxu0 0.0
    %426 = vmatpush2.msra.mxu0 0.0
    %427 = vmatprep.subr.mxu0 0.0
    %428 = vmatpush2.msra.mxu0 0.0
    %429 = vmatprep.subr.mxu0 0.0
    %430 = vmatpush2.msra.mxu0 0.0
    %431 = vmatprep.subr.mxu0 0.0
    %432 = vmatpush2.msra.mxu0 0.0
    %433 = vmatprep.subr.mxu0 0.0
    %434 = vmatpush2.msra.mxu0 0.0
    %435 = vmatprep.subr.mxu0 0.0
    %436 = vmatpush2.msra.mxu0 0.0
    %437 = vmatprep.subr.mxu0 0.0
    %438 = vmatpush2.msra.mxu0 0.0
    %439 = vmatprep.subr.mxu0 0.0
    %440 = vmatpush2.msra.mxu0 0.0
    %441 = vmatprep.mubr.f32.mxu0 0.0
    %442 = vmatmul.mubr.f32.gmra.mxu0 %v375
    %v443 = vpop.f32.mrf.mxu0
    %v444 = vadd.f32 0.0, %v443
    %v445 = vpop.f32.mrf.mxu0
    %v446 = vadd.f32 0.0, %v445
    %447 = vdwg.mxu0
    %v450 = vrot.slane %v444, 4
    %v451 = vrot.slane %v446, 4
    %v454 = vadd.f32 %v370, %v450
    %v455 = vadd.f32 %v371, %v451
    %v456 = vxor.u32 %v454, 2147483648
    %v457 = vmul.f32 %v456, 1.442695
    %v458 = vpow.pop %v457
    %v459 = vadd.f32 %v458, 1.0
    %v460 = vrcp.pop %v459
    %v461 = vmul.f32 1.0, %v460
    %v462 = vtanh.pop %v455
    %v463 = vxor.u32 %v455, 2147483648
    %v464 = vmul.f32 %v463, 1.442695
    %v465 = vpow.pop %v464
    %v466 = vadd.f32 %v465, 1.0
    %v467 = vrcp.pop %v466
    %v468 = vmul.f32 1.0, %v467
    %v470 = vrot.slane %v360, 6
    %v472 = vmul.f32 %v461, %v470
    %v473 = vmul.f32 %v461, %v462
    %475 = vrot.lane.b32.xlu0 %v473, 64
    %v476 = vpop.permute.xlu0 %475
    %v478 = vadd.f32 %v472, %v476
    %v479 = vtanh.pop %v478
    %v480 = vmul.f32 %v468, %v479
    %482 = vrot.lane.b32.xlu0 %v480, 64
    %v483 = vpop.permute.xlu0 %482
    %s485 = scalar_lea.vmem %s4, 4
    %vm486 = vcmask 521220
    %487 = vst.msk [vmem:[%s485 - $0x4] sm:$0x30] %vm486, %v483
    %v488 = vld [vmem:[#allocation2] sm:$0xc0]
    %v489 = vld [vmem:[#allocation2 + $0x8] sm:$0xc0]
    %v490 = vrot.slane %v480, 4
    %491 = vrot.lane.b32.xlu0 %v490, 64
    %v492 = vpop.permute.xlu0 %491
    %v493 = vsel %vm150, %v492, 0
    %495 = vmatprep.subr.mxu0 0.0
    %496 = vmatpush1.msra.mxu0 0.0
    %497 = vmatprep.subr.mxu0 0.0
    %498 = vmatpush1.msra.mxu0 0.0
    %499 = vmatprep.subr.mxu0 0.0
    %500 = vmatpush1.msra.mxu0 0.0
    %501 = vmatprep.subr.mxu0 0.0
    %502 = vmatpush1.msra.mxu0 0.0
    %503 = vmatprep.subr.mxu0 0.0
    %504 = vmatpush1.msra.mxu0 0.0
    %505 = vmatprep.subr.mxu0 0.0
    %506 = vmatpush1.msra.mxu0 0.0
    %507 = vmatprep.subr.mxu0 0.0
    %508 = vmatpush1.msra.mxu0 0.0
    %509 = vmatprep.subr.mxu0 0.0
    %510 = vmatpush1.msra.mxu0 0.0
    %511 = vmatprep.subr.mxu0 %v147
    %512 = vmatpush1.msra.mxu0 %v146
    %513 = vmatprep.subr.mxu0 %v145
    %514 = vmatpush1.msra.mxu0 %v144
    %515 = vmatprep.subr.mxu0 %v143
    %516 = vmatpush1.msra.mxu0 %v142
    %517 = vmatprep.subr.mxu0 %v141
    %518 = vmatpush1.msra.mxu0 %v140
    %519 = vmatprep.subr.mxu0 %v139
    %520 = vmatpush1.msra.mxu0 %v138
    %521 = vmatprep.subr.mxu0 %v137
    %522 = vmatpush1.msra.mxu0 %v136
    %523 = vmatprep.subr.mxu0 %v135
    %524 = vmatpush1.msra.mxu0 %v134
    %525 = vmatprep.subr.mxu0 %v133
    %526 = vmatpush1.msra.mxu0 %v132
    %527 = vmatprep.subr.mxu0 0.0
    %528 = vmatpush2.msra.mxu0 0.0
    %529 = vmatprep.subr.mxu0 0.0
    %530 = vmatpush2.msra.mxu0 0.0
    %531 = vmatprep.subr.mxu0 0.0
    %532 = vmatpush2.msra.mxu0 0.0
    %533 = vmatprep.subr.mxu0 0.0
    %534 = vmatpush2.msra.mxu0 0.0
    %535 = vmatprep.subr.mxu0 0.0
    %536 = vmatpush2.msra.mxu0 0.0
    %537 = vmatprep.subr.mxu0 0.0
    %538 = vmatpush2.msra.mxu0 0.0
    %539 = vmatprep.subr.mxu0 0.0
    %540 = vmatpush2.msra.mxu0 0.0
    %541 = vmatprep.subr.mxu0 0.0
    %542 = vmatpush2.msra.mxu0 0.0
    %543 = vmatprep.subr.mxu0 0.0
    %544 = vmatpush2.msra.mxu0 0.0
    %545 = vmatprep.subr.mxu0 0.0
    %546 = vmatpush2.msra.mxu0 0.0
    %547 = vmatprep.subr.mxu0 0.0
    %548 = vmatpush2.msra.mxu0 0.0
    %549 = vmatprep.subr.mxu0 0.0
    %550 = vmatpush2.msra.mxu0 0.0
    %551 = vmatprep.subr.mxu0 0.0
    %552 = vmatpush2.msra.mxu0 0.0
    %553 = vmatprep.subr.mxu0 0.0
    %554 = vmatpush2.msra.mxu0 0.0
    %555 = vmatprep.subr.mxu0 0.0
    %556 = vmatpush2.msra.mxu0 0.0
    %557 = vmatprep.subr.mxu0 0.0
    %558 = vmatpush2.msra.mxu0 0.0
    %559 = vmatprep.mubr.f32.mxu0 0.0
    %560 = vmatmul.mubr.f32.gmra.mxu0 %v493
    %v561 = vpop.f32.mrf.mxu0
    %v562 = vadd.f32 0.0, %v561
    %v563 = vpop.f32.mrf.mxu0
    %v564 = vadd.f32 0.0, %v563
    %565 = vdwg.mxu0
    %v568 = vrot.slane %v562, 2
    %v569 = vrot.slane %v564, 2
    %v572 = vadd.f32 %v488, %v568
    %v573 = vadd.f32 %v489, %v569
    %v574 = vxor.u32 %v572, 2147483648
    %v575 = vmul.f32 %v574, 1.442695
    %v576 = vpow.pop %v575
    %v577 = vadd.f32 %v576, 1.0
    %v578 = vrcp.pop %v577
    %v579 = vmul.f32 1.0, %v578
    %v580 = vtanh.pop %v573
    %v581 = vxor.u32 %v573, 2147483648
    %v582 = vmul.f32 %v581, 1.442695
    %v583 = vpow.pop %v582
    %v584 = vadd.f32 %v583, 1.0
    %v585 = vrcp.pop %v584
    %v586 = vmul.f32 1.0, %v585
    %v588 = vrot.slane %v478, 6
    %v590 = vmul.f32 %v579, %v588
    %v591 = vmul.f32 %v579, %v580
    %593 = vrot.lane.b32.xlu0 %v591, 64
    %v594 = vpop.permute.xlu0 %593
    %v596 = vadd.f32 %v590, %v594
    %v597 = vtanh.pop %v596
    %v598 = vmul.f32 %v586, %v597
    %600 = vrot.lane.b32.xlu0 %v598, 64
    %v601 = vpop.permute.xlu0 %600
    %s603 = scalar_lea.vmem %s4, 6
    %vm604 = vcmask 523270
    %605 = vst.msk [vmem:[%s603 - $0x6] sm:$0xc0] %vm604, %v601
    %v606 = vld [vmem:[#allocation2 + $0x10] sm:$0x3]
    %v607 = vld [vmem:[#allocation2 + $0x18] sm:$0x3]
    %v608 = vrot.slane %v598, 6
    %609 = vrot.lane.b32.xlu0 %v608, 64
    %v610 = vpop.permute.xlu0 %609
    %v611 = vsel %vm150, %v610, 0
    %613 = vmatprep.subr.mxu0 0.0
    %614 = vmatpush1.msra.mxu0 0.0
    %615 = vmatprep.subr.mxu0 0.0
    %616 = vmatpush1.msra.mxu0 0.0
    %617 = vmatprep.subr.mxu0 0.0
    %618 = vmatpush1.msra.mxu0 0.0
    %619 = vmatprep.subr.mxu0 0.0
    %620 = vmatpush1.msra.mxu0 0.0
    %621 = vmatprep.subr.mxu0 0.0
    %622 = vmatpush1.msra.mxu0 0.0
    %623 = vmatprep.subr.mxu0 0.0
    %624 = vmatpush1.msra.mxu0 0.0
    %625 = vmatprep.subr.mxu0 0.0
    %626 = vmatpush1.msra.mxu0 0.0
    %627 = vmatprep.subr.mxu0 0.0
    %628 = vmatpush1.msra.mxu0 0.0
    %629 = vmatprep.subr.mxu0 %v147
    %630 = vmatpush1.msra.mxu0 %v146
    %631 = vmatprep.subr.mxu0 %v145
    %632 = vmatpush1.msra.mxu0 %v144
    %633 = vmatprep.subr.mxu0 %v143
    %634 = vmatpush1.msra.mxu0 %v142
    %635 = vmatprep.subr.mxu0 %v141
    %636 = vmatpush1.msra.mxu0 %v140
    %637 = vmatprep.subr.mxu0 %v139
    %638 = vmatpush1.msra.mxu0 %v138
    %639 = vmatprep.subr.mxu0 %v137
    %640 = vmatpush1.msra.mxu0 %v136
    %641 = vmatprep.subr.mxu0 %v135
    %642 = vmatpush1.msra.mxu0 %v134
    %643 = vmatprep.subr.mxu0 %v133
    %644 = vmatpush1.msra.mxu0 %v132
    %645 = vmatprep.subr.mxu0 0.0
    %646 = vmatpush2.msra.mxu0 0.0
    %647 = vmatprep.subr.mxu0 0.0
    %648 = vmatpush2.msra.mxu0 0.0
    %649 = vmatprep.subr.mxu0 0.0
    %650 = vmatpush2.msra.mxu0 0.0
    %651 = vmatprep.subr.mxu0 0.0
    %652 = vmatpush2.msra.mxu0 0.0
    %653 = vmatprep.subr.mxu0 0.0
    %654 = vmatpush2.msra.mxu0 0.0
    %655 = vmatprep.subr.mxu0 0.0
    %656 = vmatpush2.msra.mxu0 0.0
    %657 = vmatprep.subr.mxu0 0.0
    %658 = vmatpush2.msra.mxu0 0.0
    %659 = vmatprep.subr.mxu0 0.0
    %660 = vmatpush2.msra.mxu0 0.0
    %661 = vmatprep.subr.mxu0 0.0
    %662 = vmatpush2.msra.mxu0 0.0
    %663 = vmatprep.subr.mxu0 0.0
    %664 = vmatpush2.msra.mxu0 0.0
    %665 = vmatprep.subr.mxu0 0.0
    %666 = vmatpush2.msra.mxu0 0.0
    %667 = vmatprep.subr.mxu0 0.0
    %668 = vmatpush2.msra.mxu0 0.0
    %669 = vmatprep.subr.mxu0 0.0
    %670 = vmatpush2.msra.mxu0 0.0
    %671 = vmatprep.subr.mxu0 0.0
    %672 = vmatpush2.msra.mxu0 0.0
    %673 = vmatprep.subr.mxu0 0.0
    %674 = vmatpush2.msra.mxu0 0.0
    %675 = vmatprep.subr.mxu0 0.0
    %676 = vmatpush2.msra.mxu0 0.0
    %677 = vmatprep.mubr.f32.mxu0 0.0
    %678 = vmatmul.mubr.f32.gmra.mxu0 %v611
    %v679 = vpop.f32.mrf.mxu0
    %v680 = vadd.f32 0.0, %v679
    %v681 = vpop.f32.mrf.mxu0
    %v682 = vadd.f32 0.0, %v681
    %683 = vdwg.mxu0
    %v684 = vadd.f32 %v606, %v680
    %v685 = vadd.f32 %v607, %v682
    %v686 = vxor.u32 %v684, 2147483648
    %v687 = vmul.f32 %v686, 1.442695
    %v688 = vpow.pop %v687
    %v689 = vadd.f32 %v688, 1.0
    %v690 = vrcp.pop %v689
    %v691 = vmul.f32 1.0, %v690
    %v692 = vtanh.pop %v685
    %v693 = vxor.u32 %v685, 2147483648
    %v694 = vmul.f32 %v693, 1.442695
    %v695 = vpow.pop %v694
    %v696 = vadd.f32 %v695, 1.0
    %v697 = vrcp.pop %v696
    %v698 = vmul.f32 1.0, %v697
    %v700 = vrot.slane %v596, 6
    %v702 = vmul.f32 %v691, %v700
    %v703 = vmul.f32 %v691, %v692
    %705 = vrot.lane.b32.xlu0 %v703, 64
    %v706 = vpop.permute.xlu0 %705
    %v708 = vadd.f32 %v702, %v706
    %v709 = vtanh.pop %v708
    %v710 = vmul.f32 %v698, %v709
    %712 = vrot.lane.b32.xlu0 %v710, 64
    %v713 = vpop.permute.xlu0 %712
    %s715 = scalar_lea.vmem %s4, 8
    %716 = vst.msk [vmem:[%s715] sm:$0x3] %vm253, %v713
    %v717 = vld [vmem:[#allocation2 + $0x10] sm:$0xc]
    %v718 = vld [vmem:[#allocation2 + $0x18] sm:$0xc]
    %v719 = vsel %vm150, %v713, 0
    %721 = vmatprep.subr.mxu0 0.0
    %722 = vmatpush1.msra.mxu0 0.0
    %723 = vmatprep.subr.mxu0 0.0
    %724 = vmatpush1.msra.mxu0 0.0
    %725 = vmatprep.subr.mxu0 0.0
    %726 = vmatpush1.msra.mxu0 0.0
    %727 = vmatprep.subr.mxu0 0.0
    %728 = vmatpush1.msra.mxu0 0.0
    %729 = vmatprep.subr.mxu0 0.0
    %730 = vmatpush1.msra.mxu0 0.0
    %731 = vmatprep.subr.mxu0 0.0
    %732 = vmatpush1.msra.mxu0 0.0
    %733 = vmatprep.subr.mxu0 0.0
    %734 = vmatpush1.msra.mxu0 0.0
    %735 = vmatprep.subr.mxu0 0.0
    %736 = vmatpush1.msra.mxu0 0.0
    %737 = vmatprep.subr.mxu0 %v147
    %738 = vmatpush1.msra.mxu0 %v146
    %739 = vmatprep.subr.mxu0 %v145
    %740 = vmatpush1.msra.mxu0 %v144
    %741 = vmatprep.subr.mxu0 %v143
    %742 = vmatpush1.msra.mxu0 %v142
    %743 = vmatprep.subr.mxu0 %v141
    %744 = vmatpush1.msra.mxu0 %v140
    %745 = vmatprep.subr.mxu0 %v139
    %746 = vmatpush1.msra.mxu0 %v138
    %747 = vmatprep.subr.mxu0 %v137
    %748 = vmatpush1.msra.mxu0 %v136
    %749 = vmatprep.subr.mxu0 %v135
    %750 = vmatpush1.msra.mxu0 %v134
    %751 = vmatprep.subr.mxu0 %v133
    %752 = vmatpush1.msra.mxu0 %v132
    %753 = vmatprep.subr.mxu0 0.0
    %754 = vmatpush2.msra.mxu0 0.0
    %755 = vmatprep.subr.mxu0 0.0
    %756 = vmatpush2.msra.mxu0 0.0
    %757 = vmatprep.subr.mxu0 0.0
    %758 = vmatpush2.msra.mxu0 0.0
    %759 = vmatprep.subr.mxu0 0.0
    %760 = vmatpush2.msra.mxu0 0.0
    %761 = vmatprep.subr.mxu0 0.0
    %762 = vmatpush2.msra.mxu0 0.0
    %763 = vmatprep.subr.mxu0 0.0
    %764 = vmatpush2.msra.mxu0 0.0
    %765 = vmatprep.subr.mxu0 0.0
    %766 = vmatpush2.msra.mxu0 0.0
    %767 = vmatprep.subr.mxu0 0.0
    %768 = vmatpush2.msra.mxu0 0.0
    %769 = vmatprep.subr.mxu0 0.0
    %770 = vmatpush2.msra.mxu0 0.0
    %771 = vmatprep.subr.mxu0 0.0
    %772 = vmatpush2.msra.mxu0 0.0
    %773 = vmatprep.subr.mxu0 0.0
    %774 = vmatpush2.msra.mxu0 0.0
    %775 = vmatprep.subr.mxu0 0.0
    %776 = vmatpush2.msra.mxu0 0.0
    %777 = vmatprep.subr.mxu0 0.0
    %778 = vmatpush2.msra.mxu0 0.0
    %779 = vmatprep.subr.mxu0 0.0
    %780 = vmatpush2.msra.mxu0 0.0
    %781 = vmatprep.subr.mxu0 0.0
    %782 = vmatpush2.msra.mxu0 0.0
    %783 = vmatprep.subr.mxu0 0.0
    %784 = vmatpush2.msra.mxu0 0.0
    %785 = vmatprep.mubr.f32.mxu0 0.0
    %786 = vmatmul.mubr.f32.gmra.mxu0 %v719
    %v787 = vpop.f32.mrf.mxu0
    %v788 = vadd.f32 0.0, %v787
    %v789 = vpop.f32.mrf.mxu0
    %v790 = vadd.f32 0.0, %v789
    %791 = vdwg.mxu0
    %v794 = vrot.slane %v788, 6
    %v795 = vrot.slane %v790, 6
    %v798 = vadd.f32 %v717, %v794
    %v799 = vadd.f32 %v718, %v795
    %v800 = vxor.u32 %v798, 2147483648
    %v801 = vmul.f32 %v800, 1.442695
    %v802 = vpow.pop %v801
    %v803 = vadd.f32 %v802, 1.0
    %v804 = vrcp.pop %v803
    %v805 = vmul.f32 1.0, %v804
    %v806 = vtanh.pop %v799
    %v807 = vxor.u32 %v799, 2147483648
    %v808 = vmul.f32 %v807, 1.442695
    %v809 = vpow.pop %v808
    %v810 = vadd.f32 %v809, 1.0
    %v811 = vrcp.pop %v810
    %v812 = vmul.f32 1.0, %v811
    %v814 = vrot.slane %v708, 6
    %v816 = vmul.f32 %v805, %v814
    %v817 = vmul.f32 %v805, %v806
    %819 = vrot.lane.b32.xlu0 %v817, 64
    %v820 = vpop.permute.xlu0 %819
    %v822 = vadd.f32 %v816, %v820
    %v823 = vtanh.pop %v822
    %v824 = vmul.f32 %v812, %v823
    %826 = vrot.lane.b32.xlu0 %v824, 64
    %v827 = vpop.permute.xlu0 %826
    %s829 = scalar_lea.vmem %s4, 10
    %830 = vst.msk [vmem:[%s829 - $0x2] sm:$0xc] %vm368, %v827
    %v831 = vld [vmem:[#allocation2 + $0x10] sm:$0x30]
    %v832 = vld [vmem:[#allocation2 + $0x18] sm:$0x30]
    %v833 = vrot.slane %v824, 2
    %834 = vrot.lane.b32.xlu0 %v833, 64
    %v835 = vpop.permute.xlu0 %834
    %v836 = vsel %vm150, %v835, 0
    %838 = vmatprep.subr.mxu0 0.0
    %839 = vmatpush1.msra.mxu0 0.0
    %840 = vmatprep.subr.mxu0 0.0
    %841 = vmatpush1.msra.mxu0 0.0
    %842 = vmatprep.subr.mxu0 0.0
    %843 = vmatpush1.msra.mxu0 0.0
    %844 = vmatprep.subr.mxu0 0.0
    %845 = vmatpush1.msra.mxu0 0.0
    %846 = vmatprep.subr.mxu0 0.0
    %847 = vmatpush1.msra.mxu0 0.0
    %848 = vmatprep.subr.mxu0 0.0
    %849 = vmatpush1.msra.mxu0 0.0
    %850 = vmatprep.subr.mxu0 0.0
    %851 = vmatpush1.msra.mxu0 0.0
    %852 = vmatprep.subr.mxu0 0.0
    %853 = vmatpush1.msra.mxu0 0.0
    %854 = vmatprep.subr.mxu0 %v147
    %855 = vmatpush1.msra.mxu0 %v146
    %856 = vmatprep.subr.mxu0 %v145
    %857 = vmatpush1.msra.mxu0 %v144
    %858 = vmatprep.subr.mxu0 %v143
    %859 = vmatpush1.msra.mxu0 %v142
    %860 = vmatprep.subr.mxu0 %v141
    %861 = vmatpush1.msra.mxu0 %v140
    %862 = vmatprep.subr.mxu0 %v139
    %863 = vmatpush1.msra.mxu0 %v138
    %864 = vmatprep.subr.mxu0 %v137
    %865 = vmatpush1.msra.mxu0 %v136
    %866 = vmatprep.subr.mxu0 %v135
    %867 = vmatpush1.msra.mxu0 %v134
    %868 = vmatprep.subr.mxu0 %v133
    %869 = vmatpush1.msra.mxu0 %v132
    %870 = vmatprep.subr.mxu0 0.0
    %871 = vmatpush2.msra.mxu0 0.0
    %872 = vmatprep.subr.mxu0 0.0
    %873 = vmatpush2.msra.mxu0 0.0
    %874 = vmatprep.subr.mxu0 0.0
    %875 = vmatpush2.msra.mxu0 0.0
    %876 = vmatprep.subr.mxu0 0.0
    %877 = vmatpush2.msra.mxu0 0.0
    %878 = vmatprep.subr.mxu0 0.0
    %879 = vmatpush2.msra.mxu0 0.0
    %880 = vmatprep.subr.mxu0 0.0
    %881 = vmatpush2.msra.mxu0 0.0
    %882 = vmatprep.subr.mxu0 0.0
    %883 = vmatpush2.msra.mxu0 0.0
    %884 = vmatprep.subr.mxu0 0.0
    %885 = vmatpush2.msra.mxu0 0.0
    %886 = vmatprep.subr.mxu0 0.0
    %887 = vmatpush2.msra.mxu0 0.0
    %888 = vmatprep.subr.mxu0 0.0
    %889 = vmatpush2.msra.mxu0 0.0
    %890 = vmatprep.subr.mxu0 0.0
    %891 = vmatpush2.msra.mxu0 0.0
    %892 = vmatprep.subr.mxu0 0.0
    %893 = vmatpush2.msra.mxu0 0.0
    %894 = vmatprep.subr.mxu0 0.0
    %895 = vmatpush2.msra.mxu0 0.0
    %896 = vmatprep.subr.mxu0 0.0
    %897 = vmatpush2.msra.mxu0 0.0
    %898 = vmatprep.subr.mxu0 0.0
    %899 = vmatpush2.msra.mxu0 0.0
    %900 = vmatprep.subr.mxu0 0.0
    %901 = vmatpush2.msra.mxu0 0.0
    %902 = vmatprep.mubr.f32.mxu0 0.0
    %903 = vmatmul.mubr.f32.gmra.mxu0 %v836
    %v904 = vpop.f32.mrf.mxu0
    %v905 = vadd.f32 0.0, %v904
    %v906 = vpop.f32.mrf.mxu0
    %v907 = vadd.f32 0.0, %v906
    %908 = vdwg.mxu0
    %v911 = vrot.slane %v905, 4
    %v912 = vrot.slane %v907, 4
    %v915 = vadd.f32 %v831, %v911
    %v916 = vadd.f32 %v832, %v912
    %v917 = vxor.u32 %v915, 2147483648
    %v918 = vmul.f32 %v917, 1.442695
    %v919 = vpow.pop %v918
    %v920 = vadd.f32 %v919, 1.0
    %v921 = vrcp.pop %v920
    %v922 = vmul.f32 1.0, %v921
    %v923 = vtanh.pop %v916
    %v924 = vxor.u32 %v916, 2147483648
    %v925 = vmul.f32 %v924, 1.442695
    %v926 = vpow.pop %v925
    %v927 = vadd.f32 %v926, 1.0
    %v928 = vrcp.pop %v927
    %v929 = vmul.f32 1.0, %v928
    %v931 = vrot.slane %v822, 6
    %v933 = vmul.f32 %v922, %v931
    %v934 = vmul.f32 %v922, %v923
    %936 = vrot.lane.b32.xlu0 %v934, 64
    %v937 = vpop.permute.xlu0 %936
    %v939 = vadd.f32 %v933, %v937
    %v940 = vtanh.pop %v939
    %v941 = vmul.f32 %v929, %v940
    %943 = vrot.lane.b32.xlu0 %v941, 64
    %v944 = vpop.permute.xlu0 %943
    %s946 = scalar_lea.vmem %s4, 12
    %947 = vst.msk [vmem:[%s946 - $0x4] sm:$0x30] %vm486, %v944
    %v948 = vld [vmem:[#allocation2 + $0x10] sm:$0xc0]
    %v949 = vld [vmem:[#allocation2 + $0x18] sm:$0xc0]
    %v950 = vrot.slane %v941, 4
    %951 = vrot.lane.b32.xlu0 %v950, 64
    %v952 = vpop.permute.xlu0 %951
    %v953 = vsel %vm150, %v952, 0
    %955 = vmatprep.subr.mxu0 0.0
    %956 = vmatpush1.msra.mxu0 0.0
    %957 = vmatprep.subr.mxu0 0.0
    %958 = vmatpush1.msra.mxu0 0.0
    %959 = vmatprep.subr.mxu0 0.0
    %960 = vmatpush1.msra.mxu0 0.0
    %961 = vmatprep.subr.mxu0 0.0
    %962 = vmatpush1.msra.mxu0 0.0
    %963 = vmatprep.subr.mxu0 0.0
    %964 = vmatpush1.msra.mxu0 0.0
    %965 = vmatprep.subr.mxu0 0.0
    %966 = vmatpush1.msra.mxu0 0.0
    %967 = vmatprep.subr.mxu0 0.0
    %968 = vmatpush1.msra.mxu0 0.0
    %969 = vmatprep.subr.mxu0 0.0
    %970 = vmatpush1.msra.mxu0 0.0
    %971 = vmatprep.subr.mxu0 %v147
    %972 = vmatpush1.msra.mxu0 %v146
    %973 = vmatprep.subr.mxu0 %v145
    %974 = vmatpush1.msra.mxu0 %v144
    %975 = vmatprep.subr.mxu0 %v143
    %976 = vmatpush1.msra.mxu0 %v142
    %977 = vmatprep.subr.mxu0 %v141
    %978 = vmatpush1.msra.mxu0 %v140
    %979 = vmatprep.subr.mxu0 %v139
    %980 = vmatpush1.msra.mxu0 %v138
    %981 = vmatprep.subr.mxu0 %v137
    %982 = vmatpush1.msra.mxu0 %v136
    %983 = vmatprep.subr.mxu0 %v135
    %984 = vmatpush1.msra.mxu0 %v134
    %985 = vmatprep.subr.mxu0 %v133
    %986 = vmatpush1.msra.mxu0 %v132
    %987 = vmatprep.subr.mxu0 0.0
    %988 = vmatpush2.msra.mxu0 0.0
    %989 = vmatprep.subr.mxu0 0.0
    %990 = vmatpush2.msra.mxu0 0.0
    %991 = vmatprep.subr.mxu0 0.0
    %992 = vmatpush2.msra.mxu0 0.0
    %993 = vmatprep.subr.mxu0 0.0
    %994 = vmatpush2.msra.mxu0 0.0
    %995 = vmatprep.subr.mxu0 0.0
    %996 = vmatpush2.msra.mxu0 0.0
    %997 = vmatprep.subr.mxu0 0.0
    %998 = vmatpush2.msra.mxu0 0.0
    %999 = vmatprep.subr.mxu0 0.0
    %1000 = vmatpush2.msra.mxu0 0.0
    %1001 = vmatprep.subr.mxu0 0.0
    %1002 = vmatpush2.msra.mxu0 0.0
    %1003 = vmatprep.subr.mxu0 0.0
    %1004 = vmatpush2.msra.mxu0 0.0
    %1005 = vmatprep.subr.mxu0 0.0
    %1006 = vmatpush2.msra.mxu0 0.0
    %1007 = vmatprep.subr.mxu0 0.0
    %1008 = vmatpush2.msra.mxu0 0.0
    %1009 = vmatprep.subr.mxu0 0.0
    %1010 = vmatpush2.msra.mxu0 0.0
    %1011 = vmatprep.subr.mxu0 0.0
    %1012 = vmatpush2.msra.mxu0 0.0
    %1013 = vmatprep.subr.mxu0 0.0
    %1014 = vmatpush2.msra.mxu0 0.0
    %1015 = vmatprep.subr.mxu0 0.0
    %1016 = vmatpush2.msra.mxu0 0.0
    %1017 = vmatprep.subr.mxu0 0.0
    %1018 = vmatpush2.msra.mxu0 0.0
    %1019 = vmatprep.mubr.f32.mxu0 0.0
    %1020 = vmatmul.mubr.f32.gmra.mxu0 %v953
    %v1021 = vpop.f32.mrf.mxu0
    %v1022 = vadd.f32 0.0, %v1021
    %v1023 = vpop.f32.mrf.mxu0
    %v1024 = vadd.f32 0.0, %v1023
    %1025 = vdwg.mxu0
    %v1028 = vrot.slane %v1022, 2
    %v1029 = vrot.slane %v1024, 2
    %v1032 = vadd.f32 %v948, %v1028
    %v1033 = vadd.f32 %v949, %v1029
    %v1034 = vxor.u32 %v1032, 2147483648
    %v1035 = vmul.f32 %v1034, 1.442695
    %v1036 = vpow.pop %v1035
    %v1037 = vadd.f32 %v1036, 1.0
    %v1038 = vrcp.pop %v1037
    %v1039 = vmul.f32 1.0, %v1038
    %v1040 = vtanh.pop %v1033
    %v1041 = vxor.u32 %v1033, 2147483648
    %v1042 = vmul.f32 %v1041, 1.442695
    %v1043 = vpow.pop %v1042
    %v1044 = vadd.f32 %v1043, 1.0
    %v1045 = vrcp.pop %v1044
    %v1046 = vmul.f32 1.0, %v1045
    %v1048 = vrot.slane %v939, 6
    %v1050 = vmul.f32 %v1039, %v1048
    %v1051 = vmul.f32 %v1039, %v1040
    %1053 = vrot.lane.b32.xlu0 %v1051, 64
    %v1054 = vpop.permute.xlu0 %1053
    %v1056 = vadd.f32 %v1050, %v1054
    %v1057 = vtanh.pop %v1056
    %v1058 = vmul.f32 %v1046, %v1057
    %1060 = vrot.lane.b32.xlu0 %v1058, 64
    %v1061 = vpop.permute.xlu0 %1060
    %s1063 = scalar_lea.vmem %s4, 14
    %1064 = vst.msk [vmem:[%s1063 - $0x6] sm:$0xc0] %vm604, %v1061
    %1065 = vst.msk [vmem:[#allocation3 - $0x6] sm:$0xc0] %vm604, %v1061
    %1067 = vrot.lane.b32.xlu0 %v1056, 64
    %v1068 = vpop.permute.xlu0 %1067
    %1070 = vst.msk [vmem:[#allocation5 - $0x6] sm:$0xc0] %vm604, %v1068
    // Predicated region
    $region18: #{seq2seq_forward.4} parent=1 // pred_check
      _
    $region19: #{seq2seq_forward.4} parent=1 // pred_check_branch
      %1072 = sbr.rel (0) target = $region21
    $region20: #{seq2seq_forward.4} parent=1 // pred_region
      _
    $region21: #{seq2seq_forward.4} parent=1 // pred_fallthru
      _
    // Predicated region
    $region22: #{seq2seq_forward.4} parent=1 // pred_check
      _
    $region23: #{seq2seq_forward.4} parent=1 // pred_check_branch
      %1074 = sbr.rel (0) target = $region25
    $region24: #{seq2seq_forward.4} parent=1 // pred_region
      %s1076 = ssub.s32 32, 32
      %1077 = vsyncadd [#allocation4], %s1076
      %s1079 = sshll.u32 [#allocation3], 4
      %s1080 = int_to_ptr.vmem [resolvable:$true] %s1079
      %1082 = dma.vmem_to_hbm [thread:$0]  %s1080, 32, %s5, [#allocation4]
    $region25: #{seq2seq_forward.4} parent=1 // pred_fallthru
      _
    // Predicated region
    $region26: #{seq2seq_forward.4} parent=1 // pred_check
      _
    $region27: #{seq2seq_forward.4} parent=1 // pred_check_branch
      %1084 = sbr.rel (0) target = $region29
    $region28: #{seq2seq_forward.4} parent=1 // pred_region
      %s1086 = ssub.s32 32, 32
      %1087 = vsyncadd [#allocation6], %s1086
      %s1089 = sshll.u32 [#allocation5], 4
      %s1090 = int_to_ptr.vmem [resolvable:$true] %s1089
      %1092 = dma.vmem_to_hbm [thread:$0]  %s1090, 32, %s6, [#allocation6]
    $region29: #{seq2seq_forward.4} parent=1 // pred_fallthru
      _
    // Predicated region
    $region30: #{seq2seq_forward.4} parent=1 // pred_check
      _
    $region31: #{seq2seq_forward.4} parent=1 // pred_check_branch
      %1094 = sbr.rel (0) target = $region33
    $region32: #{seq2seq_forward.4} parent=1 // pred_region
      _
    $region33: #{seq2seq_forward.4} parent=1 // pred_fallthru
      _
    // Predicated region
    $region34: #{seq2seq_forward.4} parent=1 // pred_check
      _
    $region35: #{seq2seq_forward.4} parent=1 // pred_check_branch
      %1096 = sbr.rel (0) target = $region37
    $region36: #{seq2seq_forward.4} parent=1 // pred_region
      %1097 = dma.done [#allocation4], 32
    $region37: #{seq2seq_forward.4} parent=1 // pred_fallthru
      _
    // Predicated region
    $region38: #{seq2seq_forward.4} parent=1 // pred_check
      _
    $region39: #{seq2seq_forward.4} parent=1 // pred_check_branch
      %1099 = sbr.rel (0) target = $region41
    $region40: #{seq2seq_forward.4} parent=1 // pred_region
      %1100 = dma.done [#allocation6], 32
    $region41: #{seq2seq_forward.4} parent=1 // pred_fallthru
      _
    %1101 = vsyncpa [#allocation4], 1
    %1102 = vsyncpa [#allocation6], 1

// kernel: seq2seq_forward.3
$region0: #{seq2seq_forward.3}
  #allocation0 [shape = 'u32[]', space=smem, size = 0x4, offset = 0x4, fixed_abs, tag = 'smem constant byte address 0x4 - core index']
  #allocation1 [shape = 'u32[144,128]{1,0:T(1,128)}', space=vmem, size = 0x12000, scoped, tag = 'internal scratch']
  #allocation2 [shape = 'f32[20,256]{1,0:T(8,128)}', space=vmem, size = 0x6000, scoped, tag = 'scratch operand']
  %s0 = inlined_call_operand.vmem [shape: f32[20,32], index: 0, kind: input, shape index: {}]
  %s1 = inlined_call_operand.vmem [shape: f32[32,256], index: 1, kind: input, shape index: {}]
  %s2 = inlined_call_operand.vmem [shape: f32[1,256], index: 2, kind: input, shape index: {}]
  %s3 = inlined_call_operand.vmem [shape: f32[32,128], index: 3, kind: input, shape index: {}]
  %s4 = inlined_call_operand.vmem [shape: f32[32,128], index: 4, kind: input, shape index: {}]
  %s5 = inlined_call_operand.vmem [shape: f32[10,2,64], index: 5, kind: output, shape index: {}]
  %s6 = sld [smem:[#allocation0]]
  $region30: #{seq2seq_forward.3} parent=0
    _
  %s8 = ssub.s32 1, %s6
  %s9 = scalar_select 0, %s8, %s6
  // Predicated region
  $region2: #{seq2seq_forward.3} parent=0 // pred_check
    _
  $region3: #{seq2seq_forward.3} parent=0 // pred_check_branch
    %11 = sbr.rel (0) target = $region5
  $region4: #{seq2seq_forward.3} parent=0 // pred_region
    _
  $region5: #{seq2seq_forward.3} parent=0 // pred_fallthru
    _
  // Predicated region
  $region6: #{seq2seq_forward.3} parent=0 // pred_check
    _
  $region7: #{seq2seq_forward.3} parent=0 // pred_check_branch
    %13 = sbr.rel (0) target = $region9
  $region8: #{seq2seq_forward.3} parent=0 // pred_region
    _
  $region9: #{seq2seq_forward.3} parent=0 // pred_fallthru
    _
  // Predicated region
  $region10: #{seq2seq_forward.3} parent=0 // pred_check
    _
  $region11: #{seq2seq_forward.3} parent=0 // pred_check_branch
    %15 = sbr.rel (0) target = $region13
  $region12: #{seq2seq_forward.3} parent=0 // pred_region
    _
  $region13: #{seq2seq_forward.3} parent=0 // pred_fallthru
    _
  // Predicated region
  $region14: #{seq2seq_forward.3} parent=0 // pred_check
    _
  $region15: #{seq2seq_forward.3} parent=0 // pred_check_branch
    %17 = sbr.rel (0) target = $region17
  $region16: #{seq2seq_forward.3} parent=0 // pred_region
    _
  $region17: #{seq2seq_forward.3} parent=0 // pred_fallthru
    _
  // Predicated region
  $region18: #{seq2seq_forward.3} parent=0 // pred_check
    _
  $region19: #{seq2seq_forward.3} parent=0 // pred_check_branch
    %19 = sbr.rel (0) target = $region21
  $region20: #{seq2seq_forward.3} parent=0 // pred_region
    _
  $region21: #{seq2seq_forward.3} parent=0 // pred_fallthru
    _
  %v20 = vld [vmem:[%s0] sm:$0xff]
  %v21 = vld [vmem:[%s0 + $0x8] sm:$0xff]
  %v22 = vld [vmem:[%s0 + $0x10] sm:$0xf]
  %v23 = vld [vmem:[%s1] sm:$0xff]
  %v24 = vld [vmem:[%s1 + $0x8] sm:$0xff]
  %v25 = vld [vmem:[%s1 + $0x10] sm:$0xff]
  %v26 = vld [vmem:[%s1 + $0x18] sm:$0xff]
  %v27 = vld [vmem:[%s1 + $0x20] sm:$0xff]
  %v28 = vld [vmem:[%s1 + $0x28] sm:$0xff]
  %v29 = vld [vmem:[%s1 + $0x30] sm:$0xff]
  %v30 = vld [vmem:[%s1 + $0x38] sm:$0xff]
  %v31 = vld [vmem:[%s2] sm:$0x3]
  %v33 = vlaneseq
  %v34 = vshrl.u32 %v33, 7
  %v35 = vsub.s32 0, %v34
  %v36 = vrot.slane %v31, %v35
  %v37 = vlaneseq
  %v38 = vshrl.u32 %v37, 7
  %v39 = vsub.s32 1, %v38
  %v40 = vrot.slane %v31, %v39
  %vm43 = vcmask 261120
  %v45 = vsel %vm43, %v20, 0
  %v48 = vsel %vm43, %v21, 0
  %v51 = vsel %vm43, %v22, 0
  %53 = vmatprep.subr.mxu0 0.0
  %54 = vmatpush1.msra.mxu0 0.0
  %55 = vmatprep.subr.mxu0 0.0
  %56 = vmatpush1.msra.mxu0 0.0
  %57 = vmatprep.subr.mxu0 0.0
  %58 = vmatpush1.msra.mxu0 0.0
  %59 = vmatprep.subr.mxu0 0.0
  %60 = vmatpush1.msra.mxu0 0.0
  %61 = vmatprep.subr.mxu0 0.0
  %62 = vmatpush1.msra.mxu0 0.0
  %63 = vmatprep.subr.mxu0 0.0
  %64 = vmatpush1.msra.mxu0 0.0
  %65 = vmatprep.subr.mxu0 0.0
  %66 = vmatpush1.msra.mxu0 0.0
  %67 = vmatprep.subr.mxu0 0.0
  %68 = vmatpush1.msra.mxu0 0.0
  %69 = vmatprep.subr.mxu0 0.0
  %70 = vmatpush1.msra.mxu0 0.0
  %71 = vmatprep.subr.mxu0 0.0
  %72 = vmatpush1.msra.mxu0 0.0
  %73 = vmatprep.subr.mxu0 0.0
  %74 = vmatpush1.msra.mxu0 0.0
  %75 = vmatprep.subr.mxu0 0.0
  %76 = vmatpush1.msra.mxu0 0.0
  %77 = vmatprep.subr.mxu0 %v30
  %78 = vmatpush1.msra.mxu0 %v29
  %79 = vmatprep.subr.mxu0 %v28
  %80 = vmatpush1.msra.mxu0 %v27
  %81 = vmatprep.subr.mxu0 %v26
  %82 = vmatpush1.msra.mxu0 %v25
  %83 = vmatprep.subr.mxu0 %v24
  %84 = vmatpush1.msra.mxu0 %v23
  %85 = vmatprep.subr.mxu0 0.0
  %86 = vmatpush2.msra.mxu0 0.0
  %87 = vmatprep.subr.mxu0 0.0
  %88 = vmatpush2.msra.mxu0 0.0
  %89 = vmatprep.subr.mxu0 0.0
  %90 = vmatpush2.msra.mxu0 0.0
  %91 = vmatprep.subr.mxu0 0.0
  %92 = vmatpush2.msra.mxu0 0.0
  %93 = vmatprep.subr.mxu0 0.0
  %94 = vmatpush2.msra.mxu0 0.0
  %95 = vmatprep.subr.mxu0 0.0
  %96 = vmatpush2.msra.mxu0 0.0
  %97 = vmatprep.subr.mxu0 0.0
  %98 = vmatpush2.msra.mxu0 0.0
  %99 = vmatprep.subr.mxu0 0.0
  %100 = vmatpush2.msra.mxu0 0.0
  %101 = vmatprep.subr.mxu0 0.0
  %102 = vmatpush2.msra.mxu0 0.0
  %103 = vmatprep.subr.mxu0 0.0
  %104 = vmatpush2.msra.mxu0 0.0
  %105 = vmatprep.subr.mxu0 0.0
  %106 = vmatpush2.msra.mxu0 0.0
  %107 = vmatprep.subr.mxu0 0.0
  %108 = vmatpush2.msra.mxu0 0.0
  %109 = vmatprep.subr.mxu0 0.0
  %110 = vmatpush2.msra.mxu0 0.0
  %111 = vmatprep.subr.mxu0 0.0
  %112 = vmatpush2.msra.mxu0 0.0
  %113 = vmatprep.subr.mxu0 0.0
  %114 = vmatpush2.msra.mxu0 0.0
  %115 = vmatprep.subr.mxu0 0.0
  %116 = vmatpush2.msra.mxu0 0.0
  %117 = vmatprep.mubr.f32.mxu0 0.0
  %118 = vmatmul.mubr.f32.gmra.mxu0 %v45
  %v119 = vpop.f32.mrf.mxu0
  %v120 = vadd.f32 %v36, %v119
  %v121 = vpop.f32.mrf.mxu0
  %v122 = vadd.f32 %v40, %v121
  %123 = vmatprep.mubr.f32.mxu0 0.0
  %124 = vmatmul.mubr.f32.gmra.mxu0 %v48
  %v125 = vpop.f32.mrf.mxu0
  %v126 = vadd.f32 %v36, %v125
  %v127 = vpop.f32.mrf.mxu0
  %v128 = vadd.f32 %v40, %v127
  %129 = vmatprep.mubr.f32.mxu0 0.0
  %130 = vmatmul.mubr.f32.gmra.mxu0 %v51
  %v131 = vpop.f32.mrf.mxu0
  %v132 = vadd.f32 %v36, %v131
  %v133 = vpop.f32.mrf.mxu0
  %v134 = vadd.f32 %v40, %v133
  %135 = vdwg.mxu0
  %136 = vst [vmem:[#allocation2] sm:$0xff] %v120
  %137 = vst [vmem:[#allocation2 + $0x8] sm:$0xff] %v122
  %138 = vst [vmem:[#allocation2 + $0x10] sm:$0xff] %v126
  %139 = vst [vmem:[#allocation2 + $0x18] sm:$0xff] %v128
  %140 = vst [vmem:[#allocation2 + $0x20] sm:$0xf] %v132
  %141 = vst [vmem:[#allocation2 + $0x28] sm:$0xf] %v134
  %v142 = vld [vmem:[%s3] sm:$0xff]
  %v143 = vld [vmem:[%s3 + $0x8] sm:$0xff]
  %v144 = vld [vmem:[%s3 + $0x10] sm:$0xff]
  %v145 = vld [vmem:[%s3 + $0x18] sm:$0xff]
  %v146 = vld [vmem:[%s4] sm:$0xff]
  %v147 = vld [vmem:[%s4 + $0x8] sm:$0xff]
  %v148 = vld [vmem:[%s4 + $0x10] sm:$0xff]
  %v149 = vld [vmem:[%s4 + $0x18] sm:$0xff]
  %v150 = vld [vmem:[#allocation2] sm:$0x3]
  %v151 = vld [vmem:[#allocation2 + $0x28] sm:$0xc]
  %v153 = vsel %vm43, 0.0, 0
  %155 = vmatprep.subr.mxu0 0.0
  %156 = vmatpush1.msra.mxu0 0.0
  %157 = vmatprep.subr.mxu0 0.0
  %158 = vmatpush1.msra.mxu0 0.0
  %159 = vmatprep.subr.mxu0 0.0
  %160 = vmatpush1.msra.mxu0 0.0
  %161 = vmatprep.subr.mxu0 0.0
  %162 = vmatpush1.msra.mxu0 0.0
  %163 = vmatprep.subr.mxu0 0.0
  %164 = vmatpush1.msra.mxu0 0.0
  %165 = vmatprep.subr.mxu0 0.0
  %166 = vmatpush1.msra.mxu0 0.0
  %167 = vmatprep.subr.mxu0 0.0
  %168 = vmatpush1.msra.mxu0 0.0
  %169 = vmatprep.subr.mxu0 0.0
  %170 = vmatpush1.msra.mxu0 0.0
  %171 = vmatprep.subr.mxu0 0.0
  %172 = vmatpush1.msra.mxu0 0.0
  %173 = vmatprep.subr.mxu0 0.0
  %174 = vmatpush1.msra.mxu0 0.0
  %175 = vmatprep.subr.mxu0 0.0
  %176 = vmatpush1.msra.mxu0 0.0
  %177 = vmatprep.subr.mxu0 0.0
  %178 = vmatpush1.msra.mxu0 0.0
  %179 = vmatprep.subr.mxu0 0.0
  %180 = vmatpush1.msra.mxu0 %v145
  %181 = vmatprep.subr.mxu0 0.0
  %182 = vmatpush1.msra.mxu0 %v144
  %183 = vmatprep.subr.mxu0 0.0
  %184 = vmatpush1.msra.mxu0 %v143
  %185 = vmatprep.subr.mxu0 0.0
  %186 = vmatpush1.msra.mxu0 %v142
  %187 = vmatprep.subr.mxu0 0.0
  %188 = vmatpush2.msra.mxu0 0.0
  %189 = vmatprep.subr.mxu0 0.0
  %190 = vmatpush2.msra.mxu0 0.0
  %191 = vmatprep.subr.mxu0 0.0
  %192 = vmatpush2.msra.mxu0 0.0
  %193 = vmatprep.subr.mxu0 0.0
  %194 = vmatpush2.msra.mxu0 0.0
  %195 = vmatprep.subr.mxu0 0.0
  %196 = vmatpush2.msra.mxu0 0.0
  %197 = vmatprep.subr.mxu0 0.0
  %198 = vmatpush2.msra.mxu0 0.0
  %199 = vmatprep.subr.mxu0 0.0
  %200 = vmatpush2.msra.mxu0 0.0
  %201 = vmatprep.subr.mxu0 0.0
  %202 = vmatpush2.msra.mxu0 0.0
  %203 = vmatprep.subr.mxu0 0.0
  %204 = vmatpush2.msra.mxu0 0.0
  %205 = vmatprep.subr.mxu0 0.0
  %206 = vmatpush2.msra.mxu0 0.0
  %207 = vmatprep.subr.mxu0 0.0
  %208 = vmatpush2.msra.mxu0 0.0
  %209 = vmatprep.subr.mxu0 0.0
  %210 = vmatpush2.msra.mxu0 0.0
  %211 = vmatprep.subr.mxu0 0.0
  %212 = vmatpush2.msra.mxu0 0.0
  %213 = vmatprep.subr.mxu0 0.0
  %214 = vmatpush2.msra.mxu0 0.0
  %215 = vmatprep.subr.mxu0 0.0
  %216 = vmatpush2.msra.mxu0 0.0
  %217 = vmatprep.subr.mxu0 0.0
  %218 = vmatpush2.msra.mxu0 0.0
  %219 = vmatprep.mubr.f32.mxu0 0.0
  %220 = vmatmul.mubr.f32.gmra.mxu0 %v153
  %v221 = vpop.f32.mrf.mxu0
  %v222 = vadd.f32 0.0, %v221
  %v223 = vpop.f32.mrf.mxu0
  %224 = vdwg.mxu0
  %v225 = vadd.f32 %v150, %v222
  %226 = vmatprep.subr.mxu0 0.0
  %227 = vmatpush1.msra.mxu0 0.0
  %228 = vmatprep.subr.mxu0 0.0
  %229 = vmatpush1.msra.mxu0 0.0
  %230 = vmatprep.subr.mxu0 0.0
  %231 = vmatpush1.msra.mxu0 0.0
  %232 = vmatprep.subr.mxu0 0.0
  %233 = vmatpush1.msra.mxu0 0.0
  %234 = vmatprep.subr.mxu0 0.0
  %235 = vmatpush1.msra.mxu0 0.0
  %236 = vmatprep.subr.mxu0 0.0
  %237 = vmatpush1.msra.mxu0 0.0
  %238 = vmatprep.subr.mxu0 0.0
  %239 = vmatpush1.msra.mxu0 0.0
  %240 = vmatprep.subr.mxu0 0.0
  %241 = vmatpush1.msra.mxu0 0.0
  %242 = vmatprep.subr.mxu0 0.0
  %243 = vmatpush1.msra.mxu0 0.0
  %244 = vmatprep.subr.mxu0 0.0
  %245 = vmatpush1.msra.mxu0 0.0
  %246 = vmatprep.subr.mxu0 0.0
  %247 = vmatpush1.msra.mxu0 0.0
  %248 = vmatprep.subr.mxu0 0.0
  %249 = vmatpush1.msra.mxu0 0.0
  %250 = vmatprep.subr.mxu0 0.0
  %251 = vmatpush1.msra.mxu0 %v149
  %252 = vmatprep.subr.mxu0 0.0
  %253 = vmatpush1.msra.mxu0 %v148
  %254 = vmatprep.subr.mxu0 0.0
  %255 = vmatpush1.msra.mxu0 %v147
  %256 = vmatprep.subr.mxu0 0.0
  %257 = vmatpush1.msra.mxu0 %v146
  %258 = vmatprep.subr.mxu0 0.0
  %259 = vmatpush2.msra.mxu0 0.0
  %260 = vmatprep.subr.mxu0 0.0
  %261 = vmatpush2.msra.mxu0 0.0
  %262 = vmatprep.subr.mxu0 0.0
  %263 = vmatpush2.msra.mxu0 0.0
  %264 = vmatprep.subr.mxu0 0.0
  %265 = vmatpush2.msra.mxu0 0.0
  %266 = vmatprep.subr.mxu0 0.0
  %267 = vmatpush2.msra.mxu0 0.0
  %268 = vmatprep.subr.mxu0 0.0
  %269 = vmatpush2.msra.mxu0 0.0
  %270 = vmatprep.subr.mxu0 0.0
  %271 = vmatpush2.msra.mxu0 0.0
  %272 = vmatprep.subr.mxu0 0.0
  %273 = vmatpush2.msra.mxu0 0.0
  %274 = vmatprep.subr.mxu0 0.0
  %275 = vmatpush2.msra.mxu0 0.0
  %276 = vmatprep.subr.mxu0 0.0
  %277 = vmatpush2.msra.mxu0 0.0
  %278 = vmatprep.subr.mxu0 0.0
  %279 = vmatpush2.msra.mxu0 0.0
  %280 = vmatprep.subr.mxu0 0.0
  %281 = vmatpush2.msra.mxu0 0.0
  %282 = vmatprep.subr.mxu0 0.0
  %283 = vmatpush2.msra.mxu0 0.0
  %284 = vmatprep.subr.mxu0 0.0
  %285 = vmatpush2.msra.mxu0 0.0
  %286 = vmatprep.subr.mxu0 0.0
  %287 = vmatpush2.msra.mxu0 0.0
  %288 = vmatprep.subr.mxu0 0.0
  %289 = vmatpush2.msra.mxu0 0.0
  %290 = vmatprep.mubr.f32.mxu0 0.0
  %291 = vmatmul.mubr.f32.gmra.mxu0 %v153
  %v292 = vpop.f32.mrf.mxu0
  %v293 = vadd.f32 0.0, %v292
  %v294 = vpop.f32.mrf.mxu0
  %295 = vdwg.mxu0
  %v297 = vrot.slane %v293, 6
  %v299 = vadd.f32 %v151, %v297
  %v300 = vxor.u32 %v225, 2147483648
  %v301 = vmul.f32 %v300, 1.442695
  %v302 = vpow.pop %v301
  %v303 = vadd.f32 %v302, 1.0
  %v304 = vrcp.pop %v303
  %v305 = vmul.f32 1.0, %v304
  %v306 = vtanh.pop %v225
  %v307 = vmul.f32 %v305, 0.0
  %309 = vrot.lane.b32.xlu0 %v306, 64
  %v310 = vpop.permute.xlu0 %309
  %v312 = vmul.f32 %v305, %v310
  %314 = vrot.lane.b32.xlu0 %v312, 32
  %v315 = vpop.permute.xlu0 %314
  %v317 = vadd.f32 %v307, %v315
  %v318 = vtanh.pop %v317
  %320 = vrot.lane.b32.xlu0 %v318, 64
  %v321 = vpop.permute.xlu0 %320
  %v323 = vmul.f32 %v305, %v321
  %v324 = vxor.u32 %v299, 2147483648
  %v325 = vmul.f32 %v324, 1.442695
  %v326 = vpow.pop %v325
  %v327 = vadd.f32 %v326, 1.0
  %v328 = vrcp.pop %v327
  %v329 = vmul.f32 1.0, %v328
  %v330 = vtanh.pop %v299
  %v331 = vmul.f32 %v329, 0.0
  %333 = vrot.lane.b32.xlu0 %v330, 64
  %v334 = vpop.permute.xlu0 %333
  %v336 = vmul.f32 %v329, %v334
  %338 = vrot.lane.b32.xlu0 %v336, 32
  %v339 = vpop.permute.xlu0 %338
  %v341 = vadd.f32 %v331, %v339
  %v342 = vtanh.pop %v341
  %344 = vrot.lane.b32.xlu0 %v342, 64
  %v345 = vpop.permute.xlu0 %344
  %v347 = vmul.f32 %v329, %v345
  %349 = vrot.lane.b32.xlu0 %v323, 32
  %v350 = vpop.permute.xlu0 %349
  %vm352 = vcmask 254976
  %353 = vst.msk [vmem:[%s5] sm:$0x3] %vm352, %v350
  %355 = vrot.lane.b32.xlu0 %v347, 64
  %v356 = vpop.permute.xlu0 %355
  %s358 = scalar_lea.vmem %s5, 18
  %vm359 = vcmask 519426
  %360 = vst.msk [vmem:[%s358 - $0x2] sm:$0xc] %vm359, %v356
  %v361 = vld [vmem:[#allocation2] sm:$0xc]
  %v362 = vld [vmem:[#allocation2 + $0x28] sm:$0x3]
  %v363 = vsel %vm43, %v350, 0
  %365 = vmatprep.subr.mxu0 0.0
  %366 = vmatpush1.msra.mxu0 0.0
  %367 = vmatprep.subr.mxu0 0.0
  %368 = vmatpush1.msra.mxu0 0.0
  %369 = vmatprep.subr.mxu0 0.0
  %370 = vmatpush1.msra.mxu0 0.0
  %371 = vmatprep.subr.mxu0 0.0
  %372 = vmatpush1.msra.mxu0 0.0
  %373 = vmatprep.subr.mxu0 0.0
  %374 = vmatpush1.msra.mxu0 0.0
  %375 = vmatprep.subr.mxu0 0.0
  %376 = vmatpush1.msra.mxu0 0.0
  %377 = vmatprep.subr.mxu0 0.0
  %378 = vmatpush1.msra.mxu0 0.0
  %379 = vmatprep.subr.mxu0 0.0
  %380 = vmatpush1.msra.mxu0 0.0
  %381 = vmatprep.subr.mxu0 0.0
  %382 = vmatpush1.msra.mxu0 0.0
  %383 = vmatprep.subr.mxu0 0.0
  %384 = vmatpush1.msra.mxu0 0.0
  %385 = vmatprep.subr.mxu0 0.0
  %386 = vmatpush1.msra.mxu0 0.0
  %387 = vmatprep.subr.mxu0 0.0
  %388 = vmatpush1.msra.mxu0 0.0
  %389 = vmatprep.subr.mxu0 0.0
  %390 = vmatpush1.msra.mxu0 %v145
  %391 = vmatprep.subr.mxu0 0.0
  %392 = vmatpush1.msra.mxu0 %v144
  %393 = vmatprep.subr.mxu0 0.0
  %394 = vmatpush1.msra.mxu0 %v143
  %395 = vmatprep.subr.mxu0 0.0
  %396 = vmatpush1.msra.mxu0 %v142
  %397 = vmatprep.subr.mxu0 0.0
  %398 = vmatpush2.msra.mxu0 0.0
  %399 = vmatprep.subr.mxu0 0.0
  %400 = vmatpush2.msra.mxu0 0.0
  %401 = vmatprep.subr.mxu0 0.0
  %402 = vmatpush2.msra.mxu0 0.0
  %403 = vmatprep.subr.mxu0 0.0
  %404 = vmatpush2.msra.mxu0 0.0
  %405 = vmatprep.subr.mxu0 0.0
  %406 = vmatpush2.msra.mxu0 0.0
  %407 = vmatprep.subr.mxu0 0.0
  %408 = vmatpush2.msra.mxu0 0.0
  %409 = vmatprep.subr.mxu0 0.0
  %410 = vmatpush2.msra.mxu0 0.0
  %411 = vmatprep.subr.mxu0 0.0
  %412 = vmatpush2.msra.mxu0 0.0
  %413 = vmatprep.subr.mxu0 0.0
  %414 = vmatpush2.msra.mxu0 0.0
  %415 = vmatprep.subr.mxu0 0.0
  %416 = vmatpush2.msra.mxu0 0.0
  %417 = vmatprep.subr.mxu0 0.0
  %418 = vmatpush2.msra.mxu0 0.0
  %419 = vmatprep.subr.mxu0 0.0
  %420 = vmatpush2.msra.mxu0 0.0
  %421 = vmatprep.subr.mxu0 0.0
  %422 = vmatpush2.msra.mxu0 0.0
  %423 = vmatprep.subr.mxu0 0.0
  %424 = vmatpush2.msra.mxu0 0.0
  %425 = vmatprep.subr.mxu0 0.0
  %426 = vmatpush2.msra.mxu0 0.0
  %427 = vmatprep.subr.mxu0 0.0
  %428 = vmatpush2.msra.mxu0 0.0
  %429 = vmatprep.mubr.f32.mxu0 0.0
  %430 = vmatmul.mubr.f32.gmra.mxu0 %v363
  %v431 = vpop.f32.mrf.mxu0
  %v432 = vadd.f32 0.0, %v431
  %v433 = vpop.f32.mrf.mxu0
  %434 = vdwg.mxu0
  %v436 = vrot.slane %v432, 6
  %v438 = vadd.f32 %v361, %v436
  %v439 = vrot.slane %v347, 2
  %440 = vrot.lane.b32.xlu0 %v439, 32
  %v441 = vpop.permute.xlu0 %440
  %v442 = vsel %vm43, %v441, 0
  %444 = vmatprep.subr.mxu0 0.0
  %445 = vmatpush1.msra.mxu0 0.0
  %446 = vmatprep.subr.mxu0 0.0
  %447 = vmatpush1.msra.mxu0 0.0
  %448 = vmatprep.subr.mxu0 0.0
  %449 = vmatpush1.msra.mxu0 0.0
  %450 = vmatprep.subr.mxu0 0.0
  %451 = vmatpush1.msra.mxu0 0.0
  %452 = vmatprep.subr.mxu0 0.0
  %453 = vmatpush1.msra.mxu0 0.0
  %454 = vmatprep.subr.mxu0 0.0
  %455 = vmatpush1.msra.mxu0 0.0
  %456 = vmatprep.subr.mxu0 0.0
  %457 = vmatpush1.msra.mxu0 0.0
  %458 = vmatprep.subr.mxu0 0.0
  %459 = vmatpush1.msra.mxu0 0.0
  %460 = vmatprep.subr.mxu0 0.0
  %461 = vmatpush1.msra.mxu0 0.0
  %462 = vmatprep.subr.mxu0 0.0
  %463 = vmatpush1.msra.mxu0 0.0
  %464 = vmatprep.subr.mxu0 0.0
  %465 = vmatpush1.msra.mxu0 0.0
  %466 = vmatprep.subr.mxu0 0.0
  %467 = vmatpush1.msra.mxu0 0.0
  %468 = vmatprep.subr.mxu0 0.0
  %469 = vmatpush1.msra.mxu0 %v149
  %470 = vmatprep.subr.mxu0 0.0
  %471 = vmatpush1.msra.mxu0 %v148
  %472 = vmatprep.subr.mxu0 0.0
  %473 = vmatpush1.msra.mxu0 %v147
  %474 = vmatprep.subr.mxu0 0.0
  %475 = vmatpush1.msra.mxu0 %v146
  %476 = vmatprep.subr.mxu0 0.0
  %477 = vmatpush2.msra.mxu0 0.0
  %478 = vmatprep.subr.mxu0 0.0
  %479 = vmatpush2.msra.mxu0 0.0
  %480 = vmatprep.subr.mxu0 0.0
  %481 = vmatpush2.msra.mxu0 0.0
  %482 = vmatprep.subr.mxu0 0.0
  %483 = vmatpush2.msra.mxu0 0.0
  %484 = vmatprep.subr.mxu0 0.0
  %485 = vmatpush2.msra.mxu0 0.0
  %486 = vmatprep.subr.mxu0 0.0
  %487 = vmatpush2.msra.mxu0 0.0
  %488 = vmatprep.subr.mxu0 0.0
  %489 = vmatpush2.msra.mxu0 0.0
  %490 = vmatprep.subr.mxu0 0.0
  %491 = vmatpush2.msra.mxu0 0.0
  %492 = vmatprep.subr.mxu0 0.0
  %493 = vmatpush2.msra.mxu0 0.0
  %494 = vmatprep.subr.mxu0 0.0
  %495 = vmatpush2.msra.mxu0 0.0
  %496 = vmatprep.subr.mxu0 0.0
  %497 = vmatpush2.msra.mxu0 0.0
  %498 = vmatprep.subr.mxu0 0.0
  %499 = vmatpush2.msra.mxu0 0.0
  %500 = vmatprep.subr.mxu0 0.0
  %501 = vmatpush2.msra.mxu0 0.0
  %502 = vmatprep.subr.mxu0 0.0
  %503 = vmatpush2.msra.mxu0 0.0
  %504 = vmatprep.subr.mxu0 0.0
  %505 = vmatpush2.msra.mxu0 0.0
  %506 = vmatprep.subr.mxu0 0.0
  %507 = vmatpush2.msra.mxu0 0.0
  %508 = vmatprep.mubr.f32.mxu0 0.0
  %509 = vmatmul.mubr.f32.gmra.mxu0 %v442
  %v510 = vpop.f32.mrf.mxu0
  %v511 = vadd.f32 0.0, %v510
  %v512 = vpop.f32.mrf.mxu0
  %513 = vdwg.mxu0
  %v514 = vadd.f32 %v362, %v511
  %v515 = vxor.u32 %v438, 2147483648
  %v516 = vmul.f32 %v515, 1.442695
  %v517 = vpow.pop %v516
  %v518 = vadd.f32 %v517, 1.0
  %v519 = vrcp.pop %v518
  %v520 = vmul.f32 1.0, %v519
  %v521 = vtanh.pop %v438
  %v523 = vrot.slane %v317, 6
  %v525 = vmul.f32 %v520, %v523
  %527 = vrot.lane.b32.xlu0 %v521, 64
  %v528 = vpop.permute.xlu0 %527
  %v530 = vmul.f32 %v520, %v528
  %532 = vrot.lane.b32.xlu0 %v530, 32
  %v533 = vpop.permute.xlu0 %532
  %v535 = vadd.f32 %v525, %v533
  %v536 = vtanh.pop %v535
  %538 = vrot.lane.b32.xlu0 %v536, 64
  %v539 = vpop.permute.xlu0 %538
  %v541 = vmul.f32 %v520, %v539
  %v542 = vxor.u32 %v514, 2147483648
  %v543 = vmul.f32 %v542, 1.442695
  %v544 = vpow.pop %v543
  %v545 = vadd.f32 %v544, 1.0
  %v546 = vrcp.pop %v545
  %v547 = vmul.f32 1.0, %v546
  %v548 = vtanh.pop %v514
  %v550 = vrot.slane %v341, 2
  %v552 = vmul.f32 %v547, %v550
  %554 = vrot.lane.b32.xlu0 %v548, 64
  %v555 = vpop.permute.xlu0 %554
  %v557 = vmul.f32 %v547, %v555
  %559 = vrot.lane.b32.xlu0 %v557, 32
  %v560 = vpop.permute.xlu0 %559
  %v562 = vadd.f32 %v552, %v560
  %v563 = vtanh.pop %v562
  %565 = vrot.lane.b32.xlu0 %v563, 64
  %v566 = vpop.permute.xlu0 %565
  %v568 = vmul.f32 %v547, %v566
  %570 = vrot.lane.b32.xlu0 %v541, 32
  %v571 = vpop.permute.xlu0 %570
  %s573 = scalar_lea.vmem %s5, 2
  %vm574 = vcmask 257026
  %575 = vst.msk [vmem:[%s573 - $0x2] sm:$0xc] %vm574, %v571
  %577 = vrot.lane.b32.xlu0 %v568, 64
  %v578 = vpop.permute.xlu0 %577
  %s580 = scalar_lea.vmem %s5, 16
  %vm581 = vcmask 517376
  %582 = vst.msk [vmem:[%s580] sm:$0x3] %vm581, %v578
  %v583 = vld [vmem:[#allocation2] sm:$0x30]
  %v584 = vld [vmem:[#allocation2 + $0x18] sm:$0xc0]
  %v585 = vrot.slane %v541, 2
  %586 = vrot.lane.b32.xlu0 %v585, 32
  %v587 = vpop.permute.xlu0 %586
  %v588 = vsel %vm43, %v587, 0
  %590 = vmatprep.subr.mxu0 0.0
  %591 = vmatpush1.msra.mxu0 0.0
  %592 = vmatprep.subr.mxu0 0.0
  %593 = vmatpush1.msra.mxu0 0.0
  %594 = vmatprep.subr.mxu0 0.0
  %595 = vmatpush1.msra.mxu0 0.0
  %596 = vmatprep.subr.mxu0 0.0
  %597 = vmatpush1.msra.mxu0 0.0
  %598 = vmatprep.subr.mxu0 0.0
  %599 = vmatpush1.msra.mxu0 0.0
  %600 = vmatprep.subr.mxu0 0.0
  %601 = vmatpush1.msra.mxu0 0.0
  %602 = vmatprep.subr.mxu0 0.0
  %603 = vmatpush1.msra.mxu0 0.0
  %604 = vmatprep.subr.mxu0 0.0
  %605 = vmatpush1.msra.mxu0 0.0
  %606 = vmatprep.subr.mxu0 0.0
  %607 = vmatpush1.msra.mxu0 0.0
  %608 = vmatprep.subr.mxu0 0.0
  %609 = vmatpush1.msra.mxu0 0.0
  %610 = vmatprep.subr.mxu0 0.0
  %611 = vmatpush1.msra.mxu0 0.0
  %612 = vmatprep.subr.mxu0 0.0
  %613 = vmatpush1.msra.mxu0 0.0
  %614 = vmatprep.subr.mxu0 0.0
  %615 = vmatpush1.msra.mxu0 %v145
  %616 = vmatprep.subr.mxu0 0.0
  %617 = vmatpush1.msra.mxu0 %v144
  %618 = vmatprep.subr.mxu0 0.0
  %619 = vmatpush1.msra.mxu0 %v143
  %620 = vmatprep.subr.mxu0 0.0
  %621 = vmatpush1.msra.mxu0 %v142
  %622 = vmatprep.subr.mxu0 0.0
  %623 = vmatpush2.msra.mxu0 0.0
  %624 = vmatprep.subr.mxu0 0.0
  %625 = vmatpush2.msra.mxu0 0.0
  %626 = vmatprep.subr.mxu0 0.0
  %627 = vmatpush2.msra.mxu0 0.0
  %628 = vmatprep.subr.mxu0 0.0
  %629 = vmatpush2.msra.mxu0 0.0
  %630 = vmatprep.subr.mxu0 0.0
  %631 = vmatpush2.msra.mxu0 0.0
  %632 = vmatprep.subr.mxu0 0.0
  %633 = vmatpush2.msra.mxu0 0.0
  %634 = vmatprep.subr.mxu0 0.0
  %635 = vmatpush2.msra.mxu0 0.0
  %636 = vmatprep.subr.mxu0 0.0
  %637 = vmatpush2.msra.mxu0 0.0
  %638 = vmatprep.subr.mxu0 0.0
  %639 = vmatpush2.msra.mxu0 0.0
  %640 = vmatprep.subr.mxu0 0.0
  %641 = vmatpush2.msra.mxu0 0.0
  %642 = vmatprep.subr.mxu0 0.0
  %643 = vmatpush2.msra.mxu0 0.0
  %644 = vmatprep.subr.mxu0 0.0
  %645 = vmatpush2.msra.mxu0 0.0
  %646 = vmatprep.subr.mxu0 0.0
  %647 = vmatpush2.msra.mxu0 0.0
  %648 = vmatprep.subr.mxu0 0.0
  %649 = vmatpush2.msra.mxu0 0.0
  %650 = vmatprep.subr.mxu0 0.0
  %651 = vmatpush2.msra.mxu0 0.0
  %652 = vmatprep.subr.mxu0 0.0
  %653 = vmatpush2.msra.mxu0 0.0
  %654 = vmatprep.mubr.f32.mxu0 0.0
  %655 = vmatmul.mubr.f32.gmra.mxu0 %v588
  %v656 = vpop.f32.mrf.mxu0
  %v657 = vadd.f32 0.0, %v656
  %v658 = vpop.f32.mrf.mxu0
  %659 = vdwg.mxu0
  %v661 = vrot.slane %v657, 4
  %v663 = vadd.f32 %v583, %v661
  %664 = vrot.lane.b32.xlu0 %v568, 32
  %v665 = vpop.permute.xlu0 %664
  %v666 = vsel %vm43, %v665, 0
  %668 = vmatprep.subr.mxu0 0.0
  %669 = vmatpush1.msra.mxu0 0.0
  %670 = vmatprep.subr.mxu0 0.0
  %671 = vmatpush1.msra.mxu0 0.0
  %672 = vmatprep.subr.mxu0 0.0
  %673 = vmatpush1.msra.mxu0 0.0
  %674 = vmatprep.subr.mxu0 0.0
  %675 = vmatpush1.msra.mxu0 0.0
  %676 = vmatprep.subr.mxu0 0.0
  %677 = vmatpush1.msra.mxu0 0.0
  %678 = vmatprep.subr.mxu0 0.0
  %679 = vmatpush1.msra.mxu0 0.0
  %680 = vmatprep.subr.mxu0 0.0
  %681 = vmatpush1.msra.mxu0 0.0
  %682 = vmatprep.subr.mxu0 0.0
  %683 = vmatpush1.msra.mxu0 0.0
  %684 = vmatprep.subr.mxu0 0.0
  %685 = vmatpush1.msra.mxu0 0.0
  %686 = vmatprep.subr.mxu0 0.0
  %687 = vmatpush1.msra.mxu0 0.0
  %688 = vmatprep.subr.mxu0 0.0
  %689 = vmatpush1.msra.mxu0 0.0
  %690 = vmatprep.subr.mxu0 0.0
  %691 = vmatpush1.msra.mxu0 0.0
  %692 = vmatprep.subr.mxu0 0.0
  %693 = vmatpush1.msra.mxu0 %v149
  %694 = vmatprep.subr.mxu0 0.0
  %695 = vmatpush1.msra.mxu0 %v148
  %696 = vmatprep.subr.mxu0 0.0
  %697 = vmatpush1.msra.mxu0 %v147
  %698 = vmatprep.subr.mxu0 0.0
  %699 = vmatpush1.msra.mxu0 %v146
  %700 = vmatprep.subr.mxu0 0.0
  %701 = vmatpush2.msra.mxu0 0.0
  %702 = vmatprep.subr.mxu0 0.0
  %703 = vmatpush2.msra.mxu0 0.0
  %704 = vmatprep.subr.mxu0 0.0
  %705 = vmatpush2.msra.mxu0 0.0
  %706 = vmatprep.subr.mxu0 0.0
  %707 = vmatpush2.msra.mxu0 0.0
  %708 = vmatprep.subr.mxu0 0.0
  %709 = vmatpush2.msra.mxu0 0.0
  %710 = vmatprep.subr.mxu0 0.0
  %711 = vmatpush2.msra.mxu0 0.0
  %712 = vmatprep.subr.mxu0 0.0
  %713 = vmatpush2.msra.mxu0 0.0
  %714 = vmatprep.subr.mxu0 0.0
  %715 = vmatpush2.msra.mxu0 0.0
  %716 = vmatprep.subr.mxu0 0.0
  %717 = vmatpush2.msra.mxu0 0.0
  %718 = vmatprep.subr.mxu0 0.0
  %719 = vmatpush2.msra.mxu0 0.0
  %720 = vmatprep.subr.mxu0 0.0
  %721 = vmatpush2.msra.mxu0 0.0
  %722 = vmatprep.subr.mxu0 0.0
  %723 = vmatpush2.msra.mxu0 0.0
  %724 = vmatprep.subr.mxu0 0.0
  %725 = vmatpush2.msra.mxu0 0.0
  %726 = vmatprep.subr.mxu0 0.0
  %727 = vmatpush2.msra.mxu0 0.0
  %728 = vmatprep.subr.mxu0 0.0
  %729 = vmatpush2.msra.mxu0 0.0
  %730 = vmatprep.subr.mxu0 0.0
  %731 = vmatpush2.msra.mxu0 0.0
  %732 = vmatprep.mubr.f32.mxu0 0.0
  %733 = vmatmul.mubr.f32.gmra.mxu0 %v666
  %v734 = vpop.f32.mrf.mxu0
  %v735 = vadd.f32 0.0, %v734
  %v736 = vpop.f32.mrf.mxu0
  %737 = vdwg.mxu0
  %v739 = vrot.slane %v735, 2
  %v741 = vadd.f32 %v584, %v739
  %v742 = vxor.u32 %v663, 2147483648
  %v743 = vmul.f32 %v742, 1.442695
  %v744 = vpow.pop %v743
  %v745 = vadd.f32 %v744, 1.0
  %v746 = vrcp.pop %v745
  %v747 = vmul.f32 1.0, %v746
  %v748 = vtanh.pop %v663
  %v750 = vrot.slane %v535, 6
  %v752 = vmul.f32 %v747, %v750
  %754 = vrot.lane.b32.xlu0 %v748, 64
  %v755 = vpop.permute.xlu0 %754
  %v757 = vmul.f32 %v747, %v755
  %759 = vrot.lane.b32.xlu0 %v757, 32
  %v760 = vpop.permute.xlu0 %759
  %v762 = vadd.f32 %v752, %v760
  %v763 = vtanh.pop %v762
  %765 = vrot.lane.b32.xlu0 %v763, 64
  %v766 = vpop.permute.xlu0 %765
  %v768 = vmul.f32 %v747, %v766
  %v769 = vxor.u32 %v741, 2147483648
  %v770 = vmul.f32 %v769, 1.442695
  %v771 = vpow.pop %v770
  %v772 = vadd.f32 %v771, 1.0
  %v773 = vrcp.pop %v772
  %v774 = vmul.f32 1.0, %v773
  %v775 = vtanh.pop %v741
  %v777 = vrot.slane %v562, 2
  %v779 = vmul.f32 %v774, %v777
  %781 = vrot.lane.b32.xlu0 %v775, 64
  %v782 = vpop.permute.xlu0 %781
  %v784 = vmul.f32 %v774, %v782
  %786 = vrot.lane.b32.xlu0 %v784, 32
  %v787 = vpop.permute.xlu0 %786
  %v789 = vadd.f32 %v779, %v787
  %v790 = vtanh.pop %v789
  %792 = vrot.lane.b32.xlu0 %v790, 64
  %v793 = vpop.permute.xlu0 %792
  %v795 = vmul.f32 %v774, %v793
  %797 = vrot.lane.b32.xlu0 %v768, 32
  %v798 = vpop.permute.xlu0 %797
  %s800 = scalar_lea.vmem %s5, 4
  %vm801 = vcmask 259076
  %802 = vst.msk [vmem:[%s800 - $0x4] sm:$0x30] %vm801, %v798
  %804 = vrot.lane.b32.xlu0 %v795, 64
  %v805 = vpop.permute.xlu0 %804
  %s807 = scalar_lea.vmem %s5, 14
  %vm808 = vcmask 523526
  %809 = vst.msk [vmem:[%s807 - $0x6] sm:$0xc0] %vm808, %v805
  %v810 = vld [vmem:[#allocation2] sm:$0xc0]
  %v811 = vld [vmem:[#allocation2 + $0x18] sm:$0x30]
  %v812 = vrot.slane %v768, 4
  %813 = vrot.lane.b32.xlu0 %v812, 32
  %v814 = vpop.permute.xlu0 %813
  %v815 = vsel %vm43, %v814, 0
  %817 = vmatprep.subr.mxu0 0.0
  %818 = vmatpush1.msra.mxu0 0.0
  %819 = vmatprep.subr.mxu0 0.0
  %820 = vmatpush1.msra.mxu0 0.0
  %821 = vmatprep.subr.mxu0 0.0
  %822 = vmatpush1.msra.mxu0 0.0
  %823 = vmatprep.subr.mxu0 0.0
  %824 = vmatpush1.msra.mxu0 0.0
  %825 = vmatprep.subr.mxu0 0.0
  %826 = vmatpush1.msra.mxu0 0.0
  %827 = vmatprep.subr.mxu0 0.0
  %828 = vmatpush1.msra.mxu0 0.0
  %829 = vmatprep.subr.mxu0 0.0
  %830 = vmatpush1.msra.mxu0 0.0
  %831 = vmatprep.subr.mxu0 0.0
  %832 = vmatpush1.msra.mxu0 0.0
  %833 = vmatprep.subr.mxu0 0.0
  %834 = vmatpush1.msra.mxu0 0.0
  %835 = vmatprep.subr.mxu0 0.0
  %836 = vmatpush1.msra.mxu0 0.0
  %837 = vmatprep.subr.mxu0 0.0
  %838 = vmatpush1.msra.mxu0 0.0
  %839 = vmatprep.subr.mxu0 0.0
  %840 = vmatpush1.msra.mxu0 0.0
  %841 = vmatprep.subr.mxu0 0.0
  %842 = vmatpush1.msra.mxu0 %v145
  %843 = vmatprep.subr.mxu0 0.0
  %844 = vmatpush1.msra.mxu0 %v144
  %845 = vmatprep.subr.mxu0 0.0
  %846 = vmatpush1.msra.mxu0 %v143
  %847 = vmatprep.subr.mxu0 0.0
  %848 = vmatpush1.msra.mxu0 %v142
  %849 = vmatprep.subr.mxu0 0.0
  %850 = vmatpush2.msra.mxu0 0.0
  %851 = vmatprep.subr.mxu0 0.0
  %852 = vmatpush2.msra.mxu0 0.0
  %853 = vmatprep.subr.mxu0 0.0
  %854 = vmatpush2.msra.mxu0 0.0
  %855 = vmatprep.subr.mxu0 0.0
  %856 = vmatpush2.msra.mxu0 0.0
  %857 = vmatprep.subr.mxu0 0.0
  %858 = vmatpush2.msra.mxu0 0.0
  %859 = vmatprep.subr.mxu0 0.0
  %860 = vmatpush2.msra.mxu0 0.0
  %861 = vmatprep.subr.mxu0 0.0
  %862 = vmatpush2.msra.mxu0 0.0
  %863 = vmatprep.subr.mxu0 0.0
  %864 = vmatpush2.msra.mxu0 0.0
  %865 = vmatprep.subr.mxu0 0.0
  %866 = vmatpush2.msra.mxu0 0.0
  %867 = vmatprep.subr.mxu0 0.0
  %868 = vmatpush2.msra.mxu0 0.0
  %869 = vmatprep.subr.mxu0 0.0
  %870 = vmatpush2.msra.mxu0 0.0
  %871 = vmatprep.subr.mxu0 0.0
  %872 = vmatpush2.msra.mxu0 0.0
  %873 = vmatprep.subr.mxu0 0.0
  %874 = vmatpush2.msra.mxu0 0.0
  %875 = vmatprep.subr.mxu0 0.0
  %876 = vmatpush2.msra.mxu0 0.0
  %877 = vmatprep.subr.mxu0 0.0
  %878 = vmatpush2.msra.mxu0 0.0
  %879 = vmatprep.subr.mxu0 0.0
  %880 = vmatpush2.msra.mxu0 0.0
  %881 = vmatprep.mubr.f32.mxu0 0.0
  %882 = vmatmul.mubr.f32.gmra.mxu0 %v815
  %v883 = vpop.f32.mrf.mxu0
  %v884 = vadd.f32 0.0, %v883
  %v885 = vpop.f32.mrf.mxu0
  %886 = vdwg.mxu0
  %v888 = vrot.slane %v884, 2
  %v890 = vadd.f32 %v810, %v888
  %v891 = vrot.slane %v795, 6
  %892 = vrot.lane.b32.xlu0 %v891, 32
  %v893 = vpop.permute.xlu0 %892
  %v894 = vsel %vm43, %v893, 0
  %896 = vmatprep.subr.mxu0 0.0
  %897 = vmatpush1.msra.mxu0 0.0
  %898 = vmatprep.subr.mxu0 0.0
  %899 = vmatpush1.msra.mxu0 0.0
  %900 = vmatprep.subr.mxu0 0.0
  %901 = vmatpush1.msra.mxu0 0.0
  %902 = vmatprep.subr.mxu0 0.0
  %903 = vmatpush1.msra.mxu0 0.0
  %904 = vmatprep.subr.mxu0 0.0
  %905 = vmatpush1.msra.mxu0 0.0
  %906 = vmatprep.subr.mxu0 0.0
  %907 = vmatpush1.msra.mxu0 0.0
  %908 = vmatprep.subr.mxu0 0.0
  %909 = vmatpush1.msra.mxu0 0.0
  %910 = vmatprep.subr.mxu0 0.0
  %911 = vmatpush1.msra.mxu0 0.0
  %912 = vmatprep.subr.mxu0 0.0
  %913 = vmatpush1.msra.mxu0 0.0
  %914 = vmatprep.subr.mxu0 0.0
  %915 = vmatpush1.msra.mxu0 0.0
  %916 = vmatprep.subr.mxu0 0.0
  %917 = vmatpush1.msra.mxu0 0.0
  %918 = vmatprep.subr.mxu0 0.0
  %919 = vmatpush1.msra.mxu0 0.0
  %920 = vmatprep.subr.mxu0 0.0
  %921 = vmatpush1.msra.mxu0 %v149
  %922 = vmatprep.subr.mxu0 0.0
  %923 = vmatpush1.msra.mxu0 %v148
  %924 = vmatprep.subr.mxu0 0.0
  %925 = vmatpush1.msra.mxu0 %v147
  %926 = vmatprep.subr.mxu0 0.0
  %927 = vmatpush1.msra.mxu0 %v146
  %928 = vmatprep.subr.mxu0 0.0
  %929 = vmatpush2.msra.mxu0 0.0
  %930 = vmatprep.subr.mxu0 0.0
  %931 = vmatpush2.msra.mxu0 0.0
  %932 = vmatprep.subr.mxu0 0.0
  %933 = vmatpush2.msra.mxu0 0.0
  %934 = vmatprep.subr.mxu0 0.0
  %935 = vmatpush2.msra.mxu0 0.0
  %936 = vmatprep.subr.mxu0 0.0
  %937 = vmatpush2.msra.mxu0 0.0
  %938 = vmatprep.subr.mxu0 0.0
  %939 = vmatpush2.msra.mxu0 0.0
  %940 = vmatprep.subr.mxu0 0.0
  %941 = vmatpush2.msra.mxu0 0.0
  %942 = vmatprep.subr.mxu0 0.0
  %943 = vmatpush2.msra.mxu0 0.0
  %944 = vmatprep.subr.mxu0 0.0
  %945 = vmatpush2.msra.mxu0 0.0
  %946 = vmatprep.subr.mxu0 0.0
  %947 = vmatpush2.msra.mxu0 0.0
  %948 = vmatprep.subr.mxu0 0.0
  %949 = vmatpush2.msra.mxu0 0.0
  %950 = vmatprep.subr.mxu0 0.0
  %951 = vmatpush2.msra.mxu0 0.0
  %952 = vmatprep.subr.mxu0 0.0
  %953 = vmatpush2.msra.mxu0 0.0
  %954 = vmatprep.subr.mxu0 0.0
  %955 = vmatpush2.msra.mxu0 0.0
  %956 = vmatprep.subr.mxu0 0.0
  %957 = vmatpush2.msra.mxu0 0.0
  %958 = vmatprep.subr.mxu0 0.0
  %959 = vmatpush2.msra.mxu0 0.0
  %960 = vmatprep.mubr.f32.mxu0 0.0
  %961 = vmatmul.mubr.f32.gmra.mxu0 %v894
  %v962 = vpop.f32.mrf.mxu0
  %v963 = vadd.f32 0.0, %v962
  %v964 = vpop.f32.mrf.mxu0
  %965 = vdwg.mxu0
  %v967 = vrot.slane %v963, 4
  %v969 = vadd.f32 %v811, %v967
  %v970 = vxor.u32 %v890, 2147483648
  %v971 = vmul.f32 %v970, 1.442695
  %v972 = vpow.pop %v971
  %v973 = vadd.f32 %v972, 1.0
  %v974 = vrcp.pop %v973
  %v975 = vmul.f32 1.0, %v974
  %v976 = vtanh.pop %v890
  %v978 = vrot.slane %v762, 6
  %v980 = vmul.f32 %v975, %v978
  %982 = vrot.lane.b32.xlu0 %v976, 64
  %v983 = vpop.permute.xlu0 %982
  %v985 = vmul.f32 %v975, %v983
  %987 = vrot.lane.b32.xlu0 %v985, 32
  %v988 = vpop.permute.xlu0 %987
  %v990 = vadd.f32 %v980, %v988
  %v991 = vtanh.pop %v990
  %993 = vrot.lane.b32.xlu0 %v991, 64
  %v994 = vpop.permute.xlu0 %993
  %v996 = vmul.f32 %v975, %v994
  %v997 = vxor.u32 %v969, 2147483648
  %v998 = vmul.f32 %v997, 1.442695
  %v999 = vpow.pop %v998
  %v1000 = vadd.f32 %v999, 1.0
  %v1001 = vrcp.pop %v1000
  %v1002 = vmul.f32 1.0, %v1001
  %v1003 = vtanh.pop %v969
  %v1005 = vrot.slane %v789, 2
  %v1007 = vmul.f32 %v1002, %v1005
  %1009 = vrot.lane.b32.xlu0 %v1003, 64
  %v1010 = vpop.permute.xlu0 %1009
  %v1012 = vmul.f32 %v1002, %v1010
  %1014 = vrot.lane.b32.xlu0 %v1012, 32
  %v1015 = vpop.permute.xlu0 %1014
  %v1017 = vadd.f32 %v1007, %v1015
  %v1018 = vtanh.pop %v1017
  %1020 = vrot.lane.b32.xlu0 %v1018, 64
  %v1021 = vpop.permute.xlu0 %1020
  %v1023 = vmul.f32 %v1002, %v1021
  %1025 = vrot.lane.b32.xlu0 %v996, 32
  %v1026 = vpop.permute.xlu0 %1025
  %s1028 = scalar_lea.vmem %s5, 6
  %vm1029 = vcmask 261126
  %1030 = vst.msk [vmem:[%s1028 - $0x6] sm:$0xc0] %vm1029, %v1026
  %1032 = vrot.lane.b32.xlu0 %v1023, 64
  %v1033 = vpop.permute.xlu0 %1032
  %s1035 = scalar_lea.vmem %s5, 12
  %vm1036 = vcmask 521476
  %1037 = vst.msk [vmem:[%s1035 - $0x4] sm:$0x30] %vm1036, %v1033
  %v1038 = vld [vmem:[#allocation2 + $0x10] sm:$0x3]
  %v1039 = vld [vmem:[#allocation2 + $0x18] sm:$0xc]
  %v1040 = vrot.slane %v996, 6
  %1041 = vrot.lane.b32.xlu0 %v1040, 32
  %v1042 = vpop.permute.xlu0 %1041
  %v1043 = vsel %vm43, %v1042, 0
  %1045 = vmatprep.subr.mxu0 0.0
  %1046 = vmatpush1.msra.mxu0 0.0
  %1047 = vmatprep.subr.mxu0 0.0
  %1048 = vmatpush1.msra.mxu0 0.0
  %1049 = vmatprep.subr.mxu0 0.0
  %1050 = vmatpush1.msra.mxu0 0.0
  %1051 = vmatprep.subr.mxu0 0.0
  %1052 = vmatpush1.msra.mxu0 0.0
  %1053 = vmatprep.subr.mxu0 0.0
  %1054 = vmatpush1.msra.mxu0 0.0
  %1055 = vmatprep.subr.mxu0 0.0
  %1056 = vmatpush1.msra.mxu0 0.0
  %1057 = vmatprep.subr.mxu0 0.0
  %1058 = vmatpush1.msra.mxu0 0.0
  %1059 = vmatprep.subr.mxu0 0.0
  %1060 = vmatpush1.msra.mxu0 0.0
  %1061 = vmatprep.subr.mxu0 0.0
  %1062 = vmatpush1.msra.mxu0 0.0
  %1063 = vmatprep.subr.mxu0 0.0
  %1064 = vmatpush1.msra.mxu0 0.0
  %1065 = vmatprep.subr.mxu0 0.0
  %1066 = vmatpush1.msra.mxu0 0.0
  %1067 = vmatprep.subr.mxu0 0.0
  %1068 = vmatpush1.msra.mxu0 0.0
  %1069 = vmatprep.subr.mxu0 0.0
  %1070 = vmatpush1.msra.mxu0 %v145
  %1071 = vmatprep.subr.mxu0 0.0
  %1072 = vmatpush1.msra.mxu0 %v144
  %1073 = vmatprep.subr.mxu0 0.0
  %1074 = vmatpush1.msra.mxu0 %v143
  %1075 = vmatprep.subr.mxu0 0.0
  %1076 = vmatpush1.msra.mxu0 %v142
  %1077 = vmatprep.subr.mxu0 0.0
  %1078 = vmatpush2.msra.mxu0 0.0
  %1079 = vmatprep.subr.mxu0 0.0
  %1080 = vmatpush2.msra.mxu0 0.0
  %1081 = vmatprep.subr.mxu0 0.0
  %1082 = vmatpush2.msra.mxu0 0.0
  %1083 = vmatprep.subr.mxu0 0.0
  %1084 = vmatpush2.msra.mxu0 0.0
  %1085 = vmatprep.subr.mxu0 0.0
  %1086 = vmatpush2.msra.mxu0 0.0
  %1087 = vmatprep.subr.mxu0 0.0
  %1088 = vmatpush2.msra.mxu0 0.0
  %1089 = vmatprep.subr.mxu0 0.0
  %1090 = vmatpush2.msra.mxu0 0.0
  %1091 = vmatprep.subr.mxu0 0.0
  %1092 = vmatpush2.msra.mxu0 0.0
  %1093 = vmatprep.subr.mxu0 0.0
  %1094 = vmatpush2.msra.mxu0 0.0
  %1095 = vmatprep.subr.mxu0 0.0
  %1096 = vmatpush2.msra.mxu0 0.0
  %1097 = vmatprep.subr.mxu0 0.0
  %1098 = vmatpush2.msra.mxu0 0.0
  %1099 = vmatprep.subr.mxu0 0.0
  %1100 = vmatpush2.msra.mxu0 0.0
  %1101 = vmatprep.subr.mxu0 0.0
  %1102 = vmatpush2.msra.mxu0 0.0
  %1103 = vmatprep.subr.mxu0 0.0
  %1104 = vmatpush2.msra.mxu0 0.0
  %1105 = vmatprep.subr.mxu0 0.0
  %1106 = vmatpush2.msra.mxu0 0.0
  %1107 = vmatprep.subr.mxu0 0.0
  %1108 = vmatpush2.msra.mxu0 0.0
  %1109 = vmatprep.mubr.f32.mxu0 0.0
  %1110 = vmatmul.mubr.f32.gmra.mxu0 %v1043
  %v1111 = vpop.f32.mrf.mxu0
  %v1112 = vadd.f32 0.0, %v1111
  %v1113 = vpop.f32.mrf.mxu0
  %1114 = vdwg.mxu0
  %v1115 = vadd.f32 %v1038, %v1112
  %v1116 = vrot.slane %v1023, 4
  %1117 = vrot.lane.b32.xlu0 %v1116, 32
  %v1118 = vpop.permute.xlu0 %1117
  %v1119 = vsel %vm43, %v1118, 0
  %1121 = vmatprep.subr.mxu0 0.0
  %1122 = vmatpush1.msra.mxu0 0.0
  %1123 = vmatprep.subr.mxu0 0.0
  %1124 = vmatpush1.msra.mxu0 0.0
  %1125 = vmatprep.subr.mxu0 0.0
  %1126 = vmatpush1.msra.mxu0 0.0
  %1127 = vmatprep.subr.mxu0 0.0
  %1128 = vmatpush1.msra.mxu0 0.0
  %1129 = vmatprep.subr.mxu0 0.0
  %1130 = vmatpush1.msra.mxu0 0.0
  %1131 = vmatprep.subr.mxu0 0.0
  %1132 = vmatpush1.msra.mxu0 0.0
  %1133 = vmatprep.subr.mxu0 0.0
  %1134 = vmatpush1.msra.mxu0 0.0
  %1135 = vmatprep.subr.mxu0 0.0
  %1136 = vmatpush1.msra.mxu0 0.0
  %1137 = vmatprep.subr.mxu0 0.0
  %1138 = vmatpush1.msra.mxu0 0.0
  %1139 = vmatprep.subr.mxu0 0.0
  %1140 = vmatpush1.msra.mxu0 0.0
  %1141 = vmatprep.subr.mxu0 0.0
  %1142 = vmatpush1.msra.mxu0 0.0
  %1143 = vmatprep.subr.mxu0 0.0
  %1144 = vmatpush1.msra.mxu0 0.0
  %1145 = vmatprep.subr.mxu0 0.0
  %1146 = vmatpush1.msra.mxu0 %v149
  %1147 = vmatprep.subr.mxu0 0.0
  %1148 = vmatpush1.msra.mxu0 %v148
  %1149 = vmatprep.subr.mxu0 0.0
  %1150 = vmatpush1.msra.mxu0 %v147
  %1151 = vmatprep.subr.mxu0 0.0
  %1152 = vmatpush1.msra.mxu0 %v146
  %1153 = vmatprep.subr.mxu0 0.0
  %1154 = vmatpush2.msra.mxu0 0.0
  %1155 = vmatprep.subr.mxu0 0.0
  %1156 = vmatpush2.msra.mxu0 0.0
  %1157 = vmatprep.subr.mxu0 0.0
  %1158 = vmatpush2.msra.mxu0 0.0
  %1159 = vmatprep.subr.mxu0 0.0
  %1160 = vmatpush2.msra.mxu0 0.0
  %1161 = vmatprep.subr.mxu0 0.0
  %1162 = vmatpush2.msra.mxu0 0.0
  %1163 = vmatprep.subr.mxu0 0.0
  %1164 = vmatpush2.msra.mxu0 0.0
  %1165 = vmatprep.subr.mxu0 0.0
  %1166 = vmatpush2.msra.mxu0 0.0
  %1167 = vmatprep.subr.mxu0 0.0
  %1168 = vmatpush2.msra.mxu0 0.0
  %1169 = vmatprep.subr.mxu0 0.0
  %1170 = vmatpush2.msra.mxu0 0.0
  %1171 = vmatprep.subr.mxu0 0.0
  %1172 = vmatpush2.msra.mxu0 0.0
  %1173 = vmatprep.subr.mxu0 0.0
  %1174 = vmatpush2.msra.mxu0 0.0
  %1175 = vmatprep.subr.mxu0 0.0
  %1176 = vmatpush2.msra.mxu0 0.0
  %1177 = vmatprep.subr.mxu0 0.0
  %1178 = vmatpush2.msra.mxu0 0.0
  %1179 = vmatprep.subr.mxu0 0.0
  %1180 = vmatpush2.msra.mxu0 0.0
  %1181 = vmatprep.subr.mxu0 0.0
  %1182 = vmatpush2.msra.mxu0 0.0
  %1183 = vmatprep.subr.mxu0 0.0
  %1184 = vmatpush2.msra.mxu0 0.0
  %1185 = vmatprep.mubr.f32.mxu0 0.0
  %1186 = vmatmul.mubr.f32.gmra.mxu0 %v1119
  %v1187 = vpop.f32.mrf.mxu0
  %v1188 = vadd.f32 0.0, %v1187
  %v1189 = vpop.f32.mrf.mxu0
  %1190 = vdwg.mxu0
  %v1192 = vrot.slane %v1188, 6
  %v1194 = vadd.f32 %v1039, %v1192
  %v1195 = vxor.u32 %v1115, 2147483648
  %v1196 = vmul.f32 %v1195, 1.442695
  %v1197 = vpow.pop %v1196
  %v1198 = vadd.f32 %v1197, 1.0
  %v1199 = vrcp.pop %v1198
  %v1200 = vmul.f32 1.0, %v1199
  %v1201 = vtanh.pop %v1115
  %v1203 = vrot.slane %v990, 6
  %v1205 = vmul.f32 %v1200, %v1203
  %1207 = vrot.lane.b32.xlu0 %v1201, 64
  %v1208 = vpop.permute.xlu0 %1207
  %v1210 = vmul.f32 %v1200, %v1208
  %1212 = vrot.lane.b32.xlu0 %v1210, 32
  %v1213 = vpop.permute.xlu0 %1212
  %v1215 = vadd.f32 %v1205, %v1213
  %v1216 = vtanh.pop %v1215
  %1218 = vrot.lane.b32.xlu0 %v1216, 64
  %v1219 = vpop.permute.xlu0 %1218
  %v1221 = vmul.f32 %v1200, %v1219
  %v1222 = vxor.u32 %v1194, 2147483648
  %v1223 = vmul.f32 %v1222, 1.442695
  %v1224 = vpow.pop %v1223
  %v1225 = vadd.f32 %v1224, 1.0
  %v1226 = vrcp.pop %v1225
  %v1227 = vmul.f32 1.0, %v1226
  %v1228 = vtanh.pop %v1194
  %v1230 = vrot.slane %v1017, 2
  %v1232 = vmul.f32 %v1227, %v1230
  %1234 = vrot.lane.b32.xlu0 %v1228, 64
  %v1235 = vpop.permute.xlu0 %1234
  %v1237 = vmul.f32 %v1227, %v1235
  %1239 = vrot.lane.b32.xlu0 %v1237, 32
  %v1240 = vpop.permute.xlu0 %1239
  %v1242 = vadd.f32 %v1232, %v1240
  %v1243 = vtanh.pop %v1242
  %1245 = vrot.lane.b32.xlu0 %v1243, 64
  %v1246 = vpop.permute.xlu0 %1245
  %v1248 = vmul.f32 %v1227, %v1246
  %1250 = vrot.lane.b32.xlu0 %v1221, 32
  %v1251 = vpop.permute.xlu0 %1250
  %s1253 = scalar_lea.vmem %s5, 8
  %1254 = vst.msk [vmem:[%s1253] sm:$0x3] %vm352, %v1251
  %1256 = vrot.lane.b32.xlu0 %v1248, 64
  %v1257 = vpop.permute.xlu0 %1256
  %s1259 = scalar_lea.vmem %s5, 10
  %1260 = vst.msk [vmem:[%s1259 - $0x2] sm:$0xc] %vm359, %v1257
  %v1261 = vld [vmem:[#allocation2 + $0x10] sm:$0xc]
  %v1262 = vld [vmem:[#allocation2 + $0x18] sm:$0x3]
  %v1263 = vsel %vm43, %v1251, 0
  %1265 = vmatprep.subr.mxu0 0.0
  %1266 = vmatpush1.msra.mxu0 0.0
  %1267 = vmatprep.subr.mxu0 0.0
  %1268 = vmatpush1.msra.mxu0 0.0
  %1269 = vmatprep.subr.mxu0 0.0
  %1270 = vmatpush1.msra.mxu0 0.0
  %1271 = vmatprep.subr.mxu0 0.0
  %1272 = vmatpush1.msra.mxu0 0.0
  %1273 = vmatprep.subr.mxu0 0.0
  %1274 = vmatpush1.msra.mxu0 0.0
  %1275 = vmatprep.subr.mxu0 0.0
  %1276 = vmatpush1.msra.mxu0 0.0
  %1277 = vmatprep.subr.mxu0 0.0
  %1278 = vmatpush1.msra.mxu0 0.0
  %1279 = vmatprep.subr.mxu0 0.0
  %1280 = vmatpush1.msra.mxu0 0.0
  %1281 = vmatprep.subr.mxu0 0.0
  %1282 = vmatpush1.msra.mxu0 0.0
  %1283 = vmatprep.subr.mxu0 0.0
  %1284 = vmatpush1.msra.mxu0 0.0
  %1285 = vmatprep.subr.mxu0 0.0
  %1286 = vmatpush1.msra.mxu0 0.0
  %1287 = vmatprep.subr.mxu0 0.0
  %1288 = vmatpush1.msra.mxu0 0.0
  %1289 = vmatprep.subr.mxu0 0.0
  %1290 = vmatpush1.msra.mxu0 %v145
  %1291 = vmatprep.subr.mxu0 0.0
  %1292 = vmatpush1.msra.mxu0 %v144
  %1293 = vmatprep.subr.mxu0 0.0
  %1294 = vmatpush1.msra.mxu0 %v143
  %1295 = vmatprep.subr.mxu0 0.0
  %1296 = vmatpush1.msra.mxu0 %v142
  %1297 = vmatprep.subr.mxu0 0.0
  %1298 = vmatpush2.msra.mxu0 0.0
  %1299 = vmatprep.subr.mxu0 0.0
  %1300 = vmatpush2.msra.mxu0 0.0
  %1301 = vmatprep.subr.mxu0 0.0
  %1302 = vmatpush2.msra.mxu0 0.0
  %1303 = vmatprep.subr.mxu0 0.0
  %1304 = vmatpush2.msra.mxu0 0.0
  %1305 = vmatprep.subr.mxu0 0.0
  %1306 = vmatpush2.msra.mxu0 0.0
  %1307 = vmatprep.subr.mxu0 0.0
  %1308 = vmatpush2.msra.mxu0 0.0
  %1309 = vmatprep.subr.mxu0 0.0
  %1310 = vmatpush2.msra.mxu0 0.0
  %1311 = vmatprep.subr.mxu0 0.0
  %1312 = vmatpush2.msra.mxu0 0.0
  %1313 = vmatprep.subr.mxu0 0.0
  %1314 = vmatpush2.msra.mxu0 0.0
  %1315 = vmatprep.subr.mxu0 0.0
  %1316 = vmatpush2.msra.mxu0 0.0
  %1317 = vmatprep.subr.mxu0 0.0
  %1318 = vmatpush2.msra.mxu0 0.0
  %1319 = vmatprep.subr.mxu0 0.0
  %1320 = vmatpush2.msra.mxu0 0.0
  %1321 = vmatprep.subr.mxu0 0.0
  %1322 = vmatpush2.msra.mxu0 0.0
  %1323 = vmatprep.subr.mxu0 0.0
  %1324 = vmatpush2.msra.mxu0 0.0
  %1325 = vmatprep.subr.mxu0 0.0
  %1326 = vmatpush2.msra.mxu0 0.0
  %1327 = vmatprep.subr.mxu0 0.0
  %1328 = vmatpush2.msra.mxu0 0.0
  %1329 = vmatprep.mubr.f32.mxu0 0.0
  %1330 = vmatmul.mubr.f32.gmra.mxu0 %v1263
  %v1331 = vpop.f32.mrf.mxu0
  %v1332 = vadd.f32 0.0, %v1331
  %v1333 = vpop.f32.mrf.mxu0
  %1334 = vdwg.mxu0
  %v1336 = vrot.slane %v1332, 6
  %v1338 = vadd.f32 %v1261, %v1336
  %v1339 = vrot.slane %v1248, 2
  %1340 = vrot.lane.b32.xlu0 %v1339, 32
  %v1341 = vpop.permute.xlu0 %1340
  %v1342 = vsel %vm43, %v1341, 0
  %1344 = vmatprep.subr.mxu0 0.0
  %1345 = vmatpush1.msra.mxu0 0.0
  %1346 = vmatprep.subr.mxu0 0.0
  %1347 = vmatpush1.msra.mxu0 0.0
  %1348 = vmatprep.subr.mxu0 0.0
  %1349 = vmatpush1.msra.mxu0 0.0
  %1350 = vmatprep.subr.mxu0 0.0
  %1351 = vmatpush1.msra.mxu0 0.0
  %1352 = vmatprep.subr.mxu0 0.0
  %1353 = vmatpush1.msra.mxu0 0.0
  %1354 = vmatprep.subr.mxu0 0.0
  %1355 = vmatpush1.msra.mxu0 0.0
  %1356 = vmatprep.subr.mxu0 0.0
  %1357 = vmatpush1.msra.mxu0 0.0
  %1358 = vmatprep.subr.mxu0 0.0
  %1359 = vmatpush1.msra.mxu0 0.0
  %1360 = vmatprep.subr.mxu0 0.0
  %1361 = vmatpush1.msra.mxu0 0.0
  %1362 = vmatprep.subr.mxu0 0.0
  %1363 = vmatpush1.msra.mxu0 0.0
  %1364 = vmatprep.subr.mxu0 0.0
  %1365 = vmatpush1.msra.mxu0 0.0
  %1366 = vmatprep.subr.mxu0 0.0
  %1367 = vmatpush1.msra.mxu0 0.0
  %1368 = vmatprep.subr.mxu0 0.0
  %1369 = vmatpush1.msra.mxu0 %v149
  %1370 = vmatprep.subr.mxu0 0.0
  %1371 = vmatpush1.msra.mxu0 %v148
  %1372 = vmatprep.subr.mxu0 0.0
  %1373 = vmatpush1.msra.mxu0 %v147
  %1374 = vmatprep.subr.mxu0 0.0
  %1375 = vmatpush1.msra.mxu0 %v146
  %1376 = vmatprep.subr.mxu0 0.0
  %1377 = vmatpush2.msra.mxu0 0.0
  %1378 = vmatprep.subr.mxu0 0.0
  %1379 = vmatpush2.msra.mxu0 0.0
  %1380 = vmatprep.subr.mxu0 0.0
  %1381 = vmatpush2.msra.mxu0 0.0
  %1382 = vmatprep.subr.mxu0 0.0
  %1383 = vmatpush2.msra.mxu0 0.0
  %1384 = vmatprep.subr.mxu0 0.0
  %1385 = vmatpush2.msra.mxu0 0.0
  %1386 = vmatprep.subr.mxu0 0.0
  %1387 = vmatpush2.msra.mxu0 0.0
  %1388 = vmatprep.subr.mxu0 0.0
  %1389 = vmatpush2.msra.mxu0 0.0
  %1390 = vmatprep.subr.mxu0 0.0
  %1391 = vmatpush2.msra.mxu0 0.0
  %1392 = vmatprep.subr.mxu0 0.0
  %1393 = vmatpush2.msra.mxu0 0.0
  %1394 = vmatprep.subr.mxu0 0.0
  %1395 = vmatpush2.msra.mxu0 0.0
  %1396 = vmatprep.subr.mxu0 0.0
  %1397 = vmatpush2.msra.mxu0 0.0
  %1398 = vmatprep.subr.mxu0 0.0
  %1399 = vmatpush2.msra.mxu0 0.0
  %1400 = vmatprep.subr.mxu0 0.0
  %1401 = vmatpush2.msra.mxu0 0.0
  %1402 = vmatprep.subr.mxu0 0.0
  %1403 = vmatpush2.msra.mxu0 0.0
  %1404 = vmatprep.subr.mxu0 0.0
  %1405 = vmatpush2.msra.mxu0 0.0
  %1406 = vmatprep.subr.mxu0 0.0
  %1407 = vmatpush2.msra.mxu0 0.0
  %1408 = vmatprep.mubr.f32.mxu0 0.0
  %1409 = vmatmul.mubr.f32.gmra.mxu0 %v1342
  %v1410 = vpop.f32.mrf.mxu0
  %v1411 = vadd.f32 0.0, %v1410
  %v1412 = vpop.f32.mrf.mxu0
  %1413 = vdwg.mxu0
  %v1414 = vadd.f32 %v1262, %v1411
  %v1415 = vxor.u32 %v1338, 2147483648
  %v1416 = vmul.f32 %v1415, 1.442695
  %v1417 = vpow.pop %v1416
  %v1418 = vadd.f32 %v1417, 1.0
  %v1419 = vrcp.pop %v1418
  %v1420 = vmul.f32 1.0, %v1419
  %v1421 = vtanh.pop %v1338
  %v1423 = vrot.slane %v1215, 6
  %v1425 = vmul.f32 %v1420, %v1423
  %1427 = vrot.lane.b32.xlu0 %v1421, 64
  %v1428 = vpop.permute.xlu0 %1427
  %v1430 = vmul.f32 %v1420, %v1428
  %1432 = vrot.lane.b32.xlu0 %v1430, 32
  %v1433 = vpop.permute.xlu0 %1432
  %v1435 = vadd.f32 %v1425, %v1433
  %v1436 = vtanh.pop %v1435
  %1438 = vrot.lane.b32.xlu0 %v1436, 64
  %v1439 = vpop.permute.xlu0 %1438
  %v1441 = vmul.f32 %v1420, %v1439
  %v1442 = vxor.u32 %v1414, 2147483648
  %v1443 = vmul.f32 %v1442, 1.442695
  %v1444 = vpow.pop %v1443
  %v1445 = vadd.f32 %v1444, 1.0
  %v1446 = vrcp.pop %v1445
  %v1447 = vmul.f32 1.0, %v1446
  %v1448 = vtanh.pop %v1414
  %v1450 = vrot.slane %v1242, 2
  %v1452 = vmul.f32 %v1447, %v1450
  %1454 = vrot.lane.b32.xlu0 %v1448, 64
  %v1455 = vpop.permute.xlu0 %1454
  %v1457 = vmul.f32 %v1447, %v1455
  %1459 = vrot.lane.b32.xlu0 %v1457, 32
  %v1460 = vpop.permute.xlu0 %1459
  %v1462 = vadd.f32 %v1452, %v1460
  %v1463 = vtanh.pop %v1462
  %1465 = vrot.lane.b32.xlu0 %v1463, 64
  %v1466 = vpop.permute.xlu0 %1465
  %v1468 = vmul.f32 %v1447, %v1466
  %1470 = vrot.lane.b32.xlu0 %v1441, 32
  %v1471 = vpop.permute.xlu0 %1470
  %1473 = vst.msk [vmem:[%s1259 - $0x2] sm:$0xc] %vm574, %v1471
  %1475 = vrot.lane.b32.xlu0 %v1468, 64
  %v1476 = vpop.permute.xlu0 %1475
  %1478 = vst.msk [vmem:[%s1253] sm:$0x3] %vm581, %v1476
  %v1479 = vld [vmem:[#allocation2 + $0x10] sm:$0x30]
  %v1480 = vld [vmem:[#allocation2 + $0x8] sm:$0xc0]
  %v1481 = vrot.slane %v1441, 2
  %1482 = vrot.lane.b32.xlu0 %v1481, 32
  %v1483 = vpop.permute.xlu0 %1482
  %v1484 = vsel %vm43, %v1483, 0
  %1486 = vmatprep.subr.mxu0 0.0
  %1487 = vmatpush1.msra.mxu0 0.0
  %1488 = vmatprep.subr.mxu0 0.0
  %1489 = vmatpush1.msra.mxu0 0.0
  %1490 = vmatprep.subr.mxu0 0.0
  %1491 = vmatpush1.msra.mxu0 0.0
  %1492 = vmatprep.subr.mxu0 0.0
  %1493 = vmatpush1.msra.mxu0 0.0
  %1494 = vmatprep.subr.mxu0 0.0
  %1495 = vmatpush1.msra.mxu0 0.0
  %1496 = vmatprep.subr.mxu0 0.0
  %1497 = vmatpush1.msra.mxu0 0.0
  %1498 = vmatprep.subr.mxu0 0.0
  %1499 = vmatpush1.msra.mxu0 0.0
  %1500 = vmatprep.subr.mxu0 0.0
  %1501 = vmatpush1.msra.mxu0 0.0
  %1502 = vmatprep.subr.mxu0 0.0
  %1503 = vmatpush1.msra.mxu0 0.0
  %1504 = vmatprep.subr.mxu0 0.0
  %1505 = vmatpush1.msra.mxu0 0.0
  %1506 = vmatprep.subr.mxu0 0.0
  %1507 = vmatpush1.msra.mxu0 0.0
  %1508 = vmatprep.subr.mxu0 0.0
  %1509 = vmatpush1.msra.mxu0 0.0
  %1510 = vmatprep.subr.mxu0 0.0
  %1511 = vmatpush1.msra.mxu0 %v145
  %1512 = vmatprep.subr.mxu0 0.0
  %1513 = vmatpush1.msra.mxu0 %v144
  %1514 = vmatprep.subr.mxu0 0.0
  %1515 = vmatpush1.msra.mxu0 %v143
  %1516 = vmatprep.subr.mxu0 0.0
  %1517 = vmatpush1.msra.mxu0 %v142
  %1518 = vmatprep.subr.mxu0 0.0
  %1519 = vmatpush2.msra.mxu0 0.0
  %1520 = vmatprep.subr.mxu0 0.0
  %1521 = vmatpush2.msra.mxu0 0.0
  %1522 = vmatprep.subr.mxu0 0.0
  %1523 = vmatpush2.msra.mxu0 0.0
  %1524 = vmatprep.subr.mxu0 0.0
  %1525 = vmatpush2.msra.mxu0 0.0
  %1526 = vmatprep.subr.mxu0 0.0
  %1527 = vmatpush2.msra.mxu0 0.0
  %1528 = vmatprep.subr.mxu0 0.0
  %1529 = vmatpush2.msra.mxu0 0.0
  %1530 = vmatprep.subr.mxu0 0.0
  %1531 = vmatpush2.msra.mxu0 0.0
  %1532 = vmatprep.subr.mxu0 0.0
  %1533 = vmatpush2.msra.mxu0 0.0
  %1534 = vmatprep.subr.mxu0 0.0
  %1535 = vmatpush2.msra.mxu0 0.0
  %1536 = vmatprep.subr.mxu0 0.0
  %1537 = vmatpush2.msra.mxu0 0.0
  %1538 = vmatprep.subr.mxu0 0.0
  %1539 = vmatpush2.msra.mxu0 0.0
  %1540 = vmatprep.subr.mxu0 0.0
  %1541 = vmatpush2.msra.mxu0 0.0
  %1542 = vmatprep.subr.mxu0 0.0
  %1543 = vmatpush2.msra.mxu0 0.0
  %1544 = vmatprep.subr.mxu0 0.0
  %1545 = vmatpush2.msra.mxu0 0.0
  %1546 = vmatprep.subr.mxu0 0.0
  %1547 = vmatpush2.msra.mxu0 0.0
  %1548 = vmatprep.subr.mxu0 0.0
  %1549 = vmatpush2.msra.mxu0 0.0
  %1550 = vmatprep.mubr.f32.mxu0 0.0
  %1551 = vmatmul.mubr.f32.gmra.mxu0 %v1484
  %v1552 = vpop.f32.mrf.mxu0
  %v1553 = vadd.f32 0.0, %v1552
  %v1554 = vpop.f32.mrf.mxu0
  %1555 = vdwg.mxu0
  %v1557 = vrot.slane %v1553, 4
  %v1559 = vadd.f32 %v1479, %v1557
  %1560 = vrot.lane.b32.xlu0 %v1468, 32
  %v1561 = vpop.permute.xlu0 %1560
  %v1562 = vsel %vm43, %v1561, 0
  %1564 = vmatprep.subr.mxu0 0.0
  %1565 = vmatpush1.msra.mxu0 0.0
  %1566 = vmatprep.subr.mxu0 0.0
  %1567 = vmatpush1.msra.mxu0 0.0
  %1568 = vmatprep.subr.mxu0 0.0
  %1569 = vmatpush1.msra.mxu0 0.0
  %1570 = vmatprep.subr.mxu0 0.0
  %1571 = vmatpush1.msra.mxu0 0.0
  %1572 = vmatprep.subr.mxu0 0.0
  %1573 = vmatpush1.msra.mxu0 0.0
  %1574 = vmatprep.subr.mxu0 0.0
  %1575 = vmatpush1.msra.mxu0 0.0
  %1576 = vmatprep.subr.mxu0 0.0
  %1577 = vmatpush1.msra.mxu0 0.0
  %1578 = vmatprep.subr.mxu0 0.0
  %1579 = vmatpush1.msra.mxu0 0.0
  %1580 = vmatprep.subr.mxu0 0.0
  %1581 = vmatpush1.msra.mxu0 0.0
  %1582 = vmatprep.subr.mxu0 0.0
  %1583 = vmatpush1.msra.mxu0 0.0
  %1584 = vmatprep.subr.mxu0 0.0
  %1585 = vmatpush1.msra.mxu0 0.0
  %1586 = vmatprep.subr.mxu0 0.0
  %1587 = vmatpush1.msra.mxu0 0.0
  %1588 = vmatprep.subr.mxu0 0.0
  %1589 = vmatpush1.msra.mxu0 %v149
  %1590 = vmatprep.subr.mxu0 0.0
  %1591 = vmatpush1.msra.mxu0 %v148
  %1592 = vmatprep.subr.mxu0 0.0
  %1593 = vmatpush1.msra.mxu0 %v147
  %1594 = vmatprep.subr.mxu0 0.0
  %1595 = vmatpush1.msra.mxu0 %v146
  %1596 = vmatprep.subr.mxu0 0.0
  %1597 = vmatpush2.msra.mxu0 0.0
  %1598 = vmatprep.subr.mxu0 0.0
  %1599 = vmatpush2.msra.mxu0 0.0
  %1600 = vmatprep.subr.mxu0 0.0
  %1601 = vmatpush2.msra.mxu0 0.0
  %1602 = vmatprep.subr.mxu0 0.0
  %1603 = vmatpush2.msra.mxu0 0.0
  %1604 = vmatprep.subr.mxu0 0.0
  %1605 = vmatpush2.msra.mxu0 0.0
  %1606 = vmatprep.subr.mxu0 0.0
  %1607 = vmatpush2.msra.mxu0 0.0
  %1608 = vmatprep.subr.mxu0 0.0
  %1609 = vmatpush2.msra.mxu0 0.0
  %1610 = vmatprep.subr.mxu0 0.0
  %1611 = vmatpush2.msra.mxu0 0.0
  %1612 = vmatprep.subr.mxu0 0.0
  %1613 = vmatpush2.msra.mxu0 0.0
  %1614 = vmatprep.subr.mxu0 0.0
  %1615 = vmatpush2.msra.mxu0 0.0
  %1616 = vmatprep.subr.mxu0 0.0
  %1617 = vmatpush2.msra.mxu0 0.0
  %1618 = vmatprep.subr.mxu0 0.0
  %1619 = vmatpush2.msra.mxu0 0.0
  %1620 = vmatprep.subr.mxu0 0.0
  %1621 = vmatpush2.msra.mxu0 0.0
  %1622 = vmatprep.subr.mxu0 0.0
  %1623 = vmatpush2.msra.mxu0 0.0
  %1624 = vmatprep.subr.mxu0 0.0
  %1625 = vmatpush2.msra.mxu0 0.0
  %1626 = vmatprep.subr.mxu0 0.0
  %1627 = vmatpush2.msra.mxu0 0.0
  %1628 = vmatprep.mubr.f32.mxu0 0.0
  %1629 = vmatmul.mubr.f32.gmra.mxu0 %v1562
  %v1630 = vpop.f32.mrf.mxu0
  %v1631 = vadd.f32 0.0, %v1630
  %v1632 = vpop.f32.mrf.mxu0
  %1633 = vdwg.mxu0
  %v1635 = vrot.slane %v1631, 2
  %v1637 = vadd.f32 %v1480, %v1635
  %v1638 = vxor.u32 %v1559, 2147483648
  %v1639 = vmul.f32 %v1638, 1.442695
  %v1640 = vpow.pop %v1639
  %v1641 = vadd.f32 %v1640, 1.0
  %v1642 = vrcp.pop %v1641
  %v1643 = vmul.f32 1.0, %v1642
  %v1644 = vtanh.pop %v1559
  %v1646 = vrot.slane %v1435, 6
  %v1648 = vmul.f32 %v1643, %v1646
  %1650 = vrot.lane.b32.xlu0 %v1644, 64
  %v1651 = vpop.permute.xlu0 %1650
  %v1653 = vmul.f32 %v1643, %v1651
  %1655 = vrot.lane.b32.xlu0 %v1653, 32
  %v1656 = vpop.permute.xlu0 %1655
  %v1658 = vadd.f32 %v1648, %v1656
  %v1659 = vtanh.pop %v1658
  %1661 = vrot.lane.b32.xlu0 %v1659, 64
  %v1662 = vpop.permute.xlu0 %1661
  %v1664 = vmul.f32 %v1643, %v1662
  %v1665 = vxor.u32 %v1637, 2147483648
  %v1666 = vmul.f32 %v1665, 1.442695
  %v1667 = vpow.pop %v1666
  %v1668 = vadd.f32 %v1667, 1.0
  %v1669 = vrcp.pop %v1668
  %v1670 = vmul.f32 1.0, %v1669
  %v1671 = vtanh.pop %v1637
  %v1673 = vrot.slane %v1462, 2
  %v1675 = vmul.f32 %v1670, %v1673
  %1677 = vrot.lane.b32.xlu0 %v1671, 64
  %v1678 = vpop.permute.xlu0 %1677
  %v1680 = vmul.f32 %v1670, %v1678
  %1682 = vrot.lane.b32.xlu0 %v1680, 32
  %v1683 = vpop.permute.xlu0 %1682
  %v1685 = vadd.f32 %v1675, %v1683
  %v1686 = vtanh.pop %v1685
  %1688 = vrot.lane.b32.xlu0 %v1686, 64
  %v1689 = vpop.permute.xlu0 %1688
  %v1691 = vmul.f32 %v1670, %v1689
  %1693 = vrot.lane.b32.xlu0 %v1664, 32
  %v1694 = vpop.permute.xlu0 %1693
  %1696 = vst.msk [vmem:[%s1035 - $0x4] sm:$0x30] %vm801, %v1694
  %1698 = vrot.lane.b32.xlu0 %v1691, 64
  %v1699 = vpop.permute.xlu0 %1698
  %1701 = vst.msk [vmem:[%s1028 - $0x6] sm:$0xc0] %vm808, %v1699
  %v1702 = vld [vmem:[#allocation2 + $0x10] sm:$0xc0]
  %v1703 = vld [vmem:[#allocation2 + $0x8] sm:$0x30]
  %v1704 = vrot.slane %v1664, 4
  %1705 = vrot.lane.b32.xlu0 %v1704, 32
  %v1706 = vpop.permute.xlu0 %1705
  %v1707 = vsel %vm43, %v1706, 0
  %1709 = vmatprep.subr.mxu0 0.0
  %1710 = vmatpush1.msra.mxu0 0.0
  %1711 = vmatprep.subr.mxu0 0.0
  %1712 = vmatpush1.msra.mxu0 0.0
  %1713 = vmatprep.subr.mxu0 0.0
  %1714 = vmatpush1.msra.mxu0 0.0
  %1715 = vmatprep.subr.mxu0 0.0
  %1716 = vmatpush1.msra.mxu0 0.0
  %1717 = vmatprep.subr.mxu0 0.0
  %1718 = vmatpush1.msra.mxu0 0.0
  %1719 = vmatprep.subr.mxu0 0.0
  %1720 = vmatpush1.msra.mxu0 0.0
  %1721 = vmatprep.subr.mxu0 0.0
  %1722 = vmatpush1.msra.mxu0 0.0
  %1723 = vmatprep.subr.mxu0 0.0
  %1724 = vmatpush1.msra.mxu0 0.0
  %1725 = vmatprep.subr.mxu0 0.0
  %1726 = vmatpush1.msra.mxu0 0.0
  %1727 = vmatprep.subr.mxu0 0.0
  %1728 = vmatpush1.msra.mxu0 0.0
  %1729 = vmatprep.subr.mxu0 0.0
  %1730 = vmatpush1.msra.mxu0 0.0
  %1731 = vmatprep.subr.mxu0 0.0
  %1732 = vmatpush1.msra.mxu0 0.0
  %1733 = vmatprep.subr.mxu0 0.0
  %1734 = vmatpush1.msra.mxu0 %v145
  %1735 = vmatprep.subr.mxu0 0.0
  %1736 = vmatpush1.msra.mxu0 %v144
  %1737 = vmatprep.subr.mxu0 0.0
  %1738 = vmatpush1.msra.mxu0 %v143
  %1739 = vmatprep.subr.mxu0 0.0
  %1740 = vmatpush1.msra.mxu0 %v142
  %1741 = vmatprep.subr.mxu0 0.0
  %1742 = vmatpush2.msra.mxu0 0.0
  %1743 = vmatprep.subr.mxu0 0.0
  %1744 = vmatpush2.msra.mxu0 0.0
  %1745 = vmatprep.subr.mxu0 0.0
  %1746 = vmatpush2.msra.mxu0 0.0
  %1747 = vmatprep.subr.mxu0 0.0
  %1748 = vmatpush2.msra.mxu0 0.0
  %1749 = vmatprep.subr.mxu0 0.0
  %1750 = vmatpush2.msra.mxu0 0.0
  %1751 = vmatprep.subr.mxu0 0.0
  %1752 = vmatpush2.msra.mxu0 0.0
  %1753 = vmatprep.subr.mxu0 0.0
  %1754 = vmatpush2.msra.mxu0 0.0
  %1755 = vmatprep.subr.mxu0 0.0
  %1756 = vmatpush2.msra.mxu0 0.0
  %1757 = vmatprep.subr.mxu0 0.0
  %1758 = vmatpush2.msra.mxu0 0.0
  %1759 = vmatprep.subr.mxu0 0.0
  %1760 = vmatpush2.msra.mxu0 0.0
  %1761 = vmatprep.subr.mxu0 0.0
  %1762 = vmatpush2.msra.mxu0 0.0
  %1763 = vmatprep.subr.mxu0 0.0
  %1764 = vmatpush2.msra.mxu0 0.0
  %1765 = vmatprep.subr.mxu0 0.0
  %1766 = vmatpush2.msra.mxu0 0.0
  %1767 = vmatprep.subr.mxu0 0.0
  %1768 = vmatpush2.msra.mxu0 0.0
  %1769 = vmatprep.subr.mxu0 0.0
  %1770 = vmatpush2.msra.mxu0 0.0
  %1771 = vmatprep.subr.mxu0 0.0
  %1772 = vmatpush2.msra.mxu0 0.0
  %1773 = vmatprep.mubr.f32.mxu0 0.0
  %1774 = vmatmul.mubr.f32.gmra.mxu0 %v1707
  %v1775 = vpop.f32.mrf.mxu0
  %v1776 = vadd.f32 0.0, %v1775
  %v1777 = vpop.f32.mrf.mxu0
  %1778 = vdwg.mxu0
  %v1780 = vrot.slane %v1776, 2
  %v1782 = vadd.f32 %v1702, %v1780
  %v1783 = vrot.slane %v1691, 6
  %1784 = vrot.lane.b32.xlu0 %v1783, 32
  %v1785 = vpop.permute.xlu0 %1784
  %v1786 = vsel %vm43, %v1785, 0
  %1788 = vmatprep.subr.mxu0 0.0
  %1789 = vmatpush1.msra.mxu0 0.0
  %1790 = vmatprep.subr.mxu0 0.0
  %1791 = vmatpush1.msra.mxu0 0.0
  %1792 = vmatprep.subr.mxu0 0.0
  %1793 = vmatpush1.msra.mxu0 0.0
  %1794 = vmatprep.subr.mxu0 0.0
  %1795 = vmatpush1.msra.mxu0 0.0
  %1796 = vmatprep.subr.mxu0 0.0
  %1797 = vmatpush1.msra.mxu0 0.0
  %1798 = vmatprep.subr.mxu0 0.0
  %1799 = vmatpush1.msra.mxu0 0.0
  %1800 = vmatprep.subr.mxu0 0.0
  %1801 = vmatpush1.msra.mxu0 0.0
  %1802 = vmatprep.subr.mxu0 0.0
  %1803 = vmatpush1.msra.mxu0 0.0
  %1804 = vmatprep.subr.mxu0 0.0
  %1805 = vmatpush1.msra.mxu0 0.0
  %1806 = vmatprep.subr.mxu0 0.0
  %1807 = vmatpush1.msra.mxu0 0.0
  %1808 = vmatprep.subr.mxu0 0.0
  %1809 = vmatpush1.msra.mxu0 0.0
  %1810 = vmatprep.subr.mxu0 0.0
  %1811 = vmatpush1.msra.mxu0 0.0
  %1812 = vmatprep.subr.mxu0 0.0
  %1813 = vmatpush1.msra.mxu0 %v149
  %1814 = vmatprep.subr.mxu0 0.0
  %1815 = vmatpush1.msra.mxu0 %v148
  %1816 = vmatprep.subr.mxu0 0.0
  %1817 = vmatpush1.msra.mxu0 %v147
  %1818 = vmatprep.subr.mxu0 0.0
  %1819 = vmatpush1.msra.mxu0 %v146
  %1820 = vmatprep.subr.mxu0 0.0
  %1821 = vmatpush2.msra.mxu0 0.0
  %1822 = vmatprep.subr.mxu0 0.0
  %1823 = vmatpush2.msra.mxu0 0.0
  %1824 = vmatprep.subr.mxu0 0.0
  %1825 = vmatpush2.msra.mxu0 0.0
  %1826 = vmatprep.subr.mxu0 0.0
  %1827 = vmatpush2.msra.mxu0 0.0
  %1828 = vmatprep.subr.mxu0 0.0
  %1829 = vmatpush2.msra.mxu0 0.0
  %1830 = vmatprep.subr.mxu0 0.0
  %1831 = vmatpush2.msra.mxu0 0.0
  %1832 = vmatprep.subr.mxu0 0.0
  %1833 = vmatpush2.msra.mxu0 0.0
  %1834 = vmatprep.subr.mxu0 0.0
  %1835 = vmatpush2.msra.mxu0 0.0
  %1836 = vmatprep.subr.mxu0 0.0
  %1837 = vmatpush2.msra.mxu0 0.0
  %1838 = vmatprep.subr.mxu0 0.0
  %1839 = vmatpush2.msra.mxu0 0.0
  %1840 = vmatprep.subr.mxu0 0.0
  %1841 = vmatpush2.msra.mxu0 0.0
  %1842 = vmatprep.subr.mxu0 0.0
  %1843 = vmatpush2.msra.mxu0 0.0
  %1844 = vmatprep.subr.mxu0 0.0
  %1845 = vmatpush2.msra.mxu0 0.0
  %1846 = vmatprep.subr.mxu0 0.0
  %1847 = vmatpush2.msra.mxu0 0.0
  %1848 = vmatprep.subr.mxu0 0.0
  %1849 = vmatpush2.msra.mxu0 0.0
  %1850 = vmatprep.subr.mxu0 0.0
  %1851 = vmatpush2.msra.mxu0 0.0
  %1852 = vmatprep.mubr.f32.mxu0 0.0
  %1853 = vmatmul.mubr.f32.gmra.mxu0 %v1786
  %v1854 = vpop.f32.mrf.mxu0
  %v1855 = vadd.f32 0.0, %v1854
  %v1856 = vpop.f32.mrf.mxu0
  %1857 = vdwg.mxu0
  %v1859 = vrot.slane %v1855, 4
  %v1861 = vadd.f32 %v1703, %v1859
  %v1862 = vxor.u32 %v1782, 2147483648
  %v1863 = vmul.f32 %v1862, 1.442695
  %v1864 = vpow.pop %v1863
  %v1865 = vadd.f32 %v1864, 1.0
  %v1866 = vrcp.pop %v1865
  %v1867 = vmul.f32 1.0, %v1866
  %v1868 = vtanh.pop %v1782
  %v1870 = vrot.slane %v1658, 6
  %v1872 = vmul.f32 %v1867, %v1870
  %1874 = vrot.lane.b32.xlu0 %v1868, 64
  %v1875 = vpop.permute.xlu0 %1874
  %v1877 = vmul.f32 %v1867, %v1875
  %1879 = vrot.lane.b32.xlu0 %v1877, 32
  %v1880 = vpop.permute.xlu0 %1879
  %v1882 = vadd.f32 %v1872, %v1880
  %v1883 = vtanh.pop %v1882
  %1885 = vrot.lane.b32.xlu0 %v1883, 64
  %v1886 = vpop.permute.xlu0 %1885
  %v1888 = vmul.f32 %v1867, %v1886
  %v1889 = vxor.u32 %v1861, 2147483648
  %v1890 = vmul.f32 %v1889, 1.442695
  %v1891 = vpow.pop %v1890
  %v1892 = vadd.f32 %v1891, 1.0
  %v1893 = vrcp.pop %v1892
  %v1894 = vmul.f32 1.0, %v1893
  %v1895 = vtanh.pop %v1861
  %v1897 = vrot.slane %v1685, 2
  %v1899 = vmul.f32 %v1894, %v1897
  %1901 = vrot.lane.b32.xlu0 %v1895, 64
  %v1902 = vpop.permute.xlu0 %1901
  %v1904 = vmul.f32 %v1894, %v1902
  %1906 = vrot.lane.b32.xlu0 %v1904, 32
  %v1907 = vpop.permute.xlu0 %1906
  %v1909 = vadd.f32 %v1899, %v1907
  %v1910 = vtanh.pop %v1909
  %1912 = vrot.lane.b32.xlu0 %v1910, 64
  %v1913 = vpop.permute.xlu0 %1912
  %v1915 = vmul.f32 %v1894, %v1913
  %1917 = vrot.lane.b32.xlu0 %v1888, 32
  %v1918 = vpop.permute.xlu0 %1917
  %1920 = vst.msk [vmem:[%s807 - $0x6] sm:$0xc0] %vm1029, %v1918
  %1922 = vrot.lane.b32.xlu0 %v1915, 64
  %v1923 = vpop.permute.xlu0 %1922
  %1925 = vst.msk [vmem:[%s800 - $0x4] sm:$0x30] %vm1036, %v1923
  %v1926 = vld [vmem:[#allocation2 + $0x20] sm:$0x3]
  %v1927 = vld [vmem:[#allocation2 + $0x8] sm:$0xc]
  %v1928 = vrot.slane %v1888, 6
  %1929 = vrot.lane.b32.xlu0 %v1928, 32
  %v1930 = vpop.permute.xlu0 %1929
  %v1931 = vsel %vm43, %v1930, 0
  %1933 = vmatprep.subr.mxu0 0.0
  %1934 = vmatpush1.msra.mxu0 0.0
  %1935 = vmatprep.subr.mxu0 0.0
  %1936 = vmatpush1.msra.mxu0 0.0
  %1937 = vmatprep.subr.mxu0 0.0
  %1938 = vmatpush1.msra.mxu0 0.0
  %1939 = vmatprep.subr.mxu0 0.0
  %1940 = vmatpush1.msra.mxu0 0.0
  %1941 = vmatprep.subr.mxu0 0.0
  %1942 = vmatpush1.msra.mxu0 0.0
  %1943 = vmatprep.subr.mxu0 0.0
  %1944 = vmatpush1.msra.mxu0 0.0
  %1945 = vmatprep.subr.mxu0 0.0
  %1946 = vmatpush1.msra.mxu0 0.0
  %1947 = vmatprep.subr.mxu0 0.0
  %1948 = vmatpush1.msra.mxu0 0.0
  %1949 = vmatprep.subr.mxu0 0.0
  %1950 = vmatpush1.msra.mxu0 0.0
  %1951 = vmatprep.subr.mxu0 0.0
  %1952 = vmatpush1.msra.mxu0 0.0
  %1953 = vmatprep.subr.mxu0 0.0
  %1954 = vmatpush1.msra.mxu0 0.0
  %1955 = vmatprep.subr.mxu0 0.0
  %1956 = vmatpush1.msra.mxu0 0.0
  %1957 = vmatprep.subr.mxu0 0.0
  %1958 = vmatpush1.msra.mxu0 %v145
  %1959 = vmatprep.subr.mxu0 0.0
  %1960 = vmatpush1.msra.mxu0 %v144
  %1961 = vmatprep.subr.mxu0 0.0
  %1962 = vmatpush1.msra.mxu0 %v143
  %1963 = vmatprep.subr.mxu0 0.0
  %1964 = vmatpush1.msra.mxu0 %v142
  %1965 = vmatprep.subr.mxu0 0.0
  %1966 = vmatpush2.msra.mxu0 0.0
  %1967 = vmatprep.subr.mxu0 0.0
  %1968 = vmatpush2.msra.mxu0 0.0
  %1969 = vmatprep.subr.mxu0 0.0
  %1970 = vmatpush2.msra.mxu0 0.0
  %1971 = vmatprep.subr.mxu0 0.0
  %1972 = vmatpush2.msra.mxu0 0.0
  %1973 = vmatprep.subr.mxu0 0.0
  %1974 = vmatpush2.msra.mxu0 0.0
  %1975 = vmatprep.subr.mxu0 0.0
  %1976 = vmatpush2.msra.mxu0 0.0
  %1977 = vmatprep.subr.mxu0 0.0
  %1978 = vmatpush2.msra.mxu0 0.0
  %1979 = vmatprep.subr.mxu0 0.0
  %1980 = vmatpush2.msra.mxu0 0.0
  %1981 = vmatprep.subr.mxu0 0.0
  %1982 = vmatpush2.msra.mxu0 0.0
  %1983 = vmatprep.subr.mxu0 0.0
  %1984 = vmatpush2.msra.mxu0 0.0
  %1985 = vmatprep.subr.mxu0 0.0
  %1986 = vmatpush2.msra.mxu0 0.0
  %1987 = vmatprep.subr.mxu0 0.0
  %1988 = vmatpush2.msra.mxu0 0.0
  %1989 = vmatprep.subr.mxu0 0.0
  %1990 = vmatpush2.msra.mxu0 0.0
  %1991 = vmatprep.subr.mxu0 0.0
  %1992 = vmatpush2.msra.mxu0 0.0
  %1993 = vmatprep.subr.mxu0 0.0
  %1994 = vmatpush2.msra.mxu0 0.0
  %1995 = vmatprep.subr.mxu0 0.0
  %1996 = vmatpush2.msra.mxu0 0.0
  %1997 = vmatprep.mubr.f32.mxu0 0.0
  %1998 = vmatmul.mubr.f32.gmra.mxu0 %v1931
  %v1999 = vpop.f32.mrf.mxu0
  %v2000 = vadd.f32 0.0, %v1999
  %v2001 = vpop.f32.mrf.mxu0
  %2002 = vdwg.mxu0
  %v2003 = vadd.f32 %v1926, %v2000
  %v2004 = vrot.slane %v1915, 4
  %2005 = vrot.lane.b32.xlu0 %v2004, 32
  %v2006 = vpop.permute.xlu0 %2005
  %v2007 = vsel %vm43, %v2006, 0
  %2009 = vmatprep.subr.mxu0 0.0
  %2010 = vmatpush1.msra.mxu0 0.0
  %2011 = vmatprep.subr.mxu0 0.0
  %2012 = vmatpush1.msra.mxu0 0.0
  %2013 = vmatprep.subr.mxu0 0.0
  %2014 = vmatpush1.msra.mxu0 0.0
  %2015 = vmatprep.subr.mxu0 0.0
  %2016 = vmatpush1.msra.mxu0 0.0
  %2017 = vmatprep.subr.mxu0 0.0
  %2018 = vmatpush1.msra.mxu0 0.0
  %2019 = vmatprep.subr.mxu0 0.0
  %2020 = vmatpush1.msra.mxu0 0.0
  %2021 = vmatprep.subr.mxu0 0.0
  %2022 = vmatpush1.msra.mxu0 0.0
  %2023 = vmatprep.subr.mxu0 0.0
  %2024 = vmatpush1.msra.mxu0 0.0
  %2025 = vmatprep.subr.mxu0 0.0
  %2026 = vmatpush1.msra.mxu0 0.0
  %2027 = vmatprep.subr.mxu0 0.0
  %2028 = vmatpush1.msra.mxu0 0.0
  %2029 = vmatprep.subr.mxu0 0.0
  %2030 = vmatpush1.msra.mxu0 0.0
  %2031 = vmatprep.subr.mxu0 0.0
  %2032 = vmatpush1.msra.mxu0 0.0
  %2033 = vmatprep.subr.mxu0 0.0
  %2034 = vmatpush1.msra.mxu0 %v149
  %2035 = vmatprep.subr.mxu0 0.0
  %2036 = vmatpush1.msra.mxu0 %v148
  %2037 = vmatprep.subr.mxu0 0.0
  %2038 = vmatpush1.msra.mxu0 %v147
  %2039 = vmatprep.subr.mxu0 0.0
  %2040 = vmatpush1.msra.mxu0 %v146
  %2041 = vmatprep.subr.mxu0 0.0
  %2042 = vmatpush2.msra.mxu0 0.0
  %2043 = vmatprep.subr.mxu0 0.0
  %2044 = vmatpush2.msra.mxu0 0.0
  %2045 = vmatprep.subr.mxu0 0.0
  %2046 = vmatpush2.msra.mxu0 0.0
  %2047 = vmatprep.subr.mxu0 0.0
  %2048 = vmatpush2.msra.mxu0 0.0
  %2049 = vmatprep.subr.mxu0 0.0
  %2050 = vmatpush2.msra.mxu0 0.0
  %2051 = vmatprep.subr.mxu0 0.0
  %2052 = vmatpush2.msra.mxu0 0.0
  %2053 = vmatprep.subr.mxu0 0.0
  %2054 = vmatpush2.msra.mxu0 0.0
  %2055 = vmatprep.subr.mxu0 0.0
  %2056 = vmatpush2.msra.mxu0 0.0
  %2057 = vmatprep.subr.mxu0 0.0
  %2058 = vmatpush2.msra.mxu0 0.0
  %2059 = vmatprep.subr.mxu0 0.0
  %2060 = vmatpush2.msra.mxu0 0.0
  %2061 = vmatprep.subr.mxu0 0.0
  %2062 = vmatpush2.msra.mxu0 0.0
  %2063 = vmatprep.subr.mxu0 0.0
  %2064 = vmatpush2.msra.mxu0 0.0
  %2065 = vmatprep.subr.mxu0 0.0
  %2066 = vmatpush2.msra.mxu0 0.0
  %2067 = vmatprep.subr.mxu0 0.0
  %2068 = vmatpush2.msra.mxu0 0.0
  %2069 = vmatprep.subr.mxu0 0.0
  %2070 = vmatpush2.msra.mxu0 0.0
  %2071 = vmatprep.subr.mxu0 0.0
  %2072 = vmatpush2.msra.mxu0 0.0
  %2073 = vmatprep.mubr.f32.mxu0 0.0
  %2074 = vmatmul.mubr.f32.gmra.mxu0 %v2007
  %v2075 = vpop.f32.mrf.mxu0
  %v2076 = vadd.f32 0.0, %v2075
  %v2077 = vpop.f32.mrf.mxu0
  %2078 = vdwg.mxu0
  %v2080 = vrot.slane %v2076, 6
  %v2082 = vadd.f32 %v1927, %v2080
  %v2083 = vxor.u32 %v2003, 2147483648
  %v2084 = vmul.f32 %v2083, 1.442695
  %v2085 = vpow.pop %v2084
  %v2086 = vadd.f32 %v2085, 1.0
  %v2087 = vrcp.pop %v2086
  %v2088 = vmul.f32 1.0, %v2087
  %v2089 = vtanh.pop %v2003
  %v2091 = vrot.slane %v1882, 6
  %v2093 = vmul.f32 %v2088, %v2091
  %2095 = vrot.lane.b32.xlu0 %v2089, 64
  %v2096 = vpop.permute.xlu0 %2095
  %v2098 = vmul.f32 %v2088, %v2096
  %2100 = vrot.lane.b32.xlu0 %v2098, 32
  %v2101 = vpop.permute.xlu0 %2100
  %v2103 = vadd.f32 %v2093, %v2101
  %v2104 = vtanh.pop %v2103
  %2106 = vrot.lane.b32.xlu0 %v2104, 64
  %v2107 = vpop.permute.xlu0 %2106
  %v2109 = vmul.f32 %v2088, %v2107
  %v2110 = vxor.u32 %v2082, 2147483648
  %v2111 = vmul.f32 %v2110, 1.442695
  %v2112 = vpow.pop %v2111
  %v2113 = vadd.f32 %v2112, 1.0
  %v2114 = vrcp.pop %v2113
  %v2115 = vmul.f32 1.0, %v2114
  %v2116 = vtanh.pop %v2082
  %v2118 = vrot.slane %v1909, 2
  %v2120 = vmul.f32 %v2115, %v2118
  %2122 = vrot.lane.b32.xlu0 %v2116, 64
  %v2123 = vpop.permute.xlu0 %2122
  %v2125 = vmul.f32 %v2115, %v2123
  %2127 = vrot.lane.b32.xlu0 %v2125, 32
  %v2128 = vpop.permute.xlu0 %2127
  %v2130 = vadd.f32 %v2120, %v2128
  %v2131 = vtanh.pop %v2130
  %2133 = vrot.lane.b32.xlu0 %v2131, 64
  %v2134 = vpop.permute.xlu0 %2133
  %v2136 = vmul.f32 %v2115, %v2134
  %2138 = vrot.lane.b32.xlu0 %v2109, 32
  %v2139 = vpop.permute.xlu0 %2138
  %2141 = vst.msk [vmem:[%s580] sm:$0x3] %vm352, %v2139
  %2143 = vrot.lane.b32.xlu0 %v2136, 64
  %v2144 = vpop.permute.xlu0 %2143
  %2146 = vst.msk [vmem:[%s573 - $0x2] sm:$0xc] %vm359, %v2144
  %v2147 = vld [vmem:[#allocation2 + $0x20] sm:$0xc]
  %v2148 = vld [vmem:[#allocation2 + $0x8] sm:$0x3]
  %v2149 = vsel %vm43, %v2139, 0
  %2151 = vmatprep.subr.mxu0 0.0
  %2152 = vmatpush1.msra.mxu0 0.0
  %2153 = vmatprep.subr.mxu0 0.0
  %2154 = vmatpush1.msra.mxu0 0.0
  %2155 = vmatprep.subr.mxu0 0.0
  %2156 = vmatpush1.msra.mxu0 0.0
  %2157 = vmatprep.subr.mxu0 0.0
  %2158 = vmatpush1.msra.mxu0 0.0
  %2159 = vmatprep.subr.mxu0 0.0
  %2160 = vmatpush1.msra.mxu0 0.0
  %2161 = vmatprep.subr.mxu0 0.0
  %2162 = vmatpush1.msra.mxu0 0.0
  %2163 = vmatprep.subr.mxu0 0.0
  %2164 = vmatpush1.msra.mxu0 0.0
  %2165 = vmatprep.subr.mxu0 0.0
  %2166 = vmatpush1.msra.mxu0 0.0
  %2167 = vmatprep.subr.mxu0 0.0
  %2168 = vmatpush1.msra.mxu0 0.0
  %2169 = vmatprep.subr.mxu0 0.0
  %2170 = vmatpush1.msra.mxu0 0.0
  %2171 = vmatprep.subr.mxu0 0.0
  %2172 = vmatpush1.msra.mxu0 0.0
  %2173 = vmatprep.subr.mxu0 0.0
  %2174 = vmatpush1.msra.mxu0 0.0
  %2175 = vmatprep.subr.mxu0 0.0
  %2176 = vmatpush1.msra.mxu0 %v145
  %2177 = vmatprep.subr.mxu0 0.0
  %2178 = vmatpush1.msra.mxu0 %v144
  %2179 = vmatprep.subr.mxu0 0.0
  %2180 = vmatpush1.msra.mxu0 %v143
  %2181 = vmatprep.subr.mxu0 0.0
  %2182 = vmatpush1.msra.mxu0 %v142
  %2183 = vmatprep.subr.mxu0 0.0
  %2184 = vmatpush2.msra.mxu0 0.0
  %2185 = vmatprep.subr.mxu0 0.0
  %2186 = vmatpush2.msra.mxu0 0.0
  %2187 = vmatprep.subr.mxu0 0.0
  %2188 = vmatpush2.msra.mxu0 0.0
  %2189 = vmatprep.subr.mxu0 0.0
  %2190 = vmatpush2.msra.mxu0 0.0
  %2191 = vmatprep.subr.mxu0 0.0
  %2192 = vmatpush2.msra.mxu0 0.0
  %2193 = vmatprep.subr.mxu0 0.0
  %2194 = vmatpush2.msra.mxu0 0.0
  %2195 = vmatprep.subr.mxu0 0.0
  %2196 = vmatpush2.msra.mxu0 0.0
  %2197 = vmatprep.subr.mxu0 0.0
  %2198 = vmatpush2.msra.mxu0 0.0
  %2199 = vmatprep.subr.mxu0 0.0
  %2200 = vmatpush2.msra.mxu0 0.0
  %2201 = vmatprep.subr.mxu0 0.0
  %2202 = vmatpush2.msra.mxu0 0.0
  %2203 = vmatprep.subr.mxu0 0.0
  %2204 = vmatpush2.msra.mxu0 0.0
  %2205 = vmatprep.subr.mxu0 0.0
  %2206 = vmatpush2.msra.mxu0 0.0
  %2207 = vmatprep.subr.mxu0 0.0
  %2208 = vmatpush2.msra.mxu0 0.0
  %2209 = vmatprep.subr.mxu0 0.0
  %2210 = vmatpush2.msra.mxu0 0.0
  %2211 = vmatprep.subr.mxu0 0.0
  %2212 = vmatpush2.msra.mxu0 0.0
  %2213 = vmatprep.subr.mxu0 0.0
  %2214 = vmatpush2.msra.mxu0 0.0
  %2215 = vmatprep.mubr.f32.mxu0 0.0
  %2216 = vmatmul.mubr.f32.gmra.mxu0 %v2149
  %v2217 = vpop.f32.mrf.mxu0
  %v2218 = vadd.f32 0.0, %v2217
  %v2219 = vpop.f32.mrf.mxu0
  %2220 = vdwg.mxu0
  %v2222 = vrot.slane %v2218, 6
  %v2224 = vadd.f32 %v2147, %v2222
  %v2225 = vrot.slane %v2136, 2
  %2226 = vrot.lane.b32.xlu0 %v2225, 32
  %v2227 = vpop.permute.xlu0 %2226
  %v2228 = vsel %vm43, %v2227, 0
  %2230 = vmatprep.subr.mxu0 0.0
  %2231 = vmatpush1.msra.mxu0 0.0
  %2232 = vmatprep.subr.mxu0 0.0
  %2233 = vmatpush1.msra.mxu0 0.0
  %2234 = vmatprep.subr.mxu0 0.0
  %2235 = vmatpush1.msra.mxu0 0.0
  %2236 = vmatprep.subr.mxu0 0.0
  %2237 = vmatpush1.msra.mxu0 0.0
  %2238 = vmatprep.subr.mxu0 0.0
  %2239 = vmatpush1.msra.mxu0 0.0
  %2240 = vmatprep.subr.mxu0 0.0
  %2241 = vmatpush1.msra.mxu0 0.0
  %2242 = vmatprep.subr.mxu0 0.0
  %2243 = vmatpush1.msra.mxu0 0.0
  %2244 = vmatprep.subr.mxu0 0.0
  %2245 = vmatpush1.msra.mxu0 0.0
  %2246 = vmatprep.subr.mxu0 0.0
  %2247 = vmatpush1.msra.mxu0 0.0
  %2248 = vmatprep.subr.mxu0 0.0
  %2249 = vmatpush1.msra.mxu0 0.0
  %2250 = vmatprep.subr.mxu0 0.0
  %2251 = vmatpush1.msra.mxu0 0.0
  %2252 = vmatprep.subr.mxu0 0.0
  %2253 = vmatpush1.msra.mxu0 0.0
  %2254 = vmatprep.subr.mxu0 0.0
  %2255 = vmatpush1.msra.mxu0 %v149
  %2256 = vmatprep.subr.mxu0 0.0
  %2257 = vmatpush1.msra.mxu0 %v148
  %2258 = vmatprep.subr.mxu0 0.0
  %2259 = vmatpush1.msra.mxu0 %v147
  %2260 = vmatprep.subr.mxu0 0.0
  %2261 = vmatpush1.msra.mxu0 %v146
  %2262 = vmatprep.subr.mxu0 0.0
  %2263 = vmatpush2.msra.mxu0 0.0
  %2264 = vmatprep.subr.mxu0 0.0
  %2265 = vmatpush2.msra.mxu0 0.0
  %2266 = vmatprep.subr.mxu0 0.0
  %2267 = vmatpush2.msra.mxu0 0.0
  %2268 = vmatprep.subr.mxu0 0.0
  %2269 = vmatpush2.msra.mxu0 0.0
  %2270 = vmatprep.subr.mxu0 0.0
  %2271 = vmatpush2.msra.mxu0 0.0
  %2272 = vmatprep.subr.mxu0 0.0
  %2273 = vmatpush2.msra.mxu0 0.0
  %2274 = vmatprep.subr.mxu0 0.0
  %2275 = vmatpush2.msra.mxu0 0.0
  %2276 = vmatprep.subr.mxu0 0.0
  %2277 = vmatpush2.msra.mxu0 0.0
  %2278 = vmatprep.subr.mxu0 0.0
  %2279 = vmatpush2.msra.mxu0 0.0
  %2280 = vmatprep.subr.mxu0 0.0
  %2281 = vmatpush2.msra.mxu0 0.0
  %2282 = vmatprep.subr.mxu0 0.0
  %2283 = vmatpush2.msra.mxu0 0.0
  %2284 = vmatprep.subr.mxu0 0.0
  %2285 = vmatpush2.msra.mxu0 0.0
  %2286 = vmatprep.subr.mxu0 0.0
  %2287 = vmatpush2.msra.mxu0 0.0
  %2288 = vmatprep.subr.mxu0 0.0
  %2289 = vmatpush2.msra.mxu0 0.0
  %2290 = vmatprep.subr.mxu0 0.0
  %2291 = vmatpush2.msra.mxu0 0.0
  %2292 = vmatprep.subr.mxu0 0.0
  %2293 = vmatpush2.msra.mxu0 0.0
  %2294 = vmatprep.mubr.f32.mxu0 0.0
  %2295 = vmatmul.mubr.f32.gmra.mxu0 %v2228
  %v2296 = vpop.f32.mrf.mxu0
  %v2297 = vadd.f32 0.0, %v2296
  %v2298 = vpop.f32.mrf.mxu0
  %2299 = vdwg.mxu0
  %v2300 = vadd.f32 %v2148, %v2297
  %v2301 = vxor.u32 %v2224, 2147483648
  %v2302 = vmul.f32 %v2301, 1.442695
  %v2303 = vpow.pop %v2302
  %v2304 = vadd.f32 %v2303, 1.0
  %v2305 = vrcp.pop %v2304
  %v2306 = vmul.f32 1.0, %v2305
  %v2307 = vtanh.pop %v2224
  %v2309 = vrot.slane %v2103, 6
  %v2311 = vmul.f32 %v2306, %v2309
  %2313 = vrot.lane.b32.xlu0 %v2307, 64
  %v2314 = vpop.permute.xlu0 %2313
  %v2316 = vmul.f32 %v2306, %v2314
  %2318 = vrot.lane.b32.xlu0 %v2316, 32
  %v2319 = vpop.permute.xlu0 %2318
  %v2321 = vadd.f32 %v2311, %v2319
  %v2322 = vtanh.pop %v2321
  %2324 = vrot.lane.b32.xlu0 %v2322, 64
  %v2325 = vpop.permute.xlu0 %2324
  %v2327 = vmul.f32 %v2306, %v2325
  %v2328 = vxor.u32 %v2300, 2147483648
  %v2329 = vmul.f32 %v2328, 1.442695
  %v2330 = vpow.pop %v2329
  %v2331 = vadd.f32 %v2330, 1.0
  %v2332 = vrcp.pop %v2331
  %v2333 = vmul.f32 1.0, %v2332
  %v2334 = vtanh.pop %v2300
  %v2336 = vrot.slane %v2130, 2
  %v2338 = vmul.f32 %v2333, %v2336
  %2340 = vrot.lane.b32.xlu0 %v2334, 64
  %v2341 = vpop.permute.xlu0 %2340
  %v2343 = vmul.f32 %v2333, %v2341
  %2345 = vrot.lane.b32.xlu0 %v2343, 32
  %v2346 = vpop.permute.xlu0 %2345
  %v2348 = vadd.f32 %v2338, %v2346
  %v2349 = vtanh.pop %v2348
  %2351 = vrot.lane.b32.xlu0 %v2349, 64
  %v2352 = vpop.permute.xlu0 %2351
  %v2354 = vmul.f32 %v2333, %v2352
  %2356 = vrot.lane.b32.xlu0 %v2327, 32
  %v2357 = vpop.permute.xlu0 %2356
  %2359 = vst.msk [vmem:[%s358 - $0x2] sm:$0xc] %vm574, %v2357
  %2361 = vrot.lane.b32.xlu0 %v2354, 64
  %v2362 = vpop.permute.xlu0 %2361
  %2364 = vst.msk [vmem:[%s5] sm:$0x3] %vm581, %v2362
  // Predicated region
  $region22: #{seq2seq_forward.3} parent=0 // pred_check
    _
  $region23: #{seq2seq_forward.3} parent=0 // pred_check_branch
    %2366 = sbr.rel (0) target = $region25
  $region24: #{seq2seq_forward.3} parent=0 // pred_region
    _
  $region25: #{seq2seq_forward.3} parent=0 // pred_fallthru
    _
  // Predicated region
  $region26: #{seq2seq_forward.3} parent=0 // pred_check
    _
  $region27: #{seq2seq_forward.3} parent=0 // pred_check_branch
    %2368 = sbr.rel (0) target = $region29
  $region28: #{seq2seq_forward.3} parent=0 // pred_region
    _
  $region29: #{seq2seq_forward.3} parent=0 // pred_fallthru
    _

</llo_original>
